<compile_context>
chip_gen: v7x
topology: tpu7x:2x2x1
jax: 0.10.0
libtpu: 0.0.40
codegen_flags: <defaults>
</compile_context>

<pallas_src>
import functools

import jax
import jax.numpy as jnp
from jax import lax
from jax.experimental import pallas as pl
from jax.experimental.pallas import tpu as pltpu


def _round_up(x, m):
    return (x + m - 1) // m * m


def _layer_dims(L, Cin0, K, couts, halo):
    """Static per-layer geometry for Conv1d(pad=halo) + MaxPool1d(2,2, floor)."""
    dims = []
    lin, cin = L, Cin0
    for cout in couts:
        lconv = lin + 2 * halo - K + 1
        lh = lconv // 2                      # floor pooling (ceil_mode=False)
        assert lh >= 1
        dims.append(dict(Lin=lin, Lconv=lconv, Lh=lh, Lc=2 * lh,
                         Cin=cin, Cout=cout,
                         Lha=_round_up(lh, 8),              # aligned half-block rows
                         Lpad8=_round_up(lin + 8 + halo, 8)))  # 8-row left zero block
        lin, cin = lh, cout
    return dims


def _make_kernel(dims, K, bblk, halo):
    """Fused 5-layer kernel body; all shapes static, all activations in VMEM."""
    nL = len(dims)
    d1 = dims[0]
    L1, Lc1, Lh1, C1 = d1["Lin"], d1["Lc"], d1["Lh"], d1["Cout"]

    def kernel(*refs):
        x_ref = refs[0]                                   # (bblk, 1, L) block
        w = [refs[1 + 3 * i] for i in range(nL)]
        s = [refs[2 + 3 * i] for i in range(nL)]
        t = [refs[3 + 3 * i] for i in range(nL)]
        o_ref = refs[1 + 3 * nL]                          # (bblk, 128, 4)
        scratch = refs[2 + 3 * nL:]
        pad1_ref = scratch[0]                             # (bblk, 1, L+2)  f32
        t1s_ref = scratch[1]                              # (bblk, Lc1, 4)  f32
        pad_refs = [scratch[2 + 2 * i] for i in range(nL - 1)]   # f32 padded inputs
        col_refs = [scratch[3 + 2 * i] for i in range(nL - 1)]   # bf16 even/odd im2col

        # -------- layer 1 (Cin=1): channels-on-sublane / positions-on-lane VPU path
        pad1_ref[:, :, 0:halo] = jnp.zeros((bblk, 1, halo), jnp.float32)
        pad1_ref[:, :, halo + L1:] = jnp.zeros((bblk, 1, halo), jnp.float32)
        pad1_ref[:, :, halo:halo + L1] = x_ref[...]
        acc = pad1_ref[:, :, 0:Lc1] * w[0][0]             # (bblk,1,Lc1)*(4,1)->(bblk,4,Lc1)
        for k in range(1, K):
            acc = acc + pad1_ref[:, :, k:k + Lc1] * w[0][k]
        h1 = jnp.maximum(acc * s[0][...] + t[0][...], 0.0)       # folded BN + ReLU
        t1s_ref[...] = jnp.swapaxes(h1, 1, 2)                     # (bblk, Lc1, 4)
        pooled = jnp.maximum(t1s_ref[:, pl.ds(0, Lh1, 2), :],
                             t1s_ref[:, pl.ds(1, Lh1, 2), :])     # MaxPool1d(2,2)
        pad_refs[0][:, 8:8 + Lh1, :] = pooled

        # -------- layers 2..5: even/odd im2col (bf16) + one MXU dot per layer
        base = 8 - halo
        for i in range(1, nL):
            d = dims[i]
            lin, lh, lha = d["Lin"], d["Lh"], d["Lha"]
            cin, cout, lpad8 = d["Cin"], d["Cout"], d["Lpad8"]
            pad_ref = pad_refs[i - 1]
            col_ref = col_refs[i - 1]

            # zero halos (interior rows 8..8+lin-1 were written by the previous layer)
            pad_ref[:, 0:8, :] = jnp.zeros((bblk, 8, cin), jnp.float32)
            pad_ref[:, 8 + lin:, :] = jnp.zeros((bblk, lpad8 - 8 - lin, cin), jnp.float32)

            # even/odd im2col: output position 2j reads padded rows base+2j+k,
            # position 2j+1 reads base+2j+1+k.  Pool == max of the two halves.
            for k in range(K):
                col_ref[:, 0:lh, k * cin:(k + 1) * cin] = (
                    pad_ref[:, pl.ds(base + k, lh, 2), :].astype(jnp.bfloat16))
                col_ref[:, lha:lha + lh, k * cin:(k + 1) * cin] = (
                    pad_ref[:, pl.ds(base + 1 + k, lh, 2), :].astype(jnp.bfloat16))

            # one MXU matmul over the whole batch block (M = bblk * 2 * lha)
            colv = col_ref[...].reshape(bblk * 2 * lha, K * cin)
            accd = jnp.dot(colv, w[i][...], preferred_element_type=jnp.float32)
            hbn = jnp.maximum(accd * s[i][...] + t[i][...], 0.0)   # BN + ReLU (f32)
            h3 = hbn.reshape(bblk, 2 * lha, cout)
            pooled = jnp.maximum(h3[:, 0:lh, :], h3[:, lha:lha + lh, :])  # (bblk, lh, cout)

            if i + 1 < nL:
                pad_refs[i][:, 8:8 + lh, :] = pooled
            else:
                # fused channel-major flatten: emit (bblk, Cout, 4)
                o_ref[...] = jnp.swapaxes(pooled, 1, 2)

    return kernel


def cnnlayer_forward(tar_ncl, params, *, bn_eps=1e-5, halo=1, batch_block=8):
    """tar_ncl: (B, 1, L) float32, PyTorch NCL convention. Returns (B, 512)."""
    B, Cin0, L = tar_ncl.shape
    assert Cin0 == 1
    K = params[0]["w"].shape[2]
    couts = [p["w"].shape[0] for p in params]
    dims = _layer_dims(L, Cin0, K, couts, halo)
    # AdaptiveMaxPool1d(4) equals MaxPool1d(2,2) only when the last conv length is 8.
    assert dims[-1]["Lconv"] == 8, \
        "AdaptiveMaxPool1d(4) only supported when the last conv length is 8 (input length 256)"
    # TODO(synk): a true adaptive pool for other input lengths is not implemented.

    x = tar_ncl.astype(jnp.float32)

    # batch blocking: at least 2 grid steps whenever B >= 2 (keeps both v7x TCs busy)
    bblk = 1 if B <= 1 else max(1, min(batch_block, (B + 1) // 2))
    nblocks = -(-B // bblk)
    npad = nblocks * bblk
    if npad != B:
        x = jnp.pad(x, ((0, npad - B), (0, 0), (0, 0)))

    args = [x]
    in_specs = [pl.BlockSpec((bblk, 1, L), lambda b: (b, 0, 0))]

    def _rep(shape):
        nd = len(shape)
        return pl.BlockSpec(shape, lambda b, _nd=nd: (0,) * _nd)

    for li, (p, d) in enumerate(zip(params, dims)):
        cin, cout = d["Cin"], d["Cout"]
        scale = (p["gamma"] / jnp.sqrt(p["rvar"] + bn_eps)).astype(jnp.float32)
        shift = ((p["b"] - p["rmean"]) * scale + p["beta"]).astype(jnp.float32)
        if li == 0:
            w_arg = jnp.transpose(p["w"], (2, 0, 1)).astype(jnp.float32)   # (K, 4, 1)
            s_arg = scale.reshape(cout, 1)
            t_arg = shift.reshape(cout, 1)
        else:
            w_kio = jnp.transpose(p["w"], (2, 1, 0))                        # (K, Cin, Cout)
            w_arg = w_kio.reshape(K * cin, cout).astype(jnp.bfloat16)       # MXU operand
            s_arg = scale.reshape(1, cout)
            t_arg = shift.reshape(1, cout)
        args += [w_arg, s_arg, t_arg]
        in_specs += [_rep(tuple(w_arg.shape)), _rep(tuple(s_arg.shape)),
                     _rep(tuple(t_arg.shape))]

    scratch_shapes = [
        pltpu.VMEM((bblk, 1, L + 2 * halo), jnp.float32),                   # layer-1 pad
        pltpu.VMEM((bblk, dims[0]["Lc"], dims[0]["Cout"]), jnp.float32),    # layer-1 act (M,C)
    ]
    for d in dims[1:]:
        scratch_shapes.append(pltpu.VMEM((bblk, d["Lpad8"], d["Cin"]), jnp.float32))
        scratch_shapes.append(pltpu.VMEM((bblk, 2 * d["Lha"], K * d["Cin"]), jnp.bfloat16))

    Lh_last, C_last = dims[-1]["Lh"], dims[-1]["Cout"]
    out = pl.pallas_call(
        _make_kernel(dims, K, bblk, halo),
        out_shape=jax.ShapeDtypeStruct((npad, C_last, Lh_last), jnp.float32),
        grid_spec=pltpu.PrefetchScalarGridSpec(
            num_scalar_prefetch=0,
            grid=(nblocks,),
            in_specs=in_specs,
            out_specs=pl.BlockSpec((bblk, C_last, Lh_last), lambda b: (b, 0, 0)),
            scratch_shapes=scratch_shapes,
        ),
        compiler_params=pltpu.CompilerParams(dimension_semantics=("parallel",)),
    )(*args)

    # Kernel already emits channel-major (B, C, 4); the remaining reshape is a
    # free minor-dim merge (no transpose launch).
    return out[:B].reshape(B, C_last * Lh_last)


def _reference_forward(tar_ncl, params, *, bn_eps=1e-5, halo=1):
    """Pure-JAX (f32) reference of the PyTorch forward (eval mode)."""
    h = tar_ncl.astype(jnp.float32)                                   # (B, C, L)
    for p in params:
        h = lax.conv_general_dilated(h, p["w"].astype(jnp.float32), (1,),
                                     [(halo, halo)],
                                     dimension_numbers=("NCH", "OIH", "NCH"))
        h = h + p["b"][None, :, None]
        scale = (p["gamma"] / jnp.sqrt(p["rvar"] + bn_eps))[None, :, None]
        h = (h - p["rmean"][None, :, None]) * scale + p["beta"][None, :, None]
        h = jnp.maximum(h, 0.0)
        Lh = h.shape[-1] // 2                                          # MaxPool1d(2,2) floor
        h = jnp.max(h[..., :2 * Lh].reshape(h.shape[0], h.shape[1], Lh, 2), axis=-1)
    return h.reshape(h.shape[0], -1)                                   # channel-major flatten


def init_params(key, in_channel=1, kernel_size=7):
    chans = [in_channel, 4, 16, 32, 64, 128]
    params = []
    for i in range(5):
        cin, cout = chans[i], chans[i + 1]
        key, k1, k2, k3, k4, k5, k6 = jax.random.split(key, 7)
        fan_in = cin * kernel_size
        params.append(dict(
            w=jax.random.normal(k1, (cout, cin, kernel_size), jnp.float32) / jnp.sqrt(fan_in),
            b=0.05 * jax.random.normal(k2, (cout,), jnp.float32),
            gamma=1.0 + 0.1 * jax.random.normal(k3, (cout,), jnp.float32),
            beta=0.05 * jax.random.normal(k4, (cout,), jnp.float32),
            rmean=0.05 * jax.random.normal(k5, (cout,), jnp.float32),
            rvar=1.0 + 0.1 * jax.random.uniform(k6, (cout,), jnp.float32),
        ))
    return params


if __name__ == "__main__":
    key = jax.random.PRNGKey(0)
    kp, kx = jax.random.split(key)
    params = init_params(kp, in_channel=1, kernel_size=7)
    fwd = jax.jit(functools.partial(cnnlayer_forward, params=params))

    def _check(batch):
        tar = jax.random.normal(jax.random.fold_in(kx, batch), (batch, 1, 256), jnp.float32)
        out = jax.block_until_ready(fwd(tar))
        assert out.shape == (batch, 512), out.shape
        assert bool(jnp.all(jnp.isfinite(out)))
        # Loose check vs. f32 reference (kernel uses bf16 MXU operands on layers 2-5).
        ref = _reference_forward(tar, params)
        err = float(jnp.max(jnp.abs(out - ref)))
        scale = float(jnp.max(jnp.abs(ref))) + 1e-6
        assert err <= 0.12 * scale + 2e-2, (err, scale)

    _check(2)   # bblk=1, grid=(2,)  (two parallel grid steps)
    _check(5)   # bblk=3, grid=(2,)  (exercises batch blocking + batch padding)
    print("KERNEL_OK")
</pallas_src>

<mosaic_0001>
module attributes {stable_mosaic.version = 11 : i64} {
  func.func @kernel(%arg0: i32, %arg1: memref<1x1x256xf32, #tpu.memory_space<vmem>>, %arg2: memref<7x4x1xf32, #tpu.memory_space<vmem>>, %arg3: memref<4x1xf32, #tpu.memory_space<vmem>>, %arg4: memref<4x1xf32, #tpu.memory_space<vmem>>, %arg5: memref<28x16xbf16, #tpu.memory_space<vmem>>, %arg6: memref<1x16xf32, #tpu.memory_space<vmem>>, %arg7: memref<1x16xf32, #tpu.memory_space<vmem>>, %arg8: memref<112x32xbf16, #tpu.memory_space<vmem>>, %arg9: memref<1x32xf32, #tpu.memory_space<vmem>>, %arg10: memref<1x32xf32, #tpu.memory_space<vmem>>, %arg11: memref<224x64xbf16, #tpu.memory_space<vmem>>, %arg12: memref<1x64xf32, #tpu.memory_space<vmem>>, %arg13: memref<1x64xf32, #tpu.memory_space<vmem>>, %arg14: memref<448x128xbf16, #tpu.memory_space<vmem>>, %arg15: memref<1x128xf32, #tpu.memory_space<vmem>>, %arg16: memref<1x128xf32, #tpu.memory_space<vmem>>, %arg17: memref<1x128x4xf32, #tpu.memory_space<vmem>>, %arg18: memref<1x1x258xf32, #tpu.memory_space<vmem>>, %arg19: memref<1x252x4xf32, #tpu.memory_space<vmem>>, %arg20: memref<1x136x4xf32, #tpu.memory_space<vmem>>, %arg21: memref<1x128x28xbf16, #tpu.memory_space<vmem>>, %arg22: memref<1x72x16xf32, #tpu.memory_space<vmem>>, %arg23: memref<1x64x112xbf16, #tpu.memory_space<vmem>>, %arg24: memref<1x40x32xf32, #tpu.memory_space<vmem>>, %arg25: memref<1x32x224xbf16, #tpu.memory_space<vmem>>, %arg26: memref<1x24x64xf32, #tpu.memory_space<vmem>>, %arg27: memref<1x16x448xbf16, #tpu.memory_space<vmem>>) attributes {dimension_semantics = [#tpu.dimension_semantics<parallel>], iteration_bounds = array<i64: 2>, scalar_prefetch = 0 : i64, scratch_operands = 10 : i64, tpu.core_type = #tpu.core_type<tc>, window_params = [{transform_indices = @transform_0, window_bounds = array<i64: 1, 1, 256>}, {pipeline_mode = #tpu.pipeline_mode<synchronous>, transform_indices = @transform_1, window_bounds = array<i64: 7, 4, 1>}, {pipeline_mode = #tpu.pipeline_mode<synchronous>, transform_indices = @transform_2, window_bounds = array<i64: 4, 1>}, {pipeline_mode = #tpu.pipeline_mode<synchronous>, transform_indices = @transform_3, window_bounds = array<i64: 4, 1>}, {pipeline_mode = #tpu.pipeline_mode<synchronous>, transform_indices = @transform_4, window_bounds = array<i64: 28, 16>}, {pipeline_mode = #tpu.pipeline_mode<synchronous>, transform_indices = @transform_5, window_bounds = array<i64: 1, 16>}, {pipeline_mode = #tpu.pipeline_mode<synchronous>, transform_indices = @transform_6, window_bounds = array<i64: 1, 16>}, {pipeline_mode = #tpu.pipeline_mode<synchronous>, transform_indices = @transform_7, window_bounds = array<i64: 112, 32>}, {pipeline_mode = #tpu.pipeline_mode<synchronous>, transform_indices = @transform_8, window_bounds = array<i64: 1, 32>}, {pipeline_mode = #tpu.pipeline_mode<synchronous>, transform_indices = @transform_9, window_bounds = array<i64: 1, 32>}, {pipeline_mode = #tpu.pipeline_mode<synchronous>, transform_indices = @transform_10, window_bounds = array<i64: 224, 64>}, {pipeline_mode = #tpu.pipeline_mode<synchronous>, transform_indices = @transform_11, window_bounds = array<i64: 1, 64>}, {pipeline_mode = #tpu.pipeline_mode<synchronous>, transform_indices = @transform_12, window_bounds = array<i64: 1, 64>}, {pipeline_mode = #tpu.pipeline_mode<synchronous>, transform_indices = @transform_13, window_bounds = array<i64: 448, 128>}, {pipeline_mode = #tpu.pipeline_mode<synchronous>, transform_indices = @transform_14, window_bounds = array<i64: 1, 128>}, {pipeline_mode = #tpu.pipeline_mode<synchronous>, transform_indices = @transform_15, window_bounds = array<i64: 1, 128>}, {transform_indices = @transform_16, window_bounds = array<i64: 1, 128, 4>}]} {
    %cst = arith.constant 0.000000e+00 : f32
    %0 = vector.broadcast %cst : f32 to vector<1x1x1xf32>
    %c0 = arith.constant 0 : index
    %c0_0 = arith.constant 0 : index
    %c0_1 = arith.constant 0 : index
    %1 = vector.load %arg18[%c0, %c0_0, %c0_1] : memref<1x1x258xf32, #tpu.memory_space<vmem>>, vector<1x1x1xf32>
    tpu.vector_store %arg18[%c0, %c0_0, %c0_1], %0 {strides = array<i32>} : memref<1x1x258xf32, #tpu.memory_space<vmem>>, vector<1x1x1xf32>,
    %cst_2 = arith.constant 0.000000e+00 : f32
    %2 = vector.broadcast %cst_2 : f32 to vector<1x1x1xf32>
    %c0_3 = arith.constant 0 : index
    %c0_4 = arith.constant 0 : index
    %c257 = arith.constant 257 : index
    %3 = vector.load %arg18[%c0_3, %c0_4, %c257] : memref<1x1x258xf32, #tpu.memory_space<vmem>>, vector<1x1x1xf32>
    tpu.vector_store %arg18[%c0_3, %c0_4, %c257], %2 {strides = array<i32>} : memref<1x1x258xf32, #tpu.memory_space<vmem>>, vector<1x1x1xf32>,
    %c0_5 = arith.constant 0 : index
    %c0_6 = arith.constant 0 : index
    %c0_7 = arith.constant 0 : index
    %4 = vector.load %arg1[%c0_5, %c0_6, %c0_7] : memref<1x1x256xf32, #tpu.memory_space<vmem>>, vector<1x1x256xf32>
    %c0_8 = arith.constant 0 : index
    %c0_9 = arith.constant 0 : index
    %c1 = arith.constant 1 : index
    %5 = vector.load %arg18[%c0_8, %c0_9, %c1] : memref<1x1x258xf32, #tpu.memory_space<vmem>>, vector<1x1x256xf32>
    tpu.vector_store %arg18[%c0_8, %c0_9, %c1], %4 {strides = array<i32>} : memref<1x1x258xf32, #tpu.memory_space<vmem>>, vector<1x1x256xf32>,
    %c0_10 = arith.constant 0 : index
    %c0_11 = arith.constant 0 : index
    %c0_12 = arith.constant 0 : index
    %6 = vector.load %arg18[%c0_10, %c0_11, %c0_12] : memref<1x1x258xf32, #tpu.memory_space<vmem>>, vector<1x1x252xf32>
    %c0_13 = arith.constant 0 : index
    %c0_14 = arith.constant 0 : index
    %c0_15 = arith.constant 0 : index
    %7 = vector.load %arg2[%c0_13, %c0_14, %c0_15] : memref<7x4x1xf32, #tpu.memory_space<vmem>>, vector<1x4x1xf32>
    %8 = vector.shape_cast %7 : vector<1x4x1xf32> to vector<4x1xf32>
    %9 = vector.shape_cast %8 : vector<4x1xf32> to vector<1x4x1xf32>
    %10 = vector.broadcast %6 : vector<1x1x252xf32> to vector<1x4x252xf32>
    %11 = vector.broadcast %9 : vector<1x4x1xf32> to vector<1x4x252xf32>
    %12 = arith.mulf %10, %11 : vector<1x4x252xf32>
    %c0_16 = arith.constant 0 : index
    %c0_17 = arith.constant 0 : index
    %c1_18 = arith.constant 1 : index
    %13 = vector.load %arg18[%c0_16, %c0_17, %c1_18] : memref<1x1x258xf32, #tpu.memory_space<vmem>>, vector<1x1x252xf32>
    %c1_19 = arith.constant 1 : index
    %c0_20 = arith.constant 0 : index
    %c0_21 = arith.constant 0 : index
    %14 = vector.load %arg2[%c1_19, %c0_20, %c0_21] : memref<7x4x1xf32, #tpu.memory_space<vmem>>, vector<1x4x1xf32>
    %15 = vector.shape_cast %14 : vector<1x4x1xf32> to vector<4x1xf32>
    %16 = vector.shape_cast %15 : vector<4x1xf32> to vector<1x4x1xf32>
    %17 = vector.broadcast %13 : vector<1x1x252xf32> to vector<1x4x252xf32>
    %18 = vector.broadcast %16 : vector<1x4x1xf32> to vector<1x4x252xf32>
    %19 = arith.mulf %17, %18 : vector<1x4x252xf32>
    %20 = arith.addf %12, %19 : vector<1x4x252xf32>
    %c0_22 = arith.constant 0 : index
    %c0_23 = arith.constant 0 : index
    %c2 = arith.constant 2 : index
    %21 = vector.load %arg18[%c0_22, %c0_23, %c2] : memref<1x1x258xf32, #tpu.memory_space<vmem>>, vector<1x1x252xf32>
    %c2_24 = arith.constant 2 : index
    %c0_25 = arith.constant 0 : index
    %c0_26 = arith.constant 0 : index
    %22 = vector.load %arg2[%c2_24, %c0_25, %c0_26] : memref<7x4x1xf32, #tpu.memory_space<vmem>>, vector<1x4x1xf32>
    %23 = vector.shape_cast %22 : vector<1x4x1xf32> to vector<4x1xf32>
    %24 = vector.shape_cast %23 : vector<4x1xf32> to vector<1x4x1xf32>
    %25 = vector.broadcast %21 : vector<1x1x252xf32> to vector<1x4x252xf32>
    %26 = vector.broadcast %24 : vector<1x4x1xf32> to vector<1x4x252xf32>
    %27 = arith.mulf %25, %26 : vector<1x4x252xf32>
    %28 = arith.addf %20, %27 : vector<1x4x252xf32>
    %c0_27 = arith.constant 0 : index
    %c0_28 = arith.constant 0 : index
    %c3 = arith.constant 3 : index
    %29 = vector.load %arg18[%c0_27, %c0_28, %c3] : memref<1x1x258xf32, #tpu.memory_space<vmem>>, vector<1x1x252xf32>
    %c3_29 = arith.constant 3 : index
    %c0_30 = arith.constant 0 : index
    %c0_31 = arith.constant 0 : index
    %30 = vector.load %arg2[%c3_29, %c0_30, %c0_31] : memref<7x4x1xf32, #tpu.memory_space<vmem>>, vector<1x4x1xf32>
    %31 = vector.shape_cast %30 : vector<1x4x1xf32> to vector<4x1xf32>
    %32 = vector.shape_cast %31 : vector<4x1xf32> to vector<1x4x1xf32>
    %33 = vector.broadcast %29 : vector<1x1x252xf32> to vector<1x4x252xf32>
    %34 = vector.broadcast %32 : vector<1x4x1xf32> to vector<1x4x252xf32>
    %35 = arith.mulf %33, %34 : vector<1x4x252xf32>
    %36 = arith.addf %28, %35 : vector<1x4x252xf32>
    %c0_32 = arith.constant 0 : index
    %c0_33 = arith.constant 0 : index
    %c4 = arith.constant 4 : index
    %37 = vector.load %arg18[%c0_32, %c0_33, %c4] : memref<1x1x258xf32, #tpu.memory_space<vmem>>, vector<1x1x252xf32>
    %c4_34 = arith.constant 4 : index
    %c0_35 = arith.constant 0 : index
    %c0_36 = arith.constant 0 : index
    %38 = vector.load %arg2[%c4_34, %c0_35, %c0_36] : memref<7x4x1xf32, #tpu.memory_space<vmem>>, vector<1x4x1xf32>
    %39 = vector.shape_cast %38 : vector<1x4x1xf32> to vector<4x1xf32>
    %40 = vector.shape_cast %39 : vector<4x1xf32> to vector<1x4x1xf32>
    %41 = vector.broadcast %37 : vector<1x1x252xf32> to vector<1x4x252xf32>
    %42 = vector.broadcast %40 : vector<1x4x1xf32> to vector<1x4x252xf32>
    %43 = arith.mulf %41, %42 : vector<1x4x252xf32>
    %44 = arith.addf %36, %43 : vector<1x4x252xf32>
    %c0_37 = arith.constant 0 : index
    %c0_38 = arith.constant 0 : index
    %c5 = arith.constant 5 : index
    %45 = vector.load %arg18[%c0_37, %c0_38, %c5] : memref<1x1x258xf32, #tpu.memory_space<vmem>>, vector<1x1x252xf32>
    %c5_39 = arith.constant 5 : index
    %c0_40 = arith.constant 0 : index
    %c0_41 = arith.constant 0 : index
    %46 = vector.load %arg2[%c5_39, %c0_40, %c0_41] : memref<7x4x1xf32, #tpu.memory_space<vmem>>, vector<1x4x1xf32>
    %47 = vector.shape_cast %46 : vector<1x4x1xf32> to vector<4x1xf32>
    %48 = vector.shape_cast %47 : vector<4x1xf32> to vector<1x4x1xf32>
    %49 = vector.broadcast %45 : vector<1x1x252xf32> to vector<1x4x252xf32>
    %50 = vector.broadcast %48 : vector<1x4x1xf32> to vector<1x4x252xf32>
    %51 = arith.mulf %49, %50 : vector<1x4x252xf32>
    %52 = arith.addf %44, %51 : vector<1x4x252xf32>
    %c0_42 = arith.constant 0 : index
    %c0_43 = arith.constant 0 : index
    %c6 = arith.constant 6 : index
    %53 = vector.load %arg18[%c0_42, %c0_43, %c6] : memref<1x1x258xf32, #tpu.memory_space<vmem>>, vector<1x1x252xf32>
    %c6_44 = arith.constant 6 : index
    %c0_45 = arith.constant 0 : index
    %c0_46 = arith.constant 0 : index
    %54 = vector.load %arg2[%c6_44, %c0_45, %c0_46] : memref<7x4x1xf32, #tpu.memory_space<vmem>>, vector<1x4x1xf32>
    %55 = vector.shape_cast %54 : vector<1x4x1xf32> to vector<4x1xf32>
    %56 = vector.shape_cast %55 : vector<4x1xf32> to vector<1x4x1xf32>
    %57 = vector.broadcast %53 : vector<1x1x252xf32> to vector<1x4x252xf32>
    %58 = vector.broadcast %56 : vector<1x4x1xf32> to vector<1x4x252xf32>
    %59 = arith.mulf %57, %58 : vector<1x4x252xf32>
    %60 = arith.addf %52, %59 : vector<1x4x252xf32>
    %c0_47 = arith.constant 0 : index
    %c0_48 = arith.constant 0 : index
    %61 = vector.load %arg3[%c0_47, %c0_48] : memref<4x1xf32, #tpu.memory_space<vmem>>, vector<4x1xf32>
    %62 = vector.shape_cast %61 : vector<4x1xf32> to vector<1x4x1xf32>
    %63 = vector.broadcast %62 : vector<1x4x1xf32> to vector<1x4x252xf32>
    %64 = arith.mulf %60, %63 : vector<1x4x252xf32>
    %c0_49 = arith.constant 0 : index
    %c0_50 = arith.constant 0 : index
    %65 = vector.load %arg4[%c0_49, %c0_50] : memref<4x1xf32, #tpu.memory_space<vmem>>, vector<4x1xf32>
    %66 = vector.shape_cast %65 : vector<4x1xf32> to vector<1x4x1xf32>
    %67 = vector.broadcast %66 : vector<1x4x1xf32> to vector<1x4x252xf32>
    %68 = arith.addf %64, %67 : vector<1x4x252xf32>
    %cst_51 = arith.constant 0.000000e+00 : f32
    %69 = vector.broadcast %cst_51 : f32 to vector<1x4x252xf32>
    %70 = arith.maximumf %68, %69 : vector<1x4x252xf32>
    %71 = tpu.transpose %70, [0, 2, 1] : vector<1x4x252xf32> -> vector<1x252x4xf32>
    %c0_52 = arith.constant 0 : index
    %c0_53 = arith.constant 0 : index
    %c0_54 = arith.constant 0 : index
    %72 = vector.load %arg19[%c0_52, %c0_53, %c0_54] : memref<1x252x4xf32, #tpu.memory_space<vmem>>, vector<1x252x4xf32>
    tpu.vector_store %arg19[%c0_52, %c0_53, %c0_54], %71 {strides = array<i32>} : memref<1x252x4xf32, #tpu.memory_space<vmem>>, vector<1x252x4xf32>,
    %c0_55 = arith.constant 0 : index
    %c0_56 = arith.constant 0 : index
    %c0_57 = arith.constant 0 : index
    %73 = tpu.strided_load %arg19[%c0_55, %c0_56, %c0_57] {strides = array<i32: 1, 2, 1>} : memref<1x252x4xf32, #tpu.memory_space<vmem>>, vector<1x126x4xf32>
    %c0_58 = arith.constant 0 : index
    %c1_59 = arith.constant 1 : index
    %c0_60 = arith.constant 0 : index
    %74 = tpu.strided_load %arg19[%c0_58, %c1_59, %c0_60] {strides = array<i32: 1, 2, 1>} : memref<1x252x4xf32, #tpu.memory_space<vmem>>, vector<1x126x4xf32>
    %75 = arith.maximumf %73, %74 : vector<1x126x4xf32>
    %c0_61 = arith.constant 0 : index
    %c8 = arith.constant 8 : index
    %c0_62 = arith.constant 0 : index
    %76 = vector.load %arg20[%c0_61, %c8, %c0_62] : memref<1x136x4xf32, #tpu.memory_space<vmem>>, vector<1x126x4xf32>
    tpu.vector_store %arg20[%c0_61, %c8, %c0_62], %75 {strides = array<i32>} : memref<1x136x4xf32, #tpu.memory_space<vmem>>, vector<1x126x4xf32>,
    %cst_63 = arith.constant 0.000000e+00 : f32
    %77 = vector.broadcast %cst_63 : f32 to vector<1x8x4xf32>
    %c0_64 = arith.constant 0 : index
    %c0_65 = arith.constant 0 : index
    %c0_66 = arith.constant 0 : index
    %78 = vector.load %arg20[%c0_64, %c0_65, %c0_66] : memref<1x136x4xf32, #tpu.memory_space<vmem>>, vector<1x8x4xf32>
    tpu.vector_store %arg20[%c0_64, %c0_65, %c0_66], %77 {strides = array<i32>} : memref<1x136x4xf32, #tpu.memory_space<vmem>>, vector<1x8x4xf32>,
    %cst_67 = arith.constant 0.000000e+00 : f32
    %79 = vector.broadcast %cst_67 : f32 to vector<1x2x4xf32>
    %c0_68 = arith.constant 0 : index
    %c134 = arith.constant 134 : index
    %c0_69 = arith.constant 0 : index
    %80 = vector.load %arg20[%c0_68, %c134, %c0_69] : memref<1x136x4xf32, #tpu.memory_space<vmem>>, vector<1x2x4xf32>
    tpu.vector_store %arg20[%c0_68, %c134, %c0_69], %79 {strides = array<i32>} : memref<1x136x4xf32, #tpu.memory_space<vmem>>, vector<1x2x4xf32>,
    %c0_70 = arith.constant 0 : index
    %c7 = arith.constant 7 : index
    %c0_71 = arith.constant 0 : index
    %81 = tpu.strided_load %arg20[%c0_70, %c7, %c0_71] {strides = array<i32: 1, 2, 1>} : memref<1x136x4xf32, #tpu.memory_space<vmem>>, vector<1x61x4xf32>
    %82 = arith.truncf %81 : vector<1x61x4xf32> to vector<1x61x4xbf16>
    %c0_72 = arith.constant 0 : index
    %c0_73 = arith.constant 0 : index
    %c0_74 = arith.constant 0 : index
    %83 = vector.load %arg21[%c0_72, %c0_73, %c0_74] : memref<1x128x28xbf16, #tpu.memory_space<vmem>>, vector<1x61x4xbf16>
    tpu.vector_store %arg21[%c0_72, %c0_73, %c0_74], %82 {strides = array<i32>} : memref<1x128x28xbf16, #tpu.memory_space<vmem>>, vector<1x61x4xbf16>,
    %c0_75 = arith.constant 0 : index
    %c8_76 = arith.constant 8 : index
    %c0_77 = arith.constant 0 : index
    %84 = tpu.strided_load %arg20[%c0_75, %c8_76, %c0_77] {strides = array<i32: 1, 2, 1>} : memref<1x136x4xf32, #tpu.memory_space<vmem>>, vector<1x61x4xf32>
    %85 = arith.truncf %84 : vector<1x61x4xf32> to vector<1x61x4xbf16>
    %c0_78 = arith.constant 0 : index
    %c64 = arith.constant 64 : index
    %c0_79 = arith.constant 0 : index
    %86 = vector.load %arg21[%c0_78, %c64, %c0_79] : memref<1x128x28xbf16, #tpu.memory_space<vmem>>, vector<1x61x4xbf16>
    tpu.vector_store %arg21[%c0_78, %c64, %c0_79], %85 {strides = array<i32>} : memref<1x128x28xbf16, #tpu.memory_space<vmem>>, vector<1x61x4xbf16>,
    %c0_80 = arith.constant 0 : index
    %c8_81 = arith.constant 8 : index
    %c0_82 = arith.constant 0 : index
    %87 = tpu.strided_load %arg20[%c0_80, %c8_81, %c0_82] {strides = array<i32: 1, 2, 1>} : memref<1x136x4xf32, #tpu.memory_space<vmem>>, vector<1x61x4xf32>
    %88 = arith.truncf %87 : vector<1x61x4xf32> to vector<1x61x4xbf16>
    %c0_83 = arith.constant 0 : index
    %c0_84 = arith.constant 0 : index
    %c4_85 = arith.constant 4 : index
    %89 = vector.load %arg21[%c0_83, %c0_84, %c4_85] : memref<1x128x28xbf16, #tpu.memory_space<vmem>>, vector<1x61x4xbf16>
    tpu.vector_store %arg21[%c0_83, %c0_84, %c4_85], %88 {strides = array<i32>} : memref<1x128x28xbf16, #tpu.memory_space<vmem>>, vector<1x61x4xbf16>,
    %c0_86 = arith.constant 0 : index
    %c9 = arith.constant 9 : index
    %c0_87 = arith.constant 0 : index
    %90 = tpu.strided_load %arg20[%c0_86, %c9, %c0_87] {strides = array<i32: 1, 2, 1>} : memref<1x136x4xf32, #tpu.memory_space<vmem>>, vector<1x61x4xf32>
    %91 = arith.truncf %90 : vector<1x61x4xf32> to vector<1x61x4xbf16>
    %c0_88 = arith.constant 0 : index
    %c64_89 = arith.constant 64 : index
    %c4_90 = arith.constant 4 : index
    %92 = vector.load %arg21[%c0_88, %c64_89, %c4_90] : memref<1x128x28xbf16, #tpu.memory_space<vmem>>, vector<1x61x4xbf16>
    tpu.vector_store %arg21[%c0_88, %c64_89, %c4_90], %91 {strides = array<i32>} : memref<1x128x28xbf16, #tpu.memory_space<vmem>>, vector<1x61x4xbf16>,
    %c0_91 = arith.constant 0 : index
    %c9_92 = arith.constant 9 : index
    %c0_93 = arith.constant 0 : index
    %93 = tpu.strided_load %arg20[%c0_91, %c9_92, %c0_93] {strides = array<i32: 1, 2, 1>} : memref<1x136x4xf32, #tpu.memory_space<vmem>>, vector<1x61x4xf32>
    %94 = arith.truncf %93 : vector<1x61x4xf32> to vector<1x61x4xbf16>
    %c0_94 = arith.constant 0 : index
    %c0_95 = arith.constant 0 : index
    %c8_96 = arith.constant 8 : index
    %95 = vector.load %arg21[%c0_94, %c0_95, %c8_96] : memref<1x128x28xbf16, #tpu.memory_space<vmem>>, vector<1x61x4xbf16>
    tpu.vector_store %arg21[%c0_94, %c0_95, %c8_96], %94 {strides = array<i32>} : memref<1x128x28xbf16, #tpu.memory_space<vmem>>, vector<1x61x4xbf16>,
    %c0_97 = arith.constant 0 : index
    %c10 = arith.constant 10 : index
    %c0_98 = arith.constant 0 : index
    %96 = tpu.strided_load %arg20[%c0_97, %c10, %c0_98] {strides = array<i32: 1, 2, 1>} : memref<1x136x4xf32, #tpu.memory_space<vmem>>, vector<1x61x4xf32>
    %97 = arith.truncf %96 : vector<1x61x4xf32> to vector<1x61x4xbf16>
    %c0_99 = arith.constant 0 : index
    %c64_100 = arith.constant 64 : index
    %c8_101 = arith.constant 8 : index
    %98 = vector.load %arg21[%c0_99, %c64_100, %c8_101] : memref<1x128x28xbf16, #tpu.memory_space<vmem>>, vector<1x61x4xbf16>
    tpu.vector_store %arg21[%c0_99, %c64_100, %c8_101], %97 {strides = array<i32>} : memref<1x128x28xbf16, #tpu.memory_space<vmem>>, vector<1x61x4xbf16>,
    %c0_102 = arith.constant 0 : index
    %c10_103 = arith.constant 10 : index
    %c0_104 = arith.constant 0 : index
    %99 = tpu.strided_load %arg20[%c0_102, %c10_103, %c0_104] {strides = array<i32: 1, 2, 1>} : memref<1x136x4xf32, #tpu.memory_space<vmem>>, vector<1x61x4xf32>
    %100 = arith.truncf %99 : vector<1x61x4xf32> to vector<1x61x4xbf16>
    %c0_105 = arith.constant 0 : index
    %c0_106 = arith.constant 0 : index
    %c12 = arith.constant 12 : index
    %101 = vector.load %arg21[%c0_105, %c0_106, %c12] : memref<1x128x28xbf16, #tpu.memory_space<vmem>>, vector<1x61x4xbf16>
    tpu.vector_store %arg21[%c0_105, %c0_106, %c12], %100 {strides = array<i32>} : memref<1x128x28xbf16, #tpu.memory_space<vmem>>, vector<1x61x4xbf16>,
    %c0_107 = arith.constant 0 : index
    %c11 = arith.constant 11 : index
    %c0_108 = arith.constant 0 : index
    %102 = tpu.strided_load %arg20[%c0_107, %c11, %c0_108] {strides = array<i32: 1, 2, 1>} : memref<1x136x4xf32, #tpu.memory_space<vmem>>, vector<1x61x4xf32>
    %103 = arith.truncf %102 : vector<1x61x4xf32> to vector<1x61x4xbf16>
    %c0_109 = arith.constant 0 : index
    %c64_110 = arith.constant 64 : index
    %c12_111 = arith.constant 12 : index
    %104 = vector.load %arg21[%c0_109, %c64_110, %c12_111] : memref<1x128x28xbf16, #tpu.memory_space<vmem>>, vector<1x61x4xbf16>
    tpu.vector_store %arg21[%c0_109, %c64_110, %c12_111], %103 {strides = array<i32>} : memref<1x128x28xbf16, #tpu.memory_space<vmem>>, vector<1x61x4xbf16>,
    %c0_112 = arith.constant 0 : index
    %c11_113 = arith.constant 11 : index
    %c0_114 = arith.constant 0 : index
    %105 = tpu.strided_load %arg20[%c0_112, %c11_113, %c0_114] {strides = array<i32: 1, 2, 1>} : memref<1x136x4xf32, #tpu.memory_space<vmem>>, vector<1x61x4xf32>
    %106 = arith.truncf %105 : vector<1x61x4xf32> to vector<1x61x4xbf16>
    %c0_115 = arith.constant 0 : index
    %c0_116 = arith.constant 0 : index
    %c16 = arith.constant 16 : index
    %107 = vector.load %arg21[%c0_115, %c0_116, %c16] : memref<1x128x28xbf16, #tpu.memory_space<vmem>>, vector<1x61x4xbf16>
    tpu.vector_store %arg21[%c0_115, %c0_116, %c16], %106 {strides = array<i32>} : memref<1x128x28xbf16, #tpu.memory_space<vmem>>, vector<1x61x4xbf16>,
    %c0_117 = arith.constant 0 : index
    %c12_118 = arith.constant 12 : index
    %c0_119 = arith.constant 0 : index
    %108 = tpu.strided_load %arg20[%c0_117, %c12_118, %c0_119] {strides = array<i32: 1, 2, 1>} : memref<1x136x4xf32, #tpu.memory_space<vmem>>, vector<1x61x4xf32>
    %109 = arith.truncf %108 : vector<1x61x4xf32> to vector<1x61x4xbf16>
    %c0_120 = arith.constant 0 : index
    %c64_121 = arith.constant 64 : index
    %c16_122 = arith.constant 16 : index
    %110 = vector.load %arg21[%c0_120, %c64_121, %c16_122] : memref<1x128x28xbf16, #tpu.memory_space<vmem>>, vector<1x61x4xbf16>
    tpu.vector_store %arg21[%c0_120, %c64_121, %c16_122], %109 {strides = array<i32>} : memref<1x128x28xbf16, #tpu.memory_space<vmem>>, vector<1x61x4xbf16>,
    %c0_123 = arith.constant 0 : index
    %c12_124 = arith.constant 12 : index
    %c0_125 = arith.constant 0 : index
    %111 = tpu.strided_load %arg20[%c0_123, %c12_124, %c0_125] {strides = array<i32: 1, 2, 1>} : memref<1x136x4xf32, #tpu.memory_space<vmem>>, vector<1x61x4xf32>
    %112 = arith.truncf %111 : vector<1x61x4xf32> to vector<1x61x4xbf16>
    %c0_126 = arith.constant 0 : index
    %c0_127 = arith.constant 0 : index
    %c20 = arith.constant 20 : index
    %113 = vector.load %arg21[%c0_126, %c0_127, %c20] : memref<1x128x28xbf16, #tpu.memory_space<vmem>>, vector<1x61x4xbf16>
    tpu.vector_store %arg21[%c0_126, %c0_127, %c20], %112 {strides = array<i32>} : memref<1x128x28xbf16, #tpu.memory_space<vmem>>, vector<1x61x4xbf16>,
    %c0_128 = arith.constant 0 : index
    %c13 = arith.constant 13 : index
    %c0_129 = arith.constant 0 : index
    %114 = tpu.strided_load %arg20[%c0_128, %c13, %c0_129] {strides = array<i32: 1, 2, 1>} : memref<1x136x4xf32, #tpu.memory_space<vmem>>, vector<1x61x4xf32>
    %115 = arith.truncf %114 : vector<1x61x4xf32> to vector<1x61x4xbf16>
    %c0_130 = arith.constant 0 : index
    %c64_131 = arith.constant 64 : index
    %c20_132 = arith.constant 20 : index
    %116 = vector.load %arg21[%c0_130, %c64_131, %c20_132] : memref<1x128x28xbf16, #tpu.memory_space<vmem>>, vector<1x61x4xbf16>
    tpu.vector_store %arg21[%c0_130, %c64_131, %c20_132], %115 {strides = array<i32>} : memref<1x128x28xbf16, #tpu.memory_space<vmem>>, vector<1x61x4xbf16>,
    %c0_133 = arith.constant 0 : index
    %c13_134 = arith.constant 13 : index
    %c0_135 = arith.constant 0 : index
    %117 = tpu.strided_load %arg20[%c0_133, %c13_134, %c0_135] {strides = array<i32: 1, 2, 1>} : memref<1x136x4xf32, #tpu.memory_space<vmem>>, vector<1x61x4xf32>
    %118 = arith.truncf %117 : vector<1x61x4xf32> to vector<1x61x4xbf16>
    %c0_136 = arith.constant 0 : index
    %c0_137 = arith.constant 0 : index
    %c24 = arith.constant 24 : index
    %119 = vector.load %arg21[%c0_136, %c0_137, %c24] : memref<1x128x28xbf16, #tpu.memory_space<vmem>>, vector<1x61x4xbf16>
    tpu.vector_store %arg21[%c0_136, %c0_137, %c24], %118 {strides = array<i32>} : memref<1x128x28xbf16, #tpu.memory_space<vmem>>, vector<1x61x4xbf16>,
    %c0_138 = arith.constant 0 : index
    %c14 = arith.constant 14 : index
    %c0_139 = arith.constant 0 : index
    %120 = tpu.strided_load %arg20[%c0_138, %c14, %c0_139] {strides = array<i32: 1, 2, 1>} : memref<1x136x4xf32, #tpu.memory_space<vmem>>, vector<1x61x4xf32>
    %121 = arith.truncf %120 : vector<1x61x4xf32> to vector<1x61x4xbf16>
    %c0_140 = arith.constant 0 : index
    %c64_141 = arith.constant 64 : index
    %c24_142 = arith.constant 24 : index
    %122 = vector.load %arg21[%c0_140, %c64_141, %c24_142] : memref<1x128x28xbf16, #tpu.memory_space<vmem>>, vector<1x61x4xbf16>
    tpu.vector_store %arg21[%c0_140, %c64_141, %c24_142], %121 {strides = array<i32>} : memref<1x128x28xbf16, #tpu.memory_space<vmem>>, vector<1x61x4xbf16>,
    %c0_143 = arith.constant 0 : index
    %c0_144 = arith.constant 0 : index
    %c0_145 = arith.constant 0 : index
    %123 = vector.load %arg21[%c0_143, %c0_144, %c0_145] : memref<1x128x28xbf16, #tpu.memory_space<vmem>>, vector<1x128x28xbf16>
    %124 = vector.shape_cast %123 : vector<1x128x28xbf16> to vector<128x28xbf16>
    %c0_146 = arith.constant 0 : index
    %c0_147 = arith.constant 0 : index
    %125 = vector.load %arg5[%c0_146, %c0_147] : memref<28x16xbf16, #tpu.memory_space<vmem>>, vector<28x16xbf16>
    %cst_148 = arith.constant dense<0.000000e+00> : vector<128x16xf32>
    %126 = tpu.matmul %124, %125, %cst_148 {dimension_numbers = #tpu.dot_dimension_numbers<[1], [0], [0], [1], [0, 0, 1, 1], [], []>} : vector<128x28xbf16>, vector<28x16xbf16>, vector<128x16xf32> -> vector<128x16xf32>
    %c0_149 = arith.constant 0 : index
    %c0_150 = arith.constant 0 : index
    %127 = vector.load %arg6[%c0_149, %c0_150] : memref<1x16xf32, #tpu.memory_space<vmem>>, vector<1x16xf32>
    %128 = vector.broadcast %127 : vector<1x16xf32> to vector<128x16xf32>
    %129 = arith.mulf %126, %128 : vector<128x16xf32>
    %c0_151 = arith.constant 0 : index
    %c0_152 = arith.constant 0 : index
    %130 = vector.load %arg7[%c0_151, %c0_152] : memref<1x16xf32, #tpu.memory_space<vmem>>, vector<1x16xf32>
    %131 = vector.broadcast %130 : vector<1x16xf32> to vector<128x16xf32>
    %132 = arith.addf %129, %131 : vector<128x16xf32>
    %cst_153 = arith.constant 0.000000e+00 : f32
    %133 = vector.broadcast %cst_153 : f32 to vector<128x16xf32>
    %134 = arith.maximumf %132, %133 : vector<128x16xf32>
    %135 = vector.shape_cast %134 : vector<128x16xf32> to vector<1x128x16xf32>
    %136 = vector.extract_strided_slice %135 {offsets = [0, 0, 0], sizes = [1, 61, 16], strides = [1, 1, 1]} : vector<1x128x16xf32> to vector<1x61x16xf32>
    %137 = vector.extract_strided_slice %135 {offsets = [0, 64, 0], sizes = [1, 61, 16], strides = [1, 1, 1]} : vector<1x128x16xf32> to vector<1x61x16xf32>
    %138 = arith.maximumf %136, %137 : vector<1x61x16xf32>
    %c0_154 = arith.constant 0 : index
    %c8_155 = arith.constant 8 : index
    %c0_156 = arith.constant 0 : index
    %139 = vector.load %arg22[%c0_154, %c8_155, %c0_156] : memref<1x72x16xf32, #tpu.memory_space<vmem>>, vector<1x61x16xf32>
    tpu.vector_store %arg22[%c0_154, %c8_155, %c0_156], %138 {strides = array<i32>} : memref<1x72x16xf32, #tpu.memory_space<vmem>>, vector<1x61x16xf32>,
    %cst_157 = arith.constant 0.000000e+00 : f32
    %140 = vector.broadcast %cst_157 : f32 to vector<1x8x16xf32>
    %c0_158 = arith.constant 0 : index
    %c0_159 = arith.constant 0 : index
    %c0_160 = arith.constant 0 : index
    %141 = vector.load %arg22[%c0_158, %c0_159, %c0_160] : memref<1x72x16xf32, #tpu.memory_space<vmem>>, vector<1x8x16xf32>
    tpu.vector_store %arg22[%c0_158, %c0_159, %c0_160], %140 {strides = array<i32>} : memref<1x72x16xf32, #tpu.memory_space<vmem>>, vector<1x8x16xf32>,
    %cst_161 = arith.constant 0.000000e+00 : f32
    %142 = vector.broadcast %cst_161 : f32 to vector<1x3x16xf32>
    %c0_162 = arith.constant 0 : index
    %c69 = arith.constant 69 : index
    %c0_163 = arith.constant 0 : index
    %143 = vector.load %arg22[%c0_162, %c69, %c0_163] : memref<1x72x16xf32, #tpu.memory_space<vmem>>, vector<1x3x16xf32>
    tpu.vector_store %arg22[%c0_162, %c69, %c0_163], %142 {strides = array<i32>} : memref<1x72x16xf32, #tpu.memory_space<vmem>>, vector<1x3x16xf32>,
    %c0_164 = arith.constant 0 : index
    %c7_165 = arith.constant 7 : index
    %c0_166 = arith.constant 0 : index
    %144 = tpu.strided_load %arg22[%c0_164, %c7_165, %c0_166] {strides = array<i32: 1, 2, 1>} : memref<1x72x16xf32, #tpu.memory_space<vmem>>, vector<1x28x16xf32>
    %145 = arith.truncf %144 : vector<1x28x16xf32> to vector<1x28x16xbf16>
    %c0_167 = arith.constant 0 : index
    %c0_168 = arith.constant 0 : index
    %c0_169 = arith.constant 0 : index
    %146 = vector.load %arg23[%c0_167, %c0_168, %c0_169] : memref<1x64x112xbf16, #tpu.memory_space<vmem>>, vector<1x28x16xbf16>
    tpu.vector_store %arg23[%c0_167, %c0_168, %c0_169], %145 {strides = array<i32>} : memref<1x64x112xbf16, #tpu.memory_space<vmem>>, vector<1x28x16xbf16>,
    %c0_170 = arith.constant 0 : index
    %c8_171 = arith.constant 8 : index
    %c0_172 = arith.constant 0 : index
    %147 = tpu.strided_load %arg22[%c0_170, %c8_171, %c0_172] {strides = array<i32: 1, 2, 1>} : memref<1x72x16xf32, #tpu.memory_space<vmem>>, vector<1x28x16xf32>
    %148 = arith.truncf %147 : vector<1x28x16xf32> to vector<1x28x16xbf16>
    %c0_173 = arith.constant 0 : index
    %c32 = arith.constant 32 : index
    %c0_174 = arith.constant 0 : index
    %149 = vector.load %arg23[%c0_173, %c32, %c0_174] : memref<1x64x112xbf16, #tpu.memory_space<vmem>>, vector<1x28x16xbf16>
    tpu.vector_store %arg23[%c0_173, %c32, %c0_174], %148 {strides = array<i32>} : memref<1x64x112xbf16, #tpu.memory_space<vmem>>, vector<1x28x16xbf16>,
    %c0_175 = arith.constant 0 : index
    %c8_176 = arith.constant 8 : index
    %c0_177 = arith.constant 0 : index
    %150 = tpu.strided_load %arg22[%c0_175, %c8_176, %c0_177] {strides = array<i32: 1, 2, 1>} : memref<1x72x16xf32, #tpu.memory_space<vmem>>, vector<1x28x16xf32>
    %151 = arith.truncf %150 : vector<1x28x16xf32> to vector<1x28x16xbf16>
    %c0_178 = arith.constant 0 : index
    %c0_179 = arith.constant 0 : index
    %c16_180 = arith.constant 16 : index
    %152 = vector.load %arg23[%c0_178, %c0_179, %c16_180] : memref<1x64x112xbf16, #tpu.memory_space<vmem>>, vector<1x28x16xbf16>
    tpu.vector_store %arg23[%c0_178, %c0_179, %c16_180], %151 {strides = array<i32>} : memref<1x64x112xbf16, #tpu.memory_space<vmem>>, vector<1x28x16xbf16>,
    %c0_181 = arith.constant 0 : index
    %c9_182 = arith.constant 9 : index
    %c0_183 = arith.constant 0 : index
    %153 = tpu.strided_load %arg22[%c0_181, %c9_182, %c0_183] {strides = array<i32: 1, 2, 1>} : memref<1x72x16xf32, #tpu.memory_space<vmem>>, vector<1x28x16xf32>
    %154 = arith.truncf %153 : vector<1x28x16xf32> to vector<1x28x16xbf16>
    %c0_184 = arith.constant 0 : index
    %c32_185 = arith.constant 32 : index
    %c16_186 = arith.constant 16 : index
    %155 = vector.load %arg23[%c0_184, %c32_185, %c16_186] : memref<1x64x112xbf16, #tpu.memory_space<vmem>>, vector<1x28x16xbf16>
    tpu.vector_store %arg23[%c0_184, %c32_185, %c16_186], %154 {strides = array<i32>} : memref<1x64x112xbf16, #tpu.memory_space<vmem>>, vector<1x28x16xbf16>,
    %c0_187 = arith.constant 0 : index
    %c9_188 = arith.constant 9 : index
    %c0_189 = arith.constant 0 : index
    %156 = tpu.strided_load %arg22[%c0_187, %c9_188, %c0_189] {strides = array<i32: 1, 2, 1>} : memref<1x72x16xf32, #tpu.memory_space<vmem>>, vector<1x28x16xf32>
    %157 = arith.truncf %156 : vector<1x28x16xf32> to vector<1x28x16xbf16>
    %c0_190 = arith.constant 0 : index
    %c0_191 = arith.constant 0 : index
    %c32_192 = arith.constant 32 : index
    %158 = vector.load %arg23[%c0_190, %c0_191, %c32_192] : memref<1x64x112xbf16, #tpu.memory_space<vmem>>, vector<1x28x16xbf16>
    tpu.vector_store %arg23[%c0_190, %c0_191, %c32_192], %157 {strides = array<i32>} : memref<1x64x112xbf16, #tpu.memory_space<vmem>>, vector<1x28x16xbf16>,
    %c0_193 = arith.constant 0 : index
    %c10_194 = arith.constant 10 : index
    %c0_195 = arith.constant 0 : index
    %159 = tpu.strided_load %arg22[%c0_193, %c10_194, %c0_195] {strides = array<i32: 1, 2, 1>} : memref<1x72x16xf32, #tpu.memory_space<vmem>>, vector<1x28x16xf32>
    %160 = arith.truncf %159 : vector<1x28x16xf32> to vector<1x28x16xbf16>
    %c0_196 = arith.constant 0 : index
    %c32_197 = arith.constant 32 : index
    %c32_198 = arith.constant 32 : index
    %161 = vector.load %arg23[%c0_196, %c32_197, %c32_198] : memref<1x64x112xbf16, #tpu.memory_space<vmem>>, vector<1x28x16xbf16>
    tpu.vector_store %arg23[%c0_196, %c32_197, %c32_198], %160 {strides = array<i32>} : memref<1x64x112xbf16, #tpu.memory_space<vmem>>, vector<1x28x16xbf16>,
    %c0_199 = arith.constant 0 : index
    %c10_200 = arith.constant 10 : index
    %c0_201 = arith.constant 0 : index
    %162 = tpu.strided_load %arg22[%c0_199, %c10_200, %c0_201] {strides = array<i32: 1, 2, 1>} : memref<1x72x16xf32, #tpu.memory_space<vmem>>, vector<1x28x16xf32>
    %163 = arith.truncf %162 : vector<1x28x16xf32> to vector<1x28x16xbf16>
    %c0_202 = arith.constant 0 : index
    %c0_203 = arith.constant 0 : index
    %c48 = arith.constant 48 : index
    %164 = vector.load %arg23[%c0_202, %c0_203, %c48] : memref<1x64x112xbf16, #tpu.memory_space<vmem>>, vector<1x28x16xbf16>
    tpu.vector_store %arg23[%c0_202, %c0_203, %c48], %163 {strides = array<i32>} : memref<1x64x112xbf16, #tpu.memory_space<vmem>>, vector<1x28x16xbf16>,
    %c0_204 = arith.constant 0 : index
    %c11_205 = arith.constant 11 : index
    %c0_206 = arith.constant 0 : index
    %165 = tpu.strided_load %arg22[%c0_204, %c11_205, %c0_206] {strides = array<i32: 1, 2, 1>} : memref<1x72x16xf32, #tpu.memory_space<vmem>>, vector<1x28x16xf32>
    %166 = arith.truncf %165 : vector<1x28x16xf32> to vector<1x28x16xbf16>
    %c0_207 = arith.constant 0 : index
    %c32_208 = arith.constant 32 : index
    %c48_209 = arith.constant 48 : index
    %167 = vector.load %arg23[%c0_207, %c32_208, %c48_209] : memref<1x64x112xbf16, #tpu.memory_space<vmem>>, vector<1x28x16xbf16>
    tpu.vector_store %arg23[%c0_207, %c32_208, %c48_209], %166 {strides = array<i32>} : memref<1x64x112xbf16, #tpu.memory_space<vmem>>, vector<1x28x16xbf16>,
    %c0_210 = arith.constant 0 : index
    %c11_211 = arith.constant 11 : index
    %c0_212 = arith.constant 0 : index
    %168 = tpu.strided_load %arg22[%c0_210, %c11_211, %c0_212] {strides = array<i32: 1, 2, 1>} : memref<1x72x16xf32, #tpu.memory_space<vmem>>, vector<1x28x16xf32>
    %169 = arith.truncf %168 : vector<1x28x16xf32> to vector<1x28x16xbf16>
    %c0_213 = arith.constant 0 : index
    %c0_214 = arith.constant 0 : index
    %c64_215 = arith.constant 64 : index
    %170 = vector.load %arg23[%c0_213, %c0_214, %c64_215] : memref<1x64x112xbf16, #tpu.memory_space<vmem>>, vector<1x28x16xbf16>
    tpu.vector_store %arg23[%c0_213, %c0_214, %c64_215], %169 {strides = array<i32>} : memref<1x64x112xbf16, #tpu.memory_space<vmem>>, vector<1x28x16xbf16>,
    %c0_216 = arith.constant 0 : index
    %c12_217 = arith.constant 12 : index
    %c0_218 = arith.constant 0 : index
    %171 = tpu.strided_load %arg22[%c0_216, %c12_217, %c0_218] {strides = array<i32: 1, 2, 1>} : memref<1x72x16xf32, #tpu.memory_space<vmem>>, vector<1x28x16xf32>
    %172 = arith.truncf %171 : vector<1x28x16xf32> to vector<1x28x16xbf16>
    %c0_219 = arith.constant 0 : index
    %c32_220 = arith.constant 32 : index
    %c64_221 = arith.constant 64 : index
    %173 = vector.load %arg23[%c0_219, %c32_220, %c64_221] : memref<1x64x112xbf16, #tpu.memory_space<vmem>>, vector<1x28x16xbf16>
    tpu.vector_store %arg23[%c0_219, %c32_220, %c64_221], %172 {strides = array<i32>} : memref<1x64x112xbf16, #tpu.memory_space<vmem>>, vector<1x28x16xbf16>,
    %c0_222 = arith.constant 0 : index
    %c12_223 = arith.constant 12 : index
    %c0_224 = arith.constant 0 : index
    %174 = tpu.strided_load %arg22[%c0_222, %c12_223, %c0_224] {strides = array<i32: 1, 2, 1>} : memref<1x72x16xf32, #tpu.memory_space<vmem>>, vector<1x28x16xf32>
    %175 = arith.truncf %174 : vector<1x28x16xf32> to vector<1x28x16xbf16>
    %c0_225 = arith.constant 0 : index
    %c0_226 = arith.constant 0 : index
    %c80 = arith.constant 80 : index
    %176 = vector.load %arg23[%c0_225, %c0_226, %c80] : memref<1x64x112xbf16, #tpu.memory_space<vmem>>, vector<1x28x16xbf16>
    tpu.vector_store %arg23[%c0_225, %c0_226, %c80], %175 {strides = array<i32>} : memref<1x64x112xbf16, #tpu.memory_space<vmem>>, vector<1x28x16xbf16>,
    %c0_227 = arith.constant 0 : index
    %c13_228 = arith.constant 13 : index
    %c0_229 = arith.constant 0 : index
    %177 = tpu.strided_load %arg22[%c0_227, %c13_228, %c0_229] {strides = array<i32: 1, 2, 1>} : memref<1x72x16xf32, #tpu.memory_space<vmem>>, vector<1x28x16xf32>
    %178 = arith.truncf %177 : vector<1x28x16xf32> to vector<1x28x16xbf16>
    %c0_230 = arith.constant 0 : index
    %c32_231 = arith.constant 32 : index
    %c80_232 = arith.constant 80 : index
    %179 = vector.load %arg23[%c0_230, %c32_231, %c80_232] : memref<1x64x112xbf16, #tpu.memory_space<vmem>>, vector<1x28x16xbf16>
    tpu.vector_store %arg23[%c0_230, %c32_231, %c80_232], %178 {strides = array<i32>} : memref<1x64x112xbf16, #tpu.memory_space<vmem>>, vector<1x28x16xbf16>,
    %c0_233 = arith.constant 0 : index
    %c13_234 = arith.constant 13 : index
    %c0_235 = arith.constant 0 : index
    %180 = tpu.strided_load %arg22[%c0_233, %c13_234, %c0_235] {strides = array<i32: 1, 2, 1>} : memref<1x72x16xf32, #tpu.memory_space<vmem>>, vector<1x28x16xf32>
    %181 = arith.truncf %180 : vector<1x28x16xf32> to vector<1x28x16xbf16>
    %c0_236 = arith.constant 0 : index
    %c0_237 = arith.constant 0 : index
    %c96 = arith.constant 96 : index
    %182 = vector.load %arg23[%c0_236, %c0_237, %c96] : memref<1x64x112xbf16, #tpu.memory_space<vmem>>, vector<1x28x16xbf16>
    tpu.vector_store %arg23[%c0_236, %c0_237, %c96], %181 {strides = array<i32>} : memref<1x64x112xbf16, #tpu.memory_space<vmem>>, vector<1x28x16xbf16>,
    %c0_238 = arith.constant 0 : index
    %c14_239 = arith.constant 14 : index
    %c0_240 = arith.constant 0 : index
    %183 = tpu.strided_load %arg22[%c0_238, %c14_239, %c0_240] {strides = array<i32: 1, 2, 1>} : memref<1x72x16xf32, #tpu.memory_space<vmem>>, vector<1x28x16xf32>
    %184 = arith.truncf %183 : vector<1x28x16xf32> to vector<1x28x16xbf16>
    %c0_241 = arith.constant 0 : index
    %c32_242 = arith.constant 32 : index
    %c96_243 = arith.constant 96 : index
    %185 = vector.load %arg23[%c0_241, %c32_242, %c96_243] : memref<1x64x112xbf16, #tpu.memory_space<vmem>>, vector<1x28x16xbf16>
    tpu.vector_store %arg23[%c0_241, %c32_242, %c96_243], %184 {strides = array<i32>} : memref<1x64x112xbf16, #tpu.memory_space<vmem>>, vector<1x28x16xbf16>,
    %c0_244 = arith.constant 0 : index
    %c0_245 = arith.constant 0 : index
    %c0_246 = arith.constant 0 : index
    %186 = vector.load %arg23[%c0_244, %c0_245, %c0_246] : memref<1x64x112xbf16, #tpu.memory_space<vmem>>, vector<1x64x112xbf16>
    %187 = vector.shape_cast %186 : vector<1x64x112xbf16> to vector<64x112xbf16>
    %c0_247 = arith.constant 0 : index
    %c0_248 = arith.constant 0 : index
    %188 = vector.load %arg8[%c0_247, %c0_248] : memref<112x32xbf16, #tpu.memory_space<vmem>>, vector<112x32xbf16>
    %cst_249 = arith.constant dense<0.000000e+00> : vector<64x32xf32>
    %189 = tpu.matmul %187, %188, %cst_249 {dimension_numbers = #tpu.dot_dimension_numbers<[1], [0], [0], [1], [0, 0, 1, 1], [], []>} : vector<64x112xbf16>, vector<112x32xbf16>, vector<64x32xf32> -> vector<64x32xf32>
    %c0_250 = arith.constant 0 : index
    %c0_251 = arith.constant 0 : index
    %190 = vector.load %arg9[%c0_250, %c0_251] : memref<1x32xf32, #tpu.memory_space<vmem>>, vector<1x32xf32>
    %191 = vector.broadcast %190 : vector<1x32xf32> to vector<64x32xf32>
    %192 = arith.mulf %189, %191 : vector<64x32xf32>
    %c0_252 = arith.constant 0 : index
    %c0_253 = arith.constant 0 : index
    %193 = vector.load %arg10[%c0_252, %c0_253] : memref<1x32xf32, #tpu.memory_space<vmem>>, vector<1x32xf32>
    %194 = vector.broadcast %193 : vector<1x32xf32> to vector<64x32xf32>
    %195 = arith.addf %192, %194 : vector<64x32xf32>
    %cst_254 = arith.constant 0.000000e+00 : f32
    %196 = vector.broadcast %cst_254 : f32 to vector<64x32xf32>
    %197 = arith.maximumf %195, %196 : vector<64x32xf32>
    %198 = vector.shape_cast %197 : vector<64x32xf32> to vector<1x64x32xf32>
    %199 = vector.extract_strided_slice %198 {offsets = [0, 0, 0], sizes = [1, 28, 32], strides = [1, 1, 1]} : vector<1x64x32xf32> to vector<1x28x32xf32>
    %200 = vector.extract_strided_slice %198 {offsets = [0, 32, 0], sizes = [1, 28, 32], strides = [1, 1, 1]} : vector<1x64x32xf32> to vector<1x28x32xf32>
    %201 = arith.maximumf %199, %200 : vector<1x28x32xf32>
    %c0_255 = arith.constant 0 : index
    %c8_256 = arith.constant 8 : index
    %c0_257 = arith.constant 0 : index
    %202 = vector.load %arg24[%c0_255, %c8_256, %c0_257] : memref<1x40x32xf32, #tpu.memory_space<vmem>>, vector<1x28x32xf32>
    tpu.vector_store %arg24[%c0_255, %c8_256, %c0_257], %201 {strides = array<i32>} : memref<1x40x32xf32, #tpu.memory_space<vmem>>, vector<1x28x32xf32>,
    %cst_258 = arith.constant 0.000000e+00 : f32
    %203 = vector.broadcast %cst_258 : f32 to vector<1x8x32xf32>
    %c0_259 = arith.constant 0 : index
    %c0_260 = arith.constant 0 : index
    %c0_261 = arith.constant 0 : index
    %204 = vector.load %arg24[%c0_259, %c0_260, %c0_261] : memref<1x40x32xf32, #tpu.memory_space<vmem>>, vector<1x8x32xf32>
    tpu.vector_store %arg24[%c0_259, %c0_260, %c0_261], %203 {strides = array<i32>} : memref<1x40x32xf32, #tpu.memory_space<vmem>>, vector<1x8x32xf32>,
    %cst_262 = arith.constant 0.000000e+00 : f32
    %205 = vector.broadcast %cst_262 : f32 to vector<1x4x32xf32>
    %c0_263 = arith.constant 0 : index
    %c36 = arith.constant 36 : index
    %c0_264 = arith.constant 0 : index
    %206 = vector.load %arg24[%c0_263, %c36, %c0_264] : memref<1x40x32xf32, #tpu.memory_space<vmem>>, vector<1x4x32xf32>
    tpu.vector_store %arg24[%c0_263, %c36, %c0_264], %205 {strides = array<i32>} : memref<1x40x32xf32, #tpu.memory_space<vmem>>, vector<1x4x32xf32>,
    %c0_265 = arith.constant 0 : index
    %c7_266 = arith.constant 7 : index
    %c0_267 = arith.constant 0 : index
    %207 = tpu.strided_load %arg24[%c0_265, %c7_266, %c0_267] {strides = array<i32: 1, 2, 1>} : memref<1x40x32xf32, #tpu.memory_space<vmem>>, vector<1x12x32xf32>
    %208 = arith.truncf %207 : vector<1x12x32xf32> to vector<1x12x32xbf16>
    %c0_268 = arith.constant 0 : index
    %c0_269 = arith.constant 0 : index
    %c0_270 = arith.constant 0 : index
    %209 = vector.load %arg25[%c0_268, %c0_269, %c0_270] : memref<1x32x224xbf16, #tpu.memory_space<vmem>>, vector<1x12x32xbf16>
    tpu.vector_store %arg25[%c0_268, %c0_269, %c0_270], %208 {strides = array<i32>} : memref<1x32x224xbf16, #tpu.memory_space<vmem>>, vector<1x12x32xbf16>,
    %c0_271 = arith.constant 0 : index
    %c8_272 = arith.constant 8 : index
    %c0_273 = arith.constant 0 : index
    %210 = tpu.strided_load %arg24[%c0_271, %c8_272, %c0_273] {strides = array<i32: 1, 2, 1>} : memref<1x40x32xf32, #tpu.memory_space<vmem>>, vector<1x12x32xf32>
    %211 = arith.truncf %210 : vector<1x12x32xf32> to vector<1x12x32xbf16>
    %c0_274 = arith.constant 0 : index
    %c16_275 = arith.constant 16 : index
    %c0_276 = arith.constant 0 : index
    %212 = vector.load %arg25[%c0_274, %c16_275, %c0_276] : memref<1x32x224xbf16, #tpu.memory_space<vmem>>, vector<1x12x32xbf16>
    tpu.vector_store %arg25[%c0_274, %c16_275, %c0_276], %211 {strides = array<i32>} : memref<1x32x224xbf16, #tpu.memory_space<vmem>>, vector<1x12x32xbf16>,
    %c0_277 = arith.constant 0 : index
    %c8_278 = arith.constant 8 : index
    %c0_279 = arith.constant 0 : index
    %213 = tpu.strided_load %arg24[%c0_277, %c8_278, %c0_279] {strides = array<i32: 1, 2, 1>} : memref<1x40x32xf32, #tpu.memory_space<vmem>>, vector<1x12x32xf32>
    %214 = arith.truncf %213 : vector<1x12x32xf32> to vector<1x12x32xbf16>
    %c0_280 = arith.constant 0 : index
    %c0_281 = arith.constant 0 : index
    %c32_282 = arith.constant 32 : index
    %215 = vector.load %arg25[%c0_280, %c0_281, %c32_282] : memref<1x32x224xbf16, #tpu.memory_space<vmem>>, vector<1x12x32xbf16>
    tpu.vector_store %arg25[%c0_280, %c0_281, %c32_282], %214 {strides = array<i32>} : memref<1x32x224xbf16, #tpu.memory_space<vmem>>, vector<1x12x32xbf16>,
    %c0_283 = arith.constant 0 : index
    %c9_284 = arith.constant 9 : index
    %c0_285 = arith.constant 0 : index
    %216 = tpu.strided_load %arg24[%c0_283, %c9_284, %c0_285] {strides = array<i32: 1, 2, 1>} : memref<1x40x32xf32, #tpu.memory_space<vmem>>, vector<1x12x32xf32>
    %217 = arith.truncf %216 : vector<1x12x32xf32> to vector<1x12x32xbf16>
    %c0_286 = arith.constant 0 : index
    %c16_287 = arith.constant 16 : index
    %c32_288 = arith.constant 32 : index
    %218 = vector.load %arg25[%c0_286, %c16_287, %c32_288] : memref<1x32x224xbf16, #tpu.memory_space<vmem>>, vector<1x12x32xbf16>
    tpu.vector_store %arg25[%c0_286, %c16_287, %c32_288], %217 {strides = array<i32>} : memref<1x32x224xbf16, #tpu.memory_space<vmem>>, vector<1x12x32xbf16>,
    %c0_289 = arith.constant 0 : index
    %c9_290 = arith.constant 9 : index
    %c0_291 = arith.constant 0 : index
    %219 = tpu.strided_load %arg24[%c0_289, %c9_290, %c0_291] {strides = array<i32: 1, 2, 1>} : memref<1x40x32xf32, #tpu.memory_space<vmem>>, vector<1x12x32xf32>
    %220 = arith.truncf %219 : vector<1x12x32xf32> to vector<1x12x32xbf16>
    %c0_292 = arith.constant 0 : index
    %c0_293 = arith.constant 0 : index
    %c64_294 = arith.constant 64 : index
    %221 = vector.load %arg25[%c0_292, %c0_293, %c64_294] : memref<1x32x224xbf16, #tpu.memory_space<vmem>>, vector<1x12x32xbf16>
    tpu.vector_store %arg25[%c0_292, %c0_293, %c64_294], %220 {strides = array<i32>} : memref<1x32x224xbf16, #tpu.memory_space<vmem>>, vector<1x12x32xbf16>,
    %c0_295 = arith.constant 0 : index
    %c10_296 = arith.constant 10 : index
    %c0_297 = arith.constant 0 : index
    %222 = tpu.strided_load %arg24[%c0_295, %c10_296, %c0_297] {strides = array<i32: 1, 2, 1>} : memref<1x40x32xf32, #tpu.memory_space<vmem>>, vector<1x12x32xf32>
    %223 = arith.truncf %222 : vector<1x12x32xf32> to vector<1x12x32xbf16>
    %c0_298 = arith.constant 0 : index
    %c16_299 = arith.constant 16 : index
    %c64_300 = arith.constant 64 : index
    %224 = vector.load %arg25[%c0_298, %c16_299, %c64_300] : memref<1x32x224xbf16, #tpu.memory_space<vmem>>, vector<1x12x32xbf16>
    tpu.vector_store %arg25[%c0_298, %c16_299, %c64_300], %223 {strides = array<i32>} : memref<1x32x224xbf16, #tpu.memory_space<vmem>>, vector<1x12x32xbf16>,
    %c0_301 = arith.constant 0 : index
    %c10_302 = arith.constant 10 : index
    %c0_303 = arith.constant 0 : index
    %225 = tpu.strided_load %arg24[%c0_301, %c10_302, %c0_303] {strides = array<i32: 1, 2, 1>} : memref<1x40x32xf32, #tpu.memory_space<vmem>>, vector<1x12x32xf32>
    %226 = arith.truncf %225 : vector<1x12x32xf32> to vector<1x12x32xbf16>
    %c0_304 = arith.constant 0 : index
    %c0_305 = arith.constant 0 : index
    %c96_306 = arith.constant 96 : index
    %227 = vector.load %arg25[%c0_304, %c0_305, %c96_306] : memref<1x32x224xbf16, #tpu.memory_space<vmem>>, vector<1x12x32xbf16>
    tpu.vector_store %arg25[%c0_304, %c0_305, %c96_306], %226 {strides = array<i32>} : memref<1x32x224xbf16, #tpu.memory_space<vmem>>, vector<1x12x32xbf16>,
    %c0_307 = arith.constant 0 : index
    %c11_308 = arith.constant 11 : index
    %c0_309 = arith.constant 0 : index
    %228 = tpu.strided_load %arg24[%c0_307, %c11_308, %c0_309] {strides = array<i32: 1, 2, 1>} : memref<1x40x32xf32, #tpu.memory_space<vmem>>, vector<1x12x32xf32>
    %229 = arith.truncf %228 : vector<1x12x32xf32> to vector<1x12x32xbf16>
    %c0_310 = arith.constant 0 : index
    %c16_311 = arith.constant 16 : index
    %c96_312 = arith.constant 96 : index
    %230 = vector.load %arg25[%c0_310, %c16_311, %c96_312] : memref<1x32x224xbf16, #tpu.memory_space<vmem>>, vector<1x12x32xbf16>
    tpu.vector_store %arg25[%c0_310, %c16_311, %c96_312], %229 {strides = array<i32>} : memref<1x32x224xbf16, #tpu.memory_space<vmem>>, vector<1x12x32xbf16>,
    %c0_313 = arith.constant 0 : index
    %c11_314 = arith.constant 11 : index
    %c0_315 = arith.constant 0 : index
    %231 = tpu.strided_load %arg24[%c0_313, %c11_314, %c0_315] {strides = array<i32: 1, 2, 1>} : memref<1x40x32xf32, #tpu.memory_space<vmem>>, vector<1x12x32xf32>
    %232 = arith.truncf %231 : vector<1x12x32xf32> to vector<1x12x32xbf16>
    %c0_316 = arith.constant 0 : index
    %c0_317 = arith.constant 0 : index
    %c128 = arith.constant 128 : index
    %233 = vector.load %arg25[%c0_316, %c0_317, %c128] : memref<1x32x224xbf16, #tpu.memory_space<vmem>>, vector<1x12x32xbf16>
    tpu.vector_store %arg25[%c0_316, %c0_317, %c128], %232 {strides = array<i32>} : memref<1x32x224xbf16, #tpu.memory_space<vmem>>, vector<1x12x32xbf16>,
    %c0_318 = arith.constant 0 : index
    %c12_319 = arith.constant 12 : index
    %c0_320 = arith.constant 0 : index
    %234 = tpu.strided_load %arg24[%c0_318, %c12_319, %c0_320] {strides = array<i32: 1, 2, 1>} : memref<1x40x32xf32, #tpu.memory_space<vmem>>, vector<1x12x32xf32>
    %235 = arith.truncf %234 : vector<1x12x32xf32> to vector<1x12x32xbf16>
    %c0_321 = arith.constant 0 : index
    %c16_322 = arith.constant 16 : index
    %c128_323 = arith.constant 128 : index
    %236 = vector.load %arg25[%c0_321, %c16_322, %c128_323] : memref<1x32x224xbf16, #tpu.memory_space<vmem>>, vector<1x12x32xbf16>
    tpu.vector_store %arg25[%c0_321, %c16_322, %c128_323], %235 {strides = array<i32>} : memref<1x32x224xbf16, #tpu.memory_space<vmem>>, vector<1x12x32xbf16>,
    %c0_324 = arith.constant 0 : index
    %c12_325 = arith.constant 12 : index
    %c0_326 = arith.constant 0 : index
    %237 = tpu.strided_load %arg24[%c0_324, %c12_325, %c0_326] {strides = array<i32: 1, 2, 1>} : memref<1x40x32xf32, #tpu.memory_space<vmem>>, vector<1x12x32xf32>
    %238 = arith.truncf %237 : vector<1x12x32xf32> to vector<1x12x32xbf16>
    %c0_327 = arith.constant 0 : index
    %c0_328 = arith.constant 0 : index
    %c160 = arith.constant 160 : index
    %239 = vector.load %arg25[%c0_327, %c0_328, %c160] : memref<1x32x224xbf16, #tpu.memory_space<vmem>>, vector<1x12x32xbf16>
    tpu.vector_store %arg25[%c0_327, %c0_328, %c160], %238 {strides = array<i32>} : memref<1x32x224xbf16, #tpu.memory_space<vmem>>, vector<1x12x32xbf16>,
    %c0_329 = arith.constant 0 : index
    %c13_330 = arith.constant 13 : index
    %c0_331 = arith.constant 0 : index
    %240 = tpu.strided_load %arg24[%c0_329, %c13_330, %c0_331] {strides = array<i32: 1, 2, 1>} : memref<1x40x32xf32, #tpu.memory_space<vmem>>, vector<1x12x32xf32>
    %241 = arith.truncf %240 : vector<1x12x32xf32> to vector<1x12x32xbf16>
    %c0_332 = arith.constant 0 : index
    %c16_333 = arith.constant 16 : index
    %c160_334 = arith.constant 160 : index
    %242 = vector.load %arg25[%c0_332, %c16_333, %c160_334] : memref<1x32x224xbf16, #tpu.memory_space<vmem>>, vector<1x12x32xbf16>
    tpu.vector_store %arg25[%c0_332, %c16_333, %c160_334], %241 {strides = array<i32>} : memref<1x32x224xbf16, #tpu.memory_space<vmem>>, vector<1x12x32xbf16>,
    %c0_335 = arith.constant 0 : index
    %c13_336 = arith.constant 13 : index
    %c0_337 = arith.constant 0 : index
    %243 = tpu.strided_load %arg24[%c0_335, %c13_336, %c0_337] {strides = array<i32: 1, 2, 1>} : memref<1x40x32xf32, #tpu.memory_space<vmem>>, vector<1x12x32xf32>
    %244 = arith.truncf %243 : vector<1x12x32xf32> to vector<1x12x32xbf16>
    %c0_338 = arith.constant 0 : index
    %c0_339 = arith.constant 0 : index
    %c192 = arith.constant 192 : index
    %245 = vector.load %arg25[%c0_338, %c0_339, %c192] : memref<1x32x224xbf16, #tpu.memory_space<vmem>>, vector<1x12x32xbf16>
    tpu.vector_store %arg25[%c0_338, %c0_339, %c192], %244 {strides = array<i32>} : memref<1x32x224xbf16, #tpu.memory_space<vmem>>, vector<1x12x32xbf16>,
    %c0_340 = arith.constant 0 : index
    %c14_341 = arith.constant 14 : index
    %c0_342 = arith.constant 0 : index
    %246 = tpu.strided_load %arg24[%c0_340, %c14_341, %c0_342] {strides = array<i32: 1, 2, 1>} : memref<1x40x32xf32, #tpu.memory_space<vmem>>, vector<1x12x32xf32>
    %247 = arith.truncf %246 : vector<1x12x32xf32> to vector<1x12x32xbf16>
    %c0_343 = arith.constant 0 : index
    %c16_344 = arith.constant 16 : index
    %c192_345 = arith.constant 192 : index
    %248 = vector.load %arg25[%c0_343, %c16_344, %c192_345] : memref<1x32x224xbf16, #tpu.memory_space<vmem>>, vector<1x12x32xbf16>
    tpu.vector_store %arg25[%c0_343, %c16_344, %c192_345], %247 {strides = array<i32>} : memref<1x32x224xbf16, #tpu.memory_space<vmem>>, vector<1x12x32xbf16>,
    %c0_346 = arith.constant 0 : index
    %c0_347 = arith.constant 0 : index
    %c0_348 = arith.constant 0 : index
    %249 = vector.load %arg25[%c0_346, %c0_347, %c0_348] : memref<1x32x224xbf16, #tpu.memory_space<vmem>>, vector<1x32x224xbf16>
    %250 = vector.shape_cast %249 : vector<1x32x224xbf16> to vector<32x224xbf16>
    %c0_349 = arith.constant 0 : index
    %c0_350 = arith.constant 0 : index
    %251 = vector.load %arg11[%c0_349, %c0_350] : memref<224x64xbf16, #tpu.memory_space<vmem>>, vector<224x64xbf16>
    %cst_351 = arith.constant dense<0.000000e+00> : vector<32x64xf32>
    %252 = tpu.matmul %250, %251, %cst_351 {dimension_numbers = #tpu.dot_dimension_numbers<[1], [0], [0], [1], [0, 0, 1, 1], [], []>} : vector<32x224xbf16>, vector<224x64xbf16>, vector<32x64xf32> -> vector<32x64xf32>
    %c0_352 = arith.constant 0 : index
    %c0_353 = arith.constant 0 : index
    %253 = vector.load %arg12[%c0_352, %c0_353] : memref<1x64xf32, #tpu.memory_space<vmem>>, vector<1x64xf32>
    %254 = vector.broadcast %253 : vector<1x64xf32> to vector<32x64xf32>
    %255 = arith.mulf %252, %254 : vector<32x64xf32>
    %c0_354 = arith.constant 0 : index
    %c0_355 = arith.constant 0 : index
    %256 = vector.load %arg13[%c0_354, %c0_355] : memref<1x64xf32, #tpu.memory_space<vmem>>, vector<1x64xf32>
    %257 = vector.broadcast %256 : vector<1x64xf32> to vector<32x64xf32>
    %258 = arith.addf %255, %257 : vector<32x64xf32>
    %cst_356 = arith.constant 0.000000e+00 : f32
    %259 = vector.broadcast %cst_356 : f32 to vector<32x64xf32>
    %260 = arith.maximumf %258, %259 : vector<32x64xf32>
    %261 = vector.shape_cast %260 : vector<32x64xf32> to vector<1x32x64xf32>
    %262 = vector.extract_strided_slice %261 {offsets = [0, 0, 0], sizes = [1, 12, 64], strides = [1, 1, 1]} : vector<1x32x64xf32> to vector<1x12x64xf32>
    %263 = vector.extract_strided_slice %261 {offsets = [0, 16, 0], sizes = [1, 12, 64], strides = [1, 1, 1]} : vector<1x32x64xf32> to vector<1x12x64xf32>
    %264 = arith.maximumf %262, %263 : vector<1x12x64xf32>
    %c0_357 = arith.constant 0 : index
    %c8_358 = arith.constant 8 : index
    %c0_359 = arith.constant 0 : index
    %265 = vector.load %arg26[%c0_357, %c8_358, %c0_359] : memref<1x24x64xf32, #tpu.memory_space<vmem>>, vector<1x12x64xf32>
    tpu.vector_store %arg26[%c0_357, %c8_358, %c0_359], %264 {strides = array<i32>} : memref<1x24x64xf32, #tpu.memory_space<vmem>>, vector<1x12x64xf32>,
    %cst_360 = arith.constant 0.000000e+00 : f32
    %266 = vector.broadcast %cst_360 : f32 to vector<1x8x64xf32>
    %c0_361 = arith.constant 0 : index
    %c0_362 = arith.constant 0 : index
    %c0_363 = arith.constant 0 : index
    %267 = vector.load %arg26[%c0_361, %c0_362, %c0_363] : memref<1x24x64xf32, #tpu.memory_space<vmem>>, vector<1x8x64xf32>
    tpu.vector_store %arg26[%c0_361, %c0_362, %c0_363], %266 {strides = array<i32>} : memref<1x24x64xf32, #tpu.memory_space<vmem>>, vector<1x8x64xf32>,
    %cst_364 = arith.constant 0.000000e+00 : f32
    %268 = vector.broadcast %cst_364 : f32 to vector<1x4x64xf32>
    %c0_365 = arith.constant 0 : index
    %c20_366 = arith.constant 20 : index
    %c0_367 = arith.constant 0 : index
    %269 = vector.load %arg26[%c0_365, %c20_366, %c0_367] : memref<1x24x64xf32, #tpu.memory_space<vmem>>, vector<1x4x64xf32>
    tpu.vector_store %arg26[%c0_365, %c20_366, %c0_367], %268 {strides = array<i32>} : memref<1x24x64xf32, #tpu.memory_space<vmem>>, vector<1x4x64xf32>,
    %c0_368 = arith.constant 0 : index
    %c7_369 = arith.constant 7 : index
    %c0_370 = arith.constant 0 : index
    %270 = tpu.strided_load %arg26[%c0_368, %c7_369, %c0_370] {strides = array<i32: 1, 2, 1>} : memref<1x24x64xf32, #tpu.memory_space<vmem>>, vector<1x4x64xf32>
    %271 = arith.truncf %270 : vector<1x4x64xf32> to vector<1x4x64xbf16>
    %c0_371 = arith.constant 0 : index
    %c0_372 = arith.constant 0 : index
    %c0_373 = arith.constant 0 : index
    %272 = vector.load %arg27[%c0_371, %c0_372, %c0_373] : memref<1x16x448xbf16, #tpu.memory_space<vmem>>, vector<1x4x64xbf16>
    tpu.vector_store %arg27[%c0_371, %c0_372, %c0_373], %271 {strides = array<i32>} : memref<1x16x448xbf16, #tpu.memory_space<vmem>>, vector<1x4x64xbf16>,
    %c0_374 = arith.constant 0 : index
    %c8_375 = arith.constant 8 : index
    %c0_376 = arith.constant 0 : index
    %273 = tpu.strided_load %arg26[%c0_374, %c8_375, %c0_376] {strides = array<i32: 1, 2, 1>} : memref<1x24x64xf32, #tpu.memory_space<vmem>>, vector<1x4x64xf32>
    %274 = arith.truncf %273 : vector<1x4x64xf32> to vector<1x4x64xbf16>
    %c0_377 = arith.constant 0 : index
    %c8_378 = arith.constant 8 : index
    %c0_379 = arith.constant 0 : index
    %275 = vector.load %arg27[%c0_377, %c8_378, %c0_379] : memref<1x16x448xbf16, #tpu.memory_space<vmem>>, vector<1x4x64xbf16>
    tpu.vector_store %arg27[%c0_377, %c8_378, %c0_379], %274 {strides = array<i32>} : memref<1x16x448xbf16, #tpu.memory_space<vmem>>, vector<1x4x64xbf16>,
    %c0_380 = arith.constant 0 : index
    %c8_381 = arith.constant 8 : index
    %c0_382 = arith.constant 0 : index
    %276 = tpu.strided_load %arg26[%c0_380, %c8_381, %c0_382] {strides = array<i32: 1, 2, 1>} : memref<1x24x64xf32, #tpu.memory_space<vmem>>, vector<1x4x64xf32>
    %277 = arith.truncf %276 : vector<1x4x64xf32> to vector<1x4x64xbf16>
    %c0_383 = arith.constant 0 : index
    %c0_384 = arith.constant 0 : index
    %c64_385 = arith.constant 64 : index
    %278 = vector.load %arg27[%c0_383, %c0_384, %c64_385] : memref<1x16x448xbf16, #tpu.memory_space<vmem>>, vector<1x4x64xbf16>
    tpu.vector_store %arg27[%c0_383, %c0_384, %c64_385], %277 {strides = array<i32>} : memref<1x16x448xbf16, #tpu.memory_space<vmem>>, vector<1x4x64xbf16>,
    %c0_386 = arith.constant 0 : index
    %c9_387 = arith.constant 9 : index
    %c0_388 = arith.constant 0 : index
    %279 = tpu.strided_load %arg26[%c0_386, %c9_387, %c0_388] {strides = array<i32: 1, 2, 1>} : memref<1x24x64xf32, #tpu.memory_space<vmem>>, vector<1x4x64xf32>
    %280 = arith.truncf %279 : vector<1x4x64xf32> to vector<1x4x64xbf16>
    %c0_389 = arith.constant 0 : index
    %c8_390 = arith.constant 8 : index
    %c64_391 = arith.constant 64 : index
    %281 = vector.load %arg27[%c0_389, %c8_390, %c64_391] : memref<1x16x448xbf16, #tpu.memory_space<vmem>>, vector<1x4x64xbf16>
    tpu.vector_store %arg27[%c0_389, %c8_390, %c64_391], %280 {strides = array<i32>} : memref<1x16x448xbf16, #tpu.memory_space<vmem>>, vector<1x4x64xbf16>,
    %c0_392 = arith.constant 0 : index
    %c9_393 = arith.constant 9 : index
    %c0_394 = arith.constant 0 : index
    %282 = tpu.strided_load %arg26[%c0_392, %c9_393, %c0_394] {strides = array<i32: 1, 2, 1>} : memref<1x24x64xf32, #tpu.memory_space<vmem>>, vector<1x4x64xf32>
    %283 = arith.truncf %282 : vector<1x4x64xf32> to vector<1x4x64xbf16>
    %c0_395 = arith.constant 0 : index
    %c0_396 = arith.constant 0 : index
    %c128_397 = arith.constant 128 : index
    %284 = vector.load %arg27[%c0_395, %c0_396, %c128_397] : memref<1x16x448xbf16, #tpu.memory_space<vmem>>, vector<1x4x64xbf16>
    tpu.vector_store %arg27[%c0_395, %c0_396, %c128_397], %283 {strides = array<i32>} : memref<1x16x448xbf16, #tpu.memory_space<vmem>>, vector<1x4x64xbf16>,
    %c0_398 = arith.constant 0 : index
    %c10_399 = arith.constant 10 : index
    %c0_400 = arith.constant 0 : index
    %285 = tpu.strided_load %arg26[%c0_398, %c10_399, %c0_400] {strides = array<i32: 1, 2, 1>} : memref<1x24x64xf32, #tpu.memory_space<vmem>>, vector<1x4x64xf32>
    %286 = arith.truncf %285 : vector<1x4x64xf32> to vector<1x4x64xbf16>
    %c0_401 = arith.constant 0 : index
    %c8_402 = arith.constant 8 : index
    %c128_403 = arith.constant 128 : index
    %287 = vector.load %arg27[%c0_401, %c8_402, %c128_403] : memref<1x16x448xbf16, #tpu.memory_space<vmem>>, vector<1x4x64xbf16>
    tpu.vector_store %arg27[%c0_401, %c8_402, %c128_403], %286 {strides = array<i32>} : memref<1x16x448xbf16, #tpu.memory_space<vmem>>, vector<1x4x64xbf16>,
    %c0_404 = arith.constant 0 : index
    %c10_405 = arith.constant 10 : index
    %c0_406 = arith.constant 0 : index
    %288 = tpu.strided_load %arg26[%c0_404, %c10_405, %c0_406] {strides = array<i32: 1, 2, 1>} : memref<1x24x64xf32, #tpu.memory_space<vmem>>, vector<1x4x64xf32>
    %289 = arith.truncf %288 : vector<1x4x64xf32> to vector<1x4x64xbf16>
    %c0_407 = arith.constant 0 : index
    %c0_408 = arith.constant 0 : index
    %c192_409 = arith.constant 192 : index
    %290 = vector.load %arg27[%c0_407, %c0_408, %c192_409] : memref<1x16x448xbf16, #tpu.memory_space<vmem>>, vector<1x4x64xbf16>
    tpu.vector_store %arg27[%c0_407, %c0_408, %c192_409], %289 {strides = array<i32>} : memref<1x16x448xbf16, #tpu.memory_space<vmem>>, vector<1x4x64xbf16>,
    %c0_410 = arith.constant 0 : index
    %c11_411 = arith.constant 11 : index
    %c0_412 = arith.constant 0 : index
    %291 = tpu.strided_load %arg26[%c0_410, %c11_411, %c0_412] {strides = array<i32: 1, 2, 1>} : memref<1x24x64xf32, #tpu.memory_space<vmem>>, vector<1x4x64xf32>
    %292 = arith.truncf %291 : vector<1x4x64xf32> to vector<1x4x64xbf16>
    %c0_413 = arith.constant 0 : index
    %c8_414 = arith.constant 8 : index
    %c192_415 = arith.constant 192 : index
    %293 = vector.load %arg27[%c0_413, %c8_414, %c192_415] : memref<1x16x448xbf16, #tpu.memory_space<vmem>>, vector<1x4x64xbf16>
    tpu.vector_store %arg27[%c0_413, %c8_414, %c192_415], %292 {strides = array<i32>} : memref<1x16x448xbf16, #tpu.memory_space<vmem>>, vector<1x4x64xbf16>,
    %c0_416 = arith.constant 0 : index
    %c11_417 = arith.constant 11 : index
    %c0_418 = arith.constant 0 : index
    %294 = tpu.strided_load %arg26[%c0_416, %c11_417, %c0_418] {strides = array<i32: 1, 2, 1>} : memref<1x24x64xf32, #tpu.memory_space<vmem>>, vector<1x4x64xf32>
    %295 = arith.truncf %294 : vector<1x4x64xf32> to vector<1x4x64xbf16>
    %c0_419 = arith.constant 0 : index
    %c0_420 = arith.constant 0 : index
    %c256 = arith.constant 256 : index
    %296 = vector.load %arg27[%c0_419, %c0_420, %c256] : memref<1x16x448xbf16, #tpu.memory_space<vmem>>, vector<1x4x64xbf16>
    tpu.vector_store %arg27[%c0_419, %c0_420, %c256], %295 {strides = array<i32>} : memref<1x16x448xbf16, #tpu.memory_space<vmem>>, vector<1x4x64xbf16>,
    %c0_421 = arith.constant 0 : index
    %c12_422 = arith.constant 12 : index
    %c0_423 = arith.constant 0 : index
    %297 = tpu.strided_load %arg26[%c0_421, %c12_422, %c0_423] {strides = array<i32: 1, 2, 1>} : memref<1x24x64xf32, #tpu.memory_space<vmem>>, vector<1x4x64xf32>
    %298 = arith.truncf %297 : vector<1x4x64xf32> to vector<1x4x64xbf16>
    %c0_424 = arith.constant 0 : index
    %c8_425 = arith.constant 8 : index
    %c256_426 = arith.constant 256 : index
    %299 = vector.load %arg27[%c0_424, %c8_425, %c256_426] : memref<1x16x448xbf16, #tpu.memory_space<vmem>>, vector<1x4x64xbf16>
    tpu.vector_store %arg27[%c0_424, %c8_425, %c256_426], %298 {strides = array<i32>} : memref<1x16x448xbf16, #tpu.memory_space<vmem>>, vector<1x4x64xbf16>,
    %c0_427 = arith.constant 0 : index
    %c12_428 = arith.constant 12 : index
    %c0_429 = arith.constant 0 : index
    %300 = tpu.strided_load %arg26[%c0_427, %c12_428, %c0_429] {strides = array<i32: 1, 2, 1>} : memref<1x24x64xf32, #tpu.memory_space<vmem>>, vector<1x4x64xf32>
    %301 = arith.truncf %300 : vector<1x4x64xf32> to vector<1x4x64xbf16>
    %c0_430 = arith.constant 0 : index
    %c0_431 = arith.constant 0 : index
    %c320 = arith.constant 320 : index
    %302 = vector.load %arg27[%c0_430, %c0_431, %c320] : memref<1x16x448xbf16, #tpu.memory_space<vmem>>, vector<1x4x64xbf16>
    tpu.vector_store %arg27[%c0_430, %c0_431, %c320], %301 {strides = array<i32>} : memref<1x16x448xbf16, #tpu.memory_space<vmem>>, vector<1x4x64xbf16>,
    %c0_432 = arith.constant 0 : index
    %c13_433 = arith.constant 13 : index
    %c0_434 = arith.constant 0 : index
    %303 = tpu.strided_load %arg26[%c0_432, %c13_433, %c0_434] {strides = array<i32: 1, 2, 1>} : memref<1x24x64xf32, #tpu.memory_space<vmem>>, vector<1x4x64xf32>
    %304 = arith.truncf %303 : vector<1x4x64xf32> to vector<1x4x64xbf16>
    %c0_435 = arith.constant 0 : index
    %c8_436 = arith.constant 8 : index
    %c320_437 = arith.constant 320 : index
    %305 = vector.load %arg27[%c0_435, %c8_436, %c320_437] : memref<1x16x448xbf16, #tpu.memory_space<vmem>>, vector<1x4x64xbf16>
    tpu.vector_store %arg27[%c0_435, %c8_436, %c320_437], %304 {strides = array<i32>} : memref<1x16x448xbf16, #tpu.memory_space<vmem>>, vector<1x4x64xbf16>,
    %c0_438 = arith.constant 0 : index
    %c13_439 = arith.constant 13 : index
    %c0_440 = arith.constant 0 : index
    %306 = tpu.strided_load %arg26[%c0_438, %c13_439, %c0_440] {strides = array<i32: 1, 2, 1>} : memref<1x24x64xf32, #tpu.memory_space<vmem>>, vector<1x4x64xf32>
    %307 = arith.truncf %306 : vector<1x4x64xf32> to vector<1x4x64xbf16>
    %c0_441 = arith.constant 0 : index
    %c0_442 = arith.constant 0 : index
    %c384 = arith.constant 384 : index
    %308 = vector.load %arg27[%c0_441, %c0_442, %c384] : memref<1x16x448xbf16, #tpu.memory_space<vmem>>, vector<1x4x64xbf16>
    tpu.vector_store %arg27[%c0_441, %c0_442, %c384], %307 {strides = array<i32>} : memref<1x16x448xbf16, #tpu.memory_space<vmem>>, vector<1x4x64xbf16>,
    %c0_443 = arith.constant 0 : index
    %c14_444 = arith.constant 14 : index
    %c0_445 = arith.constant 0 : index
    %309 = tpu.strided_load %arg26[%c0_443, %c14_444, %c0_445] {strides = array<i32: 1, 2, 1>} : memref<1x24x64xf32, #tpu.memory_space<vmem>>, vector<1x4x64xf32>
    %310 = arith.truncf %309 : vector<1x4x64xf32> to vector<1x4x64xbf16>
    %c0_446 = arith.constant 0 : index
    %c8_447 = arith.constant 8 : index
    %c384_448 = arith.constant 384 : index
    %311 = vector.load %arg27[%c0_446, %c8_447, %c384_448] : memref<1x16x448xbf16, #tpu.memory_space<vmem>>, vector<1x4x64xbf16>
    tpu.vector_store %arg27[%c0_446, %c8_447, %c384_448], %310 {strides = array<i32>} : memref<1x16x448xbf16, #tpu.memory_space<vmem>>, vector<1x4x64xbf16>,
    %c0_449 = arith.constant 0 : index
    %c0_450 = arith.constant 0 : index
    %c0_451 = arith.constant 0 : index
    %312 = vector.load %arg27[%c0_449, %c0_450, %c0_451] : memref<1x16x448xbf16, #tpu.memory_space<vmem>>, vector<1x16x448xbf16>
    %313 = vector.shape_cast %312 : vector<1x16x448xbf16> to vector<16x448xbf16>
    %c0_452 = arith.constant 0 : index
    %c0_453 = arith.constant 0 : index
    %314 = vector.load %arg14[%c0_452, %c0_453] : memref<448x128xbf16, #tpu.memory_space<vmem>>, vector<448x128xbf16>
    %cst_454 = arith.constant dense<0.000000e+00> : vector<16x128xf32>
    %315 = tpu.matmul %313, %314, %cst_454 {dimension_numbers = #tpu.dot_dimension_numbers<[1], [0], [0], [1], [0, 0, 1, 1], [], []>} : vector<16x448xbf16>, vector<448x128xbf16>, vector<16x128xf32> -> vector<16x128xf32>
    %c0_455 = arith.constant 0 : index
    %c0_456 = arith.constant 0 : index
    %316 = vector.load %arg15[%c0_455, %c0_456] : memref<1x128xf32, #tpu.memory_space<vmem>>, vector<1x128xf32>
    %317 = vector.broadcast %316 : vector<1x128xf32> to vector<16x128xf32>
    %318 = arith.mulf %315, %317 : vector<16x128xf32>
    %c0_457 = arith.constant 0 : index
    %c0_458 = arith.constant 0 : index
    %319 = vector.load %arg16[%c0_457, %c0_458] : memref<1x128xf32, #tpu.memory_space<vmem>>, vector<1x128xf32>
    %320 = vector.broadcast %319 : vector<1x128xf32> to vector<16x128xf32>
    %321 = arith.addf %318, %320 : vector<16x128xf32>
    %cst_459 = arith.constant 0.000000e+00 : f32
    %322 = vector.broadcast %cst_459 : f32 to vector<16x128xf32>
    %323 = arith.maximumf %321, %322 : vector<16x128xf32>
    %324 = vector.shape_cast %323 : vector<16x128xf32> to vector<1x16x128xf32>
    %325 = vector.extract_strided_slice %324 {offsets = [0, 0, 0], sizes = [1, 4, 128], strides = [1, 1, 1]} : vector<1x16x128xf32> to vector<1x4x128xf32>
    %326 = vector.extract_strided_slice %324 {offsets = [0, 8, 0], sizes = [1, 4, 128], strides = [1, 1, 1]} : vector<1x16x128xf32> to vector<1x4x128xf32>
    %327 = arith.maximumf %325, %326 : vector<1x4x128xf32>
    %328 = tpu.transpose %327, [0, 2, 1] : vector<1x4x128xf32> -> vector<1x128x4xf32>
    %c0_460 = arith.constant 0 : index
    %c0_461 = arith.constant 0 : index
    %c0_462 = arith.constant 0 : index
    %329 = vector.load %arg17[%c0_460, %c0_461, %c0_462] : memref<1x128x4xf32, #tpu.memory_space<vmem>>, vector<1x128x4xf32>
    tpu.vector_store %arg17[%c0_460, %c0_461, %c0_462], %328 {strides = array<i32>} : memref<1x128x4xf32, #tpu.memory_space<vmem>>, vector<1x128x4xf32>,
    return
  }
  func.func @transform_0(%arg0: i32) -> (i32, i32, i32) {
    %c0_i32 = arith.constant 0 : i32
    %c0_i32_0 = arith.constant 0 : i32
    %c0_i32_1 = arith.constant 0 : i32
    return %arg0, %c0_i32, %c0_i32_0 : i32, i32, i32
  }
  func.func @transform_1(%arg0: i32) -> (i32, i32, i32) {
    %c0_i32 = arith.constant 0 : i32
    %c0_i32_0 = arith.constant 0 : i32
    %c0_i32_1 = arith.constant 0 : i32
    %c0_i32_2 = arith.constant 0 : i32
    return %c0_i32, %c0_i32_0, %c0_i32_1 : i32, i32, i32
  }
  func.func @transform_2(%arg0: i32) -> (i32, i32) {
    %c0_i32 = arith.constant 0 : i32
    %c0_i32_0 = arith.constant 0 : i32
    %c0_i32_1 = arith.constant 0 : i32
    return %c0_i32, %c0_i32_0 : i32, i32
  }
  func.func @transform_3(%arg0: i32) -> (i32, i32) {
    %c0_i32 = arith.constant 0 : i32
    %c0_i32_0 = arith.constant 0 : i32
    %c0_i32_1 = arith.constant 0 : i32
    return %c0_i32, %c0_i32_0 : i32, i32
  }
  func.func @transform_4(%arg0: i32) -> (i32, i32) {
    %c0_i32 = arith.constant 0 : i32
    %c0_i32_0 = arith.constant 0 : i32
    %c0_i32_1 = arith.constant 0 : i32
    return %c0_i32, %c0_i32_0 : i32, i32
  }
  func.func @transform_5(%arg0: i32) -> (i32, i32) {
    %c0_i32 = arith.constant 0 : i32
    %c0_i32_0 = arith.constant 0 : i32
    %c0_i32_1 = arith.constant 0 : i32
    return %c0_i32, %c0_i32_0 : i32, i32
  }
  func.func @transform_6(%arg0: i32) -> (i32, i32) {
    %c0_i32 = arith.constant 0 : i32
    %c0_i32_0 = arith.constant 0 : i32
    %c0_i32_1 = arith.constant 0 : i32
    return %c0_i32, %c0_i32_0 : i32, i32
  }
  func.func @transform_7(%arg0: i32) -> (i32, i32) {
    %c0_i32 = arith.constant 0 : i32
    %c0_i32_0 = arith.constant 0 : i32
    %c0_i32_1 = arith.constant 0 : i32
    return %c0_i32, %c0_i32_0 : i32, i32
  }
  func.func @transform_8(%arg0: i32) -> (i32, i32) {
    %c0_i32 = arith.constant 0 : i32
    %c0_i32_0 = arith.constant 0 : i32
    %c0_i32_1 = arith.constant 0 : i32
    return %c0_i32, %c0_i32_0 : i32, i32
  }
  func.func @transform_9(%arg0: i32) -> (i32, i32) {
    %c0_i32 = arith.constant 0 : i32
    %c0_i32_0 = arith.constant 0 : i32
    %c0_i32_1 = arith.constant 0 : i32
    return %c0_i32, %c0_i32_0 : i32, i32
  }
  func.func @transform_10(%arg0: i32) -> (i32, i32) {
    %c0_i32 = arith.constant 0 : i32
    %c0_i32_0 = arith.constant 0 : i32
    %c0_i32_1 = arith.constant 0 : i32
    return %c0_i32, %c0_i32_0 : i32, i32
  }
  func.func @transform_11(%arg0: i32) -> (i32, i32) {
    %c0_i32 = arith.constant 0 : i32
    %c0_i32_0 = arith.constant 0 : i32
    %c0_i32_1 = arith.constant 0 : i32
    return %c0_i32, %c0_i32_0 : i32, i32
  }
  func.func @transform_12(%arg0: i32) -> (i32, i32) {
    %c0_i32 = arith.constant 0 : i32
    %c0_i32_0 = arith.constant 0 : i32
    %c0_i32_1 = arith.constant 0 : i32
    return %c0_i32, %c0_i32_0 : i32, i32
  }
  func.func @transform_13(%arg0: i32) -> (i32, i32) {
    %c0_i32 = arith.constant 0 : i32
    %c0_i32_0 = arith.constant 0 : i32
    %c0_i32_1 = arith.constant 0 : i32
    return %c0_i32, %c0_i32_0 : i32, i32
  }
  func.func @transform_14(%arg0: i32) -> (i32, i32) {
    %c0_i32 = arith.constant 0 : i32
    %c0_i32_0 = arith.constant 0 : i32
    %c0_i32_1 = arith.constant 0 : i32
    return %c0_i32, %c0_i32_0 : i32, i32
  }
  func.func @transform_15(%arg0: i32) -> (i32, i32) {
    %c0_i32 = arith.constant 0 : i32
    %c0_i32_0 = arith.constant 0 : i32
    %c0_i32_1 = arith.constant 0 : i32
    return %c0_i32, %c0_i32_0 : i32, i32
  }
  func.func @transform_16(%arg0: i32) -> (i32, i32, i32) {
    %c0_i32 = arith.constant 0 : i32
    %c0_i32_0 = arith.constant 0 : i32
    %c0_i32_1 = arith.constant 0 : i32
    return %arg0, %c0_i32, %c0_i32_0 : i32, i32, i32
  }
}

</mosaic_0001>

<llo_original>
// kernel: cnnlayer_forward.1
$region0: #{cnnlayer_forward.1}
  #allocation0 [shape = 'u32[]', space=smem, size = 0x4, offset = 0x4, fixed_abs, tag = 'smem constant byte address 0x4 - core index']
  #allocation1 [shape = 'u32[144,128]{1,0:T(1,128)}', space=vmem, size = 0x12000, scoped, tag = 'internal scratch']
  #allocation2 [shape = 'f32[1,1,258]{2,1,0:T(1,128)}', space=vmem, size = 0x600, scoped, tag = 'scratch operand']
  #allocation3 [shape = 'f32[1,252,4]{2,1,0:T(8,128)}', space=vmem, size = 0x20000, scoped, tag = 'scratch operand']
  #allocation4 [shape = 'f32[1,136,4]{2,1,0:T(8,128)}', space=vmem, size = 0x11000, scoped, tag = 'scratch operand']
  #allocation5 [shape = 'bf16[1,128,28]{2,1,0:T(16,128)(2,1)}', space=vmem, size = 0x8000, scoped, tag = 'scratch operand']
  #allocation6 [shape = 'f32[1,72,16]{2,1,0:T(8,128)}', space=vmem, size = 0x9000, scoped, tag = 'scratch operand']
  #allocation7 [shape = 'bf16[1,64,112]{2,1,0:T(16,128)(2,1)}', space=vmem, size = 0x4000, scoped, tag = 'scratch operand']
  #allocation8 [shape = 'f32[1,40,32]{2,1,0:T(8,128)}', space=vmem, size = 0x5000, scoped, tag = 'scratch operand']
  #allocation9 [shape = 'bf16[1,32,224]{2,1,0:T(16,128)(2,1)}', space=vmem, size = 0x4000, scoped, tag = 'scratch operand']
  #allocation10 [shape = 'f32[1,24,64]{2,1,0:T(8,128)}', space=vmem, size = 0x3000, scoped, tag = 'scratch operand']
  #allocation11 [shape = 'bf16[1,16,448]{2,1,0:T(16,128)(2,1)}', space=vmem, size = 0x4000, scoped, tag = 'scratch operand']
  %s0 = inlined_call_operand.vmem [shape: f32[2,1,256], index: 0, kind: input, shape index: {}]
  %s1 = inlined_call_operand.hbm [shape: f32[7,4,1], index: 1, kind: input, shape index: {}]
  %s2 = inlined_call_operand.hbm [shape: f32[4,1], index: 2, kind: input, shape index: {}]
  %s3 = inlined_call_operand.hbm [shape: f32[4,1], index: 3, kind: input, shape index: {}]
  %s4 = inlined_call_operand.hbm [shape: bf16[28,16], index: 4, kind: input, shape index: {}]
  %s5 = inlined_call_operand.hbm [shape: f32[1,16], index: 5, kind: input, shape index: {}]
  %s6 = inlined_call_operand.hbm [shape: f32[1,16], index: 6, kind: input, shape index: {}]
  %s7 = inlined_call_operand.vmem [shape: bf16[112,32], index: 7, kind: input, shape index: {}]
  %s8 = inlined_call_operand.hbm [shape: f32[1,32], index: 8, kind: input, shape index: {}]
  %s9 = inlined_call_operand.hbm [shape: f32[1,32], index: 9, kind: input, shape index: {}]
  %s10 = inlined_call_operand.hbm [shape: bf16[224,64], index: 10, kind: input, shape index: {}]
  %s11 = inlined_call_operand.hbm [shape: f32[1,64], index: 11, kind: input, shape index: {}]
  %s12 = inlined_call_operand.hbm [shape: f32[1,64], index: 12, kind: input, shape index: {}]
  %s13 = inlined_call_operand.hbm [shape: bf16[448,128], index: 13, kind: input, shape index: {}]
  %s14 = inlined_call_operand.hbm [shape: f32[1,128], index: 14, kind: input, shape index: {}]
  %s15 = inlined_call_operand.hbm [shape: f32[1,128], index: 15, kind: input, shape index: {}]
  %s16 = inlined_call_operand.vmem [shape: f32[2,128,4], index: 16, kind: output, shape index: {}]
  %s17 = sld [smem:[#allocation0]]
  $region153: #{cnnlayer_forward.1} parent=0
    _
  %s19 = ssub.s32 1, %s17
  %s20 = scalar_select 0, %s19, %s17
  $region1: #{cnnlayer_forward.1} parent=0
    #allocation12 [shape = 'u8[14336]{0}', space=vmem, size = 0x3800, scoped, tag = 'input window, operand 1, single buffered']
    #allocation13 [shape = 's32[2]{0}', space=sflag, size = 0x8, scoped, tag = 'scoped memory for cnnlayer_forward.1']
    #allocation14 [shape = 'u8[2048]{0}', space=vmem, size = 0x800, scoped, tag = 'input window, operand 2, single buffered']
    #allocation15 [shape = 's32[1]{0}', space=sflag, size = 0x4, scoped, tag = 'scoped memory for cnnlayer_forward.1']
    #allocation16 [shape = 'u8[2048]{0}', space=vmem, size = 0x800, scoped, tag = 'input window, operand 3, single buffered']
    #allocation17 [shape = 'u8[8192]{0}', space=vmem, size = 0x2000, scoped, tag = 'input window, operand 4, single buffered']
    #allocation18 [shape = 's32[1]{0}', space=sflag, size = 0x4, scoped, tag = 'scoped memory for cnnlayer_forward.1']
    #allocation19 [shape = 'u8[512]{0}', space=vmem, size = 0x400, scoped, tag = 'input window, operand 5, single buffered']
    #allocation20 [shape = 'u8[512]{0}', space=vmem, size = 0x400, scoped, tag = 'input window, operand 6, single buffered']
    #allocation21 [shape = 's32[1]{0}', space=sflag, size = 0x4, scoped, tag = 'scoped memory for cnnlayer_forward.1']
    #allocation22 [shape = 'u8[512]{0}', space=vmem, size = 0x400, scoped, tag = 'input window, operand 8, single buffered']
    #allocation23 [shape = 'u8[512]{0}', space=vmem, size = 0x400, scoped, tag = 'input window, operand 9, single buffered']
    #allocation24 [shape = 's32[1]{0}', space=sflag, size = 0x4, scoped, tag = 'scoped memory for cnnlayer_forward.1']
    #allocation25 [shape = 'u8[57344]{0}', space=vmem, size = 0xe000, scoped, tag = 'input window, operand 10, single buffered']
    #allocation26 [shape = 'u8[512]{0}', space=vmem, size = 0x400, scoped, tag = 'input window, operand 11, single buffered']
    #allocation27 [shape = 's32[1]{0}', space=sflag, size = 0x4, scoped, tag = 'scoped memory for cnnlayer_forward.1']
    #allocation28 [shape = 'u8[512]{0}', space=vmem, size = 0x400, scoped, tag = 'input window, operand 12, single buffered']
    #allocation29 [shape = 'u8[114688]{0}', space=vmem, size = 0x1c000, scoped, tag = 'input window, operand 13, single buffered']
    #allocation30 [shape = 's32[1]{0}', space=sflag, size = 0x4, scoped, tag = 'scoped memory for cnnlayer_forward.1']
    #allocation31 [shape = 'u8[512]{0}', space=vmem, size = 0x400, scoped, tag = 'input window, operand 14, single buffered']
    #allocation32 [shape = 'u8[512]{0}', space=vmem, size = 0x400, scoped, tag = 'input window, operand 15, single buffered']
    #allocation33 [shape = 's32[1]{0}', space=sflag, size = 0x4, scoped, tag = 'scoped memory for cnnlayer_forward.1']
    %21 = vsyncpa [#allocation13], 0
    %22 = vsyncpa [#allocation15], 0
    %23 = vsyncpa [#allocation18], 0
    %24 = vsyncpa [#allocation21], 0
    %25 = vsyncpa [#allocation24], 0
    %26 = vsyncpa [#allocation27], 0
    %27 = vsyncpa [#allocation30], 0
    %28 = vsyncpa [#allocation33], 0
    loop: start=0, step=1, limit=4
    $region2: #{cnnlayer_forward.1} parent=1 // loop_pre_header
      _
    $region3: #{cnnlayer_forward.1} parent=1 // loop_header
      %s30 = sphi 0, %s34
      %p31 = scmp.ge.s32.totalorder %s30, 4
      %s40 = sphi 0, %s42
      %s43 = sphi 0, %s40
      %s44 = sphi 0, %s43
      %s60 = sphi 0, %s44
      %s64 = sphi 0, %s64
      %s66 = sphi 0, %s64
      %s67 = sphi 0, %s66
      %s81 = sphi 0, %s67
      %s85 = sphi 0, %s85
      %s87 = sphi 0, %s85
      %s88 = sphi 0, %s87
      %s102 = sphi 0, %s88
      %s106 = sphi 0, %s106
      %s108 = sphi 0, %s106
      %s109 = sphi 0, %s108
      %s123 = sphi 0, %s109
      %s127 = sphi 0, %s127
      %s129 = sphi 0, %s127
      %s130 = sphi 0, %s129
      %s144 = sphi 0, %s130
      %s148 = sphi 0, %s148
      %s150 = sphi 0, %s148
      %s151 = sphi 0, %s150
      %s165 = sphi 0, %s151
      %s169 = sphi 0, %s169
      %s171 = sphi 0, %s169
      %s172 = sphi 0, %s171
      %s186 = sphi 0, %s172
      %s190 = sphi 0, %s190
      %s192 = sphi 0, %s190
      %s193 = sphi 0, %s192
      %s207 = sphi 0, %s193
      %s211 = sphi 0, %s211
      %s213 = sphi 0, %s211
      %s214 = sphi 0, %s213
      %s228 = sphi 0, %s214
      %s232 = sphi 0, %s232
      %s234 = sphi 0, %s232
      %s235 = sphi 0, %s234
      %s249 = sphi 0, %s235
      %s253 = sphi 0, %s253
      %s255 = sphi 0, %s253
      %s256 = sphi 0, %s255
      %s270 = sphi 0, %s256
      %s274 = sphi 0, %s274
      %s276 = sphi 0, %s274
      %s277 = sphi 0, %s276
      %s291 = sphi 0, %s277
      %s295 = sphi 0, %s295
      %s297 = sphi 0, %s295
      %s298 = sphi 0, %s297
      %s312 = sphi 0, %s298
      %s316 = sphi 0, %s316
      %s318 = sphi 0, %s316
      %s319 = sphi 0, %s318
      %s333 = sphi 0, %s319
      %s337 = sphi 0, %s337
      %s339 = sphi 0, %s337
      %s340 = sphi 0, %s339
      %s354 = sphi 0, %s340
      %s358 = sphi 0, %s358
      %s360 = sphi 0, %s358
      %s361 = sphi 0, %s360
      %s375 = sphi 0, %s361
      %s381 = sphi 0, %s383
      %s384 = sphi 0, %s381
      %s385 = sphi 0, %s384
      %s401 = sphi 0, %s385
    $region4: #{cnnlayer_forward.1} parent=1 // loop_header_branch
      %33 = sbr.rel (%p31) target = $region8
    $region5: #{cnnlayer_forward.1} parent=1 // loop_body
      %s35 = ssub.s32 %s30, 1
      %s36 = ssub.s32 %s30, 2
      %s37 = sadd.s32 %s30, 1
      %s38 = ssub.s32 %s30, %s37
      %p39 = scmp.eq.s32.totalorder %s38, 0
      %s41 = sadd.s32 %s40, 1
      %s42 = scalar_select %p39, %s40, %s41
      %p45 = pneg %p39
      %p46 = scmp.eq.s32.totalorder %s30, 1
      %p47 = por %p45, %p46
      %p48 = scmp.ne.s32.totalorder %s40, %s43
      %p49 = scmp.eq.s32.totalorder %s30, 0
      %p50 = por %p48, %p49
      %p51 = scmp.ne.s32.totalorder %s40, %s43
      %p52 = scmp.eq.s32.totalorder %s35, 1
      %p53 = por %p51, %p52
      %p54 = scmp.ne.s32.totalorder %s43, %s44
      %p55 = scmp.eq.s32.totalorder %s35, 0
      %p56 = por %p54, %p55
      %p57 = scmp.ne.s32.totalorder %s43, %s44
      %p58 = scmp.eq.s32.totalorder %s36, 1
      %p59 = por %p57, %p58
      %p61 = scmp.ne.s32.totalorder %s44, %s60
      %p62 = scmp.eq.s32.totalorder %s36, 0
      %p63 = por %p61, %p62
      %s65 = sadd.s32 %s64, 1
      %p68 = scmp.eq.s32.totalorder %s30, 1
      %p69 = scmp.ne.s32.totalorder %s64, %s66
      %p70 = scmp.eq.s32.totalorder %s30, 0
      %p71 = por %p69, %p70
      %p72 = scmp.ne.s32.totalorder %s64, %s66
      %p73 = scmp.eq.s32.totalorder %s35, 1
      %p74 = por %p72, %p73
      %p75 = scmp.ne.s32.totalorder %s66, %s67
      %p76 = scmp.eq.s32.totalorder %s35, 0
      %p77 = por %p75, %p76
      %p78 = scmp.ne.s32.totalorder %s66, %s67
      %p79 = scmp.eq.s32.totalorder %s36, 1
      %p80 = por %p78, %p79
      %p82 = scmp.ne.s32.totalorder %s67, %s81
      %p83 = scmp.eq.s32.totalorder %s36, 0
      %p84 = por %p82, %p83
      %s86 = sadd.s32 %s85, 1
      %p89 = scmp.eq.s32.totalorder %s30, 1
      %p90 = scmp.ne.s32.totalorder %s85, %s87
      %p91 = scmp.eq.s32.totalorder %s30, 0
      %p92 = por %p90, %p91
      %p93 = scmp.ne.s32.totalorder %s85, %s87
      %p94 = scmp.eq.s32.totalorder %s35, 1
      %p95 = por %p93, %p94
      %p96 = scmp.ne.s32.totalorder %s87, %s88
      %p97 = scmp.eq.s32.totalorder %s35, 0
      %p98 = por %p96, %p97
      %p99 = scmp.ne.s32.totalorder %s87, %s88
      %p100 = scmp.eq.s32.totalorder %s36, 1
      %p101 = por %p99, %p100
      %p103 = scmp.ne.s32.totalorder %s88, %s102
      %p104 = scmp.eq.s32.totalorder %s36, 0
      %p105 = por %p103, %p104
      %s107 = sadd.s32 %s106, 1
      %p110 = scmp.eq.s32.totalorder %s30, 1
      %p111 = scmp.ne.s32.totalorder %s106, %s108
      %p112 = scmp.eq.s32.totalorder %s30, 0
      %p113 = por %p111, %p112
      %p114 = scmp.ne.s32.totalorder %s106, %s108
      %p115 = scmp.eq.s32.totalorder %s35, 1
      %p116 = por %p114, %p115
      %p117 = scmp.ne.s32.totalorder %s108, %s109
      %p118 = scmp.eq.s32.totalorder %s35, 0
      %p119 = por %p117, %p118
      %p120 = scmp.ne.s32.totalorder %s108, %s109
      %p121 = scmp.eq.s32.totalorder %s36, 1
      %p122 = por %p120, %p121
      %p124 = scmp.ne.s32.totalorder %s109, %s123
      %p125 = scmp.eq.s32.totalorder %s36, 0
      %p126 = por %p124, %p125
      %s128 = sadd.s32 %s127, 1
      %p131 = scmp.eq.s32.totalorder %s30, 1
      %p132 = scmp.ne.s32.totalorder %s127, %s129
      %p133 = scmp.eq.s32.totalorder %s30, 0
      %p134 = por %p132, %p133
      %p135 = scmp.ne.s32.totalorder %s127, %s129
      %p136 = scmp.eq.s32.totalorder %s35, 1
      %p137 = por %p135, %p136
      %p138 = scmp.ne.s32.totalorder %s129, %s130
      %p139 = scmp.eq.s32.totalorder %s35, 0
      %p140 = por %p138, %p139
      %p141 = scmp.ne.s32.totalorder %s129, %s130
      %p142 = scmp.eq.s32.totalorder %s36, 1
      %p143 = por %p141, %p142
      %p145 = scmp.ne.s32.totalorder %s130, %s144
      %p146 = scmp.eq.s32.totalorder %s36, 0
      %p147 = por %p145, %p146
      %s149 = sadd.s32 %s148, 1
      %p152 = scmp.eq.s32.totalorder %s30, 1
      %p153 = scmp.ne.s32.totalorder %s148, %s150
      %p154 = scmp.eq.s32.totalorder %s30, 0
      %p155 = por %p153, %p154
      %p156 = scmp.ne.s32.totalorder %s148, %s150
      %p157 = scmp.eq.s32.totalorder %s35, 1
      %p158 = por %p156, %p157
      %p159 = scmp.ne.s32.totalorder %s150, %s151
      %p160 = scmp.eq.s32.totalorder %s35, 0
      %p161 = por %p159, %p160
      %p162 = scmp.ne.s32.totalorder %s150, %s151
      %p163 = scmp.eq.s32.totalorder %s36, 1
      %p164 = por %p162, %p163
      %p166 = scmp.ne.s32.totalorder %s151, %s165
      %p167 = scmp.eq.s32.totalorder %s36, 0
      %p168 = por %p166, %p167
      %s170 = sadd.s32 %s169, 1
      %p173 = scmp.eq.s32.totalorder %s30, 1
      %p174 = scmp.ne.s32.totalorder %s169, %s171
      %p175 = scmp.eq.s32.totalorder %s30, 0
      %p176 = por %p174, %p175
      %p177 = scmp.ne.s32.totalorder %s169, %s171
      %p178 = scmp.eq.s32.totalorder %s35, 1
      %p179 = por %p177, %p178
      %p180 = scmp.ne.s32.totalorder %s171, %s172
      %p181 = scmp.eq.s32.totalorder %s35, 0
      %p182 = por %p180, %p181
      %p183 = scmp.ne.s32.totalorder %s171, %s172
      %p184 = scmp.eq.s32.totalorder %s36, 1
      %p185 = por %p183, %p184
      %p187 = scmp.ne.s32.totalorder %s172, %s186
      %p188 = scmp.eq.s32.totalorder %s36, 0
      %p189 = por %p187, %p188
      %s191 = sadd.s32 %s190, 1
      %p194 = scmp.eq.s32.totalorder %s30, 1
      %p195 = scmp.ne.s32.totalorder %s190, %s192
      %p196 = scmp.eq.s32.totalorder %s30, 0
      %p197 = por %p195, %p196
      %p198 = scmp.ne.s32.totalorder %s190, %s192
      %p199 = scmp.eq.s32.totalorder %s35, 1
      %p200 = por %p198, %p199
      %p201 = scmp.ne.s32.totalorder %s192, %s193
      %p202 = scmp.eq.s32.totalorder %s35, 0
      %p203 = por %p201, %p202
      %p204 = scmp.ne.s32.totalorder %s192, %s193
      %p205 = scmp.eq.s32.totalorder %s36, 1
      %p206 = por %p204, %p205
      %p208 = scmp.ne.s32.totalorder %s193, %s207
      %p209 = scmp.eq.s32.totalorder %s36, 0
      %p210 = por %p208, %p209
      %s212 = sadd.s32 %s211, 1
      %p215 = scmp.eq.s32.totalorder %s30, 1
      %p216 = scmp.ne.s32.totalorder %s211, %s213
      %p217 = scmp.eq.s32.totalorder %s30, 0
      %p218 = por %p216, %p217
      %p219 = scmp.ne.s32.totalorder %s211, %s213
      %p220 = scmp.eq.s32.totalorder %s35, 1
      %p221 = por %p219, %p220
      %p222 = scmp.ne.s32.totalorder %s213, %s214
      %p223 = scmp.eq.s32.totalorder %s35, 0
      %p224 = por %p222, %p223
      %p225 = scmp.ne.s32.totalorder %s213, %s214
      %p226 = scmp.eq.s32.totalorder %s36, 1
      %p227 = por %p225, %p226
      %p229 = scmp.ne.s32.totalorder %s214, %s228
      %p230 = scmp.eq.s32.totalorder %s36, 0
      %p231 = por %p229, %p230
      %s233 = sadd.s32 %s232, 1
      %p236 = scmp.eq.s32.totalorder %s30, 1
      %p237 = scmp.ne.s32.totalorder %s232, %s234
      %p238 = scmp.eq.s32.totalorder %s30, 0
      %p239 = por %p237, %p238
      %p240 = scmp.ne.s32.totalorder %s232, %s234
      %p241 = scmp.eq.s32.totalorder %s35, 1
      %p242 = por %p240, %p241
      %p243 = scmp.ne.s32.totalorder %s234, %s235
      %p244 = scmp.eq.s32.totalorder %s35, 0
      %p245 = por %p243, %p244
      %p246 = scmp.ne.s32.totalorder %s234, %s235
      %p247 = scmp.eq.s32.totalorder %s36, 1
      %p248 = por %p246, %p247
      %p250 = scmp.ne.s32.totalorder %s235, %s249
      %p251 = scmp.eq.s32.totalorder %s36, 0
      %p252 = por %p250, %p251
      %s254 = sadd.s32 %s253, 1
      %p257 = scmp.eq.s32.totalorder %s30, 1
      %p258 = scmp.ne.s32.totalorder %s253, %s255
      %p259 = scmp.eq.s32.totalorder %s30, 0
      %p260 = por %p258, %p259
      %p261 = scmp.ne.s32.totalorder %s253, %s255
      %p262 = scmp.eq.s32.totalorder %s35, 1
      %p263 = por %p261, %p262
      %p264 = scmp.ne.s32.totalorder %s255, %s256
      %p265 = scmp.eq.s32.totalorder %s35, 0
      %p266 = por %p264, %p265
      %p267 = scmp.ne.s32.totalorder %s255, %s256
      %p268 = scmp.eq.s32.totalorder %s36, 1
      %p269 = por %p267, %p268
      %p271 = scmp.ne.s32.totalorder %s256, %s270
      %p272 = scmp.eq.s32.totalorder %s36, 0
      %p273 = por %p271, %p272
      %s275 = sadd.s32 %s274, 1
      %p278 = scmp.eq.s32.totalorder %s30, 1
      %p279 = scmp.ne.s32.totalorder %s274, %s276
      %p280 = scmp.eq.s32.totalorder %s30, 0
      %p281 = por %p279, %p280
      %p282 = scmp.ne.s32.totalorder %s274, %s276
      %p283 = scmp.eq.s32.totalorder %s35, 1
      %p284 = por %p282, %p283
      %p285 = scmp.ne.s32.totalorder %s276, %s277
      %p286 = scmp.eq.s32.totalorder %s35, 0
      %p287 = por %p285, %p286
      %p288 = scmp.ne.s32.totalorder %s276, %s277
      %p289 = scmp.eq.s32.totalorder %s36, 1
      %p290 = por %p288, %p289
      %p292 = scmp.ne.s32.totalorder %s277, %s291
      %p293 = scmp.eq.s32.totalorder %s36, 0
      %p294 = por %p292, %p293
      %s296 = sadd.s32 %s295, 1
      %p299 = scmp.eq.s32.totalorder %s30, 1
      %p300 = scmp.ne.s32.totalorder %s295, %s297
      %p301 = scmp.eq.s32.totalorder %s30, 0
      %p302 = por %p300, %p301
      %p303 = scmp.ne.s32.totalorder %s295, %s297
      %p304 = scmp.eq.s32.totalorder %s35, 1
      %p305 = por %p303, %p304
      %p306 = scmp.ne.s32.totalorder %s297, %s298
      %p307 = scmp.eq.s32.totalorder %s35, 0
      %p308 = por %p306, %p307
      %p309 = scmp.ne.s32.totalorder %s297, %s298
      %p310 = scmp.eq.s32.totalorder %s36, 1
      %p311 = por %p309, %p310
      %p313 = scmp.ne.s32.totalorder %s298, %s312
      %p314 = scmp.eq.s32.totalorder %s36, 0
      %p315 = por %p313, %p314
      %s317 = sadd.s32 %s316, 1
      %p320 = scmp.eq.s32.totalorder %s30, 1
      %p321 = scmp.ne.s32.totalorder %s316, %s318
      %p322 = scmp.eq.s32.totalorder %s30, 0
      %p323 = por %p321, %p322
      %p324 = scmp.ne.s32.totalorder %s316, %s318
      %p325 = scmp.eq.s32.totalorder %s35, 1
      %p326 = por %p324, %p325
      %p327 = scmp.ne.s32.totalorder %s318, %s319
      %p328 = scmp.eq.s32.totalorder %s35, 0
      %p329 = por %p327, %p328
      %p330 = scmp.ne.s32.totalorder %s318, %s319
      %p331 = scmp.eq.s32.totalorder %s36, 1
      %p332 = por %p330, %p331
      %p334 = scmp.ne.s32.totalorder %s319, %s333
      %p335 = scmp.eq.s32.totalorder %s36, 0
      %p336 = por %p334, %p335
      %s338 = sadd.s32 %s337, 1
      %p341 = scmp.eq.s32.totalorder %s30, 1
      %p342 = scmp.ne.s32.totalorder %s337, %s339
      %p343 = scmp.eq.s32.totalorder %s30, 0
      %p344 = por %p342, %p343
      %p345 = scmp.ne.s32.totalorder %s337, %s339
      %p346 = scmp.eq.s32.totalorder %s35, 1
      %p347 = por %p345, %p346
      %p348 = scmp.ne.s32.totalorder %s339, %s340
      %p349 = scmp.eq.s32.totalorder %s35, 0
      %p350 = por %p348, %p349
      %p351 = scmp.ne.s32.totalorder %s339, %s340
      %p352 = scmp.eq.s32.totalorder %s36, 1
      %p353 = por %p351, %p352
      %p355 = scmp.ne.s32.totalorder %s340, %s354
      %p356 = scmp.eq.s32.totalorder %s36, 0
      %p357 = por %p355, %p356
      %s359 = sadd.s32 %s358, 1
      %p362 = scmp.eq.s32.totalorder %s30, 1
      %p363 = scmp.ne.s32.totalorder %s358, %s360
      %p364 = scmp.eq.s32.totalorder %s30, 0
      %p365 = por %p363, %p364
      %p366 = scmp.ne.s32.totalorder %s358, %s360
      %p367 = scmp.eq.s32.totalorder %s35, 1
      %p368 = por %p366, %p367
      %p369 = scmp.ne.s32.totalorder %s360, %s361
      %p370 = scmp.eq.s32.totalorder %s35, 0
      %p371 = por %p369, %p370
      %p372 = scmp.ne.s32.totalorder %s360, %s361
      %p373 = scmp.eq.s32.totalorder %s36, 1
      %p374 = por %p372, %p373
      %p376 = scmp.ne.s32.totalorder %s361, %s375
      %p377 = scmp.eq.s32.totalorder %s36, 0
      %p378 = por %p376, %p377
      %s379 = ssub.s32 %s30, %s37
      %p380 = scmp.eq.s32.totalorder %s379, 0
      %s382 = sadd.s32 %s381, 1
      %s383 = scalar_select %p380, %s381, %s382
      %p386 = pneg %p380
      %p387 = scmp.eq.s32.totalorder %s30, 1
      %p388 = por %p386, %p387
      %p389 = scmp.ne.s32.totalorder %s381, %s384
      %p390 = scmp.eq.s32.totalorder %s30, 0
      %p391 = por %p389, %p390
      %p392 = scmp.ne.s32.totalorder %s381, %s384
      %p393 = scmp.eq.s32.totalorder %s35, 1
      %p394 = por %p392, %p393
      %p395 = scmp.ne.s32.totalorder %s384, %s385
      %p396 = scmp.eq.s32.totalorder %s35, 0
      %p397 = por %p395, %p396
      %p398 = scmp.ne.s32.totalorder %s384, %s385
      %p399 = scmp.eq.s32.totalorder %s36, 1
      %p400 = por %p398, %p399
      %p402 = scmp.ne.s32.totalorder %s385, %s401
      %p403 = scmp.eq.s32.totalorder %s36, 0
      %p404 = por %p402, %p403
      %p405 = scmp.le.s32.totalorder 1, %s30
      %p406 = scmp.lt.s32.totalorder %s30, 3
      %p407 = pnand %p405, %p406
      %p408 = pneg %p407
      // Predicated region
      $region9: #{cnnlayer_forward.1} parent=5 // pred_check
        _
      $region10: #{cnnlayer_forward.1} parent=5 // pred_check_branch
        %410 = sbr.rel (%p407) target = $region12
      $region11: #{cnnlayer_forward.1} parent=5 // pred_region
        %s411 = ssub.s32 %s30, 1
        // Predicated region
        $region13: #{cnnlayer_forward.1} parent=11 // pred_check
          %p412 = pneg %p77
        $region14: #{cnnlayer_forward.1} parent=11 // pred_check_branch
          %414 = sbr.rel (%p412) target = $region16
        $region15: #{cnnlayer_forward.1} parent=11 // pred_region
          %s416 = ssub.s32 448, 448
          %417 = vsyncadd [#allocation13], %s416
          %s418 = sshll.u32 [#allocation12], 4
          %s419 = int_to_ptr.vmem [resolvable:$true] %s418
          %424 = dma.hbm_to_vmem [thread:$0]  %s1, 448, %s419, [#allocation13], 64, 64, 4
        $region16: #{cnnlayer_forward.1} parent=11 // pred_fallthru
          _
        // Predicated region
        $region17: #{cnnlayer_forward.1} parent=11 // pred_check
          %p425 = pneg %p98
        $region18: #{cnnlayer_forward.1} parent=11 // pred_check_branch
          %427 = sbr.rel (%p425) target = $region20
        $region19: #{cnnlayer_forward.1} parent=11 // pred_region
          %s429 = ssub.s32 64, 64
          %430 = vsyncadd [#allocation15], %s429
          %s432 = sshll.u32 [#allocation14], 4
          %s433 = int_to_ptr.vmem [resolvable:$true] %s432
          %435 = dma.hbm_to_vmem [thread:$0]  %s2, 64, %s433, [#allocation15]
        $region20: #{cnnlayer_forward.1} parent=11 // pred_fallthru
          _
        // Predicated region
        $region21: #{cnnlayer_forward.1} parent=11 // pred_check
          %p436 = pneg %p119
        $region22: #{cnnlayer_forward.1} parent=11 // pred_check_branch
          %438 = sbr.rel (%p436) target = $region24
        $region23: #{cnnlayer_forward.1} parent=11 // pred_region
          %s440 = ssub.s32 64, 64
          %441 = vsyncadd [#allocation15], %s440
          %s443 = sshll.u32 [#allocation16], 4
          %s444 = int_to_ptr.vmem [resolvable:$true] %s443
          %446 = dma.hbm_to_vmem [thread:$0]  %s3, 64, %s444, [#allocation15]
        $region24: #{cnnlayer_forward.1} parent=11 // pred_fallthru
          _
        // Predicated region
        $region25: #{cnnlayer_forward.1} parent=11 // pred_check
          %p447 = pneg %p140
        $region26: #{cnnlayer_forward.1} parent=11 // pred_check_branch
          %449 = sbr.rel (%p447) target = $region28
        $region27: #{cnnlayer_forward.1} parent=11 // pred_region
          %s451 = ssub.s32 256, 256
          %452 = vsyncadd [#allocation18], %s451
          %s453 = sshll.u32 [#allocation17], 4
          %s454 = int_to_ptr.vmem [resolvable:$true] %s453
          %459 = dma.hbm_to_vmem [thread:$0]  %s4, 256, %s454, [#allocation18], 64, 64, 4
        $region28: #{cnnlayer_forward.1} parent=11 // pred_fallthru
          _
        // Predicated region
        $region29: #{cnnlayer_forward.1} parent=11 // pred_check
          %p460 = pneg %p161
        $region30: #{cnnlayer_forward.1} parent=11 // pred_check_branch
          %462 = sbr.rel (%p460) target = $region32
        $region31: #{cnnlayer_forward.1} parent=11 // pred_region
          %s464 = ssub.s32 16, 16
          %465 = vsyncadd [#allocation18], %s464
          %s467 = sshll.u32 [#allocation19], 4
          %s468 = int_to_ptr.vmem [resolvable:$true] %s467
          %470 = dma.hbm_to_vmem [thread:$0]  %s5, 16, %s468, [#allocation18]
        $region32: #{cnnlayer_forward.1} parent=11 // pred_fallthru
          _
        // Predicated region
        $region33: #{cnnlayer_forward.1} parent=11 // pred_check
          %p471 = pneg %p182
        $region34: #{cnnlayer_forward.1} parent=11 // pred_check_branch
          %473 = sbr.rel (%p471) target = $region36
        $region35: #{cnnlayer_forward.1} parent=11 // pred_region
          %s475 = ssub.s32 16, 16
          %476 = vsyncadd [#allocation21], %s475
          %s478 = sshll.u32 [#allocation20], 4
          %s479 = int_to_ptr.vmem [resolvable:$true] %s478
          %481 = dma.hbm_to_vmem [thread:$0]  %s6, 16, %s479, [#allocation21]
        $region36: #{cnnlayer_forward.1} parent=11 // pred_fallthru
          _
        // Predicated region
        $region37: #{cnnlayer_forward.1} parent=11 // pred_check
          %p482 = pneg %p203
        $region38: #{cnnlayer_forward.1} parent=11 // pred_check_branch
          %484 = sbr.rel (%p482) target = $region40
        $region39: #{cnnlayer_forward.1} parent=11 // pred_region
          _
        $region40: #{cnnlayer_forward.1} parent=11 // pred_fallthru
          _
        // Predicated region
        $region41: #{cnnlayer_forward.1} parent=11 // pred_check
          %p485 = pneg %p224
        $region42: #{cnnlayer_forward.1} parent=11 // pred_check_branch
          %487 = sbr.rel (%p485) target = $region44
        $region43: #{cnnlayer_forward.1} parent=11 // pred_region
          %s489 = ssub.s32 16, 16
          %490 = vsyncadd [#allocation21], %s489
          %s492 = sshll.u32 [#allocation22], 4
          %s493 = int_to_ptr.vmem [resolvable:$true] %s492
          %495 = dma.hbm_to_vmem [thread:$0]  %s8, 16, %s493, [#allocation21]
        $region44: #{cnnlayer_forward.1} parent=11 // pred_fallthru
          _
        // Predicated region
        $region45: #{cnnlayer_forward.1} parent=11 // pred_check
          %p496 = pneg %p245
        $region46: #{cnnlayer_forward.1} parent=11 // pred_check_branch
          %498 = sbr.rel (%p496) target = $region48
        $region47: #{cnnlayer_forward.1} parent=11 // pred_region
          %s500 = ssub.s32 16, 16
          %501 = vsyncadd [#allocation24], %s500
          %s503 = sshll.u32 [#allocation23], 4
          %s504 = int_to_ptr.vmem [resolvable:$true] %s503
          %506 = dma.hbm_to_vmem [thread:$0]  %s9, 16, %s504, [#allocation24]
        $region48: #{cnnlayer_forward.1} parent=11 // pred_fallthru
          _
        // Predicated region
        $region49: #{cnnlayer_forward.1} parent=11 // pred_check
          %p507 = pneg %p266
        $region50: #{cnnlayer_forward.1} parent=11 // pred_check_branch
          %509 = sbr.rel (%p507) target = $region52
        $region51: #{cnnlayer_forward.1} parent=11 // pred_region
          %s511 = ssub.s32 1792, 1792
          %512 = vsyncadd [#allocation24], %s511
          %s513 = sshll.u32 [#allocation25], 4
          %s514 = int_to_ptr.vmem [resolvable:$true] %s513
          %519 = dma.hbm_to_vmem [thread:$0]  %s10, 1792, %s514, [#allocation24], 64, 64, 4
        $region52: #{cnnlayer_forward.1} parent=11 // pred_fallthru
          _
        // Predicated region
        $region53: #{cnnlayer_forward.1} parent=11 // pred_check
          %p520 = pneg %p287
        $region54: #{cnnlayer_forward.1} parent=11 // pred_check_branch
          %522 = sbr.rel (%p520) target = $region56
        $region55: #{cnnlayer_forward.1} parent=11 // pred_region
          %s524 = ssub.s32 16, 16
          %525 = vsyncadd [#allocation27], %s524
          %s527 = sshll.u32 [#allocation26], 4
          %s528 = int_to_ptr.vmem [resolvable:$true] %s527
          %530 = dma.hbm_to_vmem [thread:$0]  %s11, 16, %s528, [#allocation27]
        $region56: #{cnnlayer_forward.1} parent=11 // pred_fallthru
          _
        // Predicated region
        $region57: #{cnnlayer_forward.1} parent=11 // pred_check
          %p531 = pneg %p308
        $region58: #{cnnlayer_forward.1} parent=11 // pred_check_branch
          %533 = sbr.rel (%p531) target = $region60
        $region59: #{cnnlayer_forward.1} parent=11 // pred_region
          %s535 = ssub.s32 16, 16
          %536 = vsyncadd [#allocation27], %s535
          %s538 = sshll.u32 [#allocation28], 4
          %s539 = int_to_ptr.vmem [resolvable:$true] %s538
          %541 = dma.hbm_to_vmem [thread:$0]  %s12, 16, %s539, [#allocation27]
        $region60: #{cnnlayer_forward.1} parent=11 // pred_fallthru
          _
        // Predicated region
        $region61: #{cnnlayer_forward.1} parent=11 // pred_check
          %p542 = pneg %p329
        $region62: #{cnnlayer_forward.1} parent=11 // pred_check_branch
          %544 = sbr.rel (%p542) target = $region64
        $region63: #{cnnlayer_forward.1} parent=11 // pred_region
          %s546 = ssub.s32 3584, 3584
          %547 = vsyncadd [#allocation30], %s546
          %s548 = sshll.u32 [#allocation29], 4
          %s549 = int_to_ptr.vmem [resolvable:$true] %s548
          %554 = dma.hbm_to_vmem [thread:$0]  %s13, 3584, %s549, [#allocation30], 64, 64, 4
        $region64: #{cnnlayer_forward.1} parent=11 // pred_fallthru
          _
        // Predicated region
        $region65: #{cnnlayer_forward.1} parent=11 // pred_check
          %p555 = pneg %p350
        $region66: #{cnnlayer_forward.1} parent=11 // pred_check_branch
          %557 = sbr.rel (%p555) target = $region68
        $region67: #{cnnlayer_forward.1} parent=11 // pred_region
          %s559 = ssub.s32 16, 16
          %560 = vsyncadd [#allocation30], %s559
          %s562 = sshll.u32 [#allocation31], 4
          %s563 = int_to_ptr.vmem [resolvable:$true] %s562
          %565 = dma.hbm_to_vmem [thread:$0]  %s14, 16, %s563, [#allocation30]
        $region68: #{cnnlayer_forward.1} parent=11 // pred_fallthru
          _
        // Predicated region
        $region69: #{cnnlayer_forward.1} parent=11 // pred_check
          %p566 = pneg %p371
        $region70: #{cnnlayer_forward.1} parent=11 // pred_check_branch
          %568 = sbr.rel (%p566) target = $region72
        $region71: #{cnnlayer_forward.1} parent=11 // pred_region
          %s570 = ssub.s32 16, 16
          %571 = vsyncadd [#allocation33], %s570
          %s573 = sshll.u32 [#allocation32], 4
          %s574 = int_to_ptr.vmem [resolvable:$true] %s573
          %576 = dma.hbm_to_vmem [thread:$0]  %s15, 16, %s574, [#allocation33]
        $region72: #{cnnlayer_forward.1} parent=11 // pred_fallthru
          _
      $region12: #{cnnlayer_forward.1} parent=5 // pred_fallthru
        _
      %p577 = scmp.lt.s32.totalorder %s30, 2
      // Predicated region
      $region73: #{cnnlayer_forward.1} parent=5 // pred_check
        %p578 = pneg %p577
      $region74: #{cnnlayer_forward.1} parent=5 // pred_check_branch
        %580 = sbr.rel (%p578) target = $region76
      $region75: #{cnnlayer_forward.1} parent=5 // pred_region
        // Predicated region
        $region77: #{cnnlayer_forward.1} parent=75 // pred_check
          %p581 = pneg %p50
        $region78: #{cnnlayer_forward.1} parent=75 // pred_check_branch
          %583 = sbr.rel (%p581) target = $region80
        $region79: #{cnnlayer_forward.1} parent=75 // pred_region
          %p584 = scmp.lt.s32.totalorder %s30, 1
          %s585 = scalar_select %p584, %s30, 1
          %s586 = smul.addr %s585, 2
          %s587 = scalar_lea.vmem %s0, %s586
        $region80: #{cnnlayer_forward.1} parent=75 // pred_fallthru
          _
      $region76: #{cnnlayer_forward.1} parent=5 // pred_fallthru
        _
      %p588 = scmp.le.s32.totalorder 1, %s30
      %p589 = scmp.lt.s32.totalorder %s30, 3
      %p590 = pnand %p588, %p589
      %p591 = pneg %p590
      // Predicated region
      $region81: #{cnnlayer_forward.1} parent=5 // pred_check
        _
      $region82: #{cnnlayer_forward.1} parent=5 // pred_check_branch
        %593 = sbr.rel (%p590) target = $region84
      $region83: #{cnnlayer_forward.1} parent=5 // pred_region
        %s594 = ssub.s32 %s30, 1
        // Predicated region
        $region85: #{cnnlayer_forward.1} parent=83 // pred_check
          %p595 = pneg %p77
        $region86: #{cnnlayer_forward.1} parent=83 // pred_check_branch
          %597 = sbr.rel (%p595) target = $region88
        $region87: #{cnnlayer_forward.1} parent=83 // pred_region
          %598 = dma.done [#allocation13], 448
        $region88: #{cnnlayer_forward.1} parent=83 // pred_fallthru
          _
        // Predicated region
        $region89: #{cnnlayer_forward.1} parent=83 // pred_check
          %p599 = pneg %p98
        $region90: #{cnnlayer_forward.1} parent=83 // pred_check_branch
          %601 = sbr.rel (%p599) target = $region92
        $region91: #{cnnlayer_forward.1} parent=83 // pred_region
          %602 = dma.done [#allocation15], 64
        $region92: #{cnnlayer_forward.1} parent=83 // pred_fallthru
          _
        // Predicated region
        $region93: #{cnnlayer_forward.1} parent=83 // pred_check
          %p603 = pneg %p119
        $region94: #{cnnlayer_forward.1} parent=83 // pred_check_branch
          %605 = sbr.rel (%p603) target = $region96
        $region95: #{cnnlayer_forward.1} parent=83 // pred_region
          %606 = dma.done [#allocation15], 64
        $region96: #{cnnlayer_forward.1} parent=83 // pred_fallthru
          _
        // Predicated region
        $region97: #{cnnlayer_forward.1} parent=83 // pred_check
          %p607 = pneg %p140
        $region98: #{cnnlayer_forward.1} parent=83 // pred_check_branch
          %609 = sbr.rel (%p607) target = $region100
        $region99: #{cnnlayer_forward.1} parent=83 // pred_region
          %610 = dma.done [#allocation18], 256
        $region100: #{cnnlayer_forward.1} parent=83 // pred_fallthru
          _
        // Predicated region
        $region101: #{cnnlayer_forward.1} parent=83 // pred_check
          %p611 = pneg %p161
        $region102: #{cnnlayer_forward.1} parent=83 // pred_check_branch
          %613 = sbr.rel (%p611) target = $region104
        $region103: #{cnnlayer_forward.1} parent=83 // pred_region
          %614 = dma.done [#allocation18], 16
        $region104: #{cnnlayer_forward.1} parent=83 // pred_fallthru
          _
        // Predicated region
        $region105: #{cnnlayer_forward.1} parent=83 // pred_check
          %p615 = pneg %p182
        $region106: #{cnnlayer_forward.1} parent=83 // pred_check_branch
          %617 = sbr.rel (%p615) target = $region108
        $region107: #{cnnlayer_forward.1} parent=83 // pred_region
          %618 = dma.done [#allocation21], 16
        $region108: #{cnnlayer_forward.1} parent=83 // pred_fallthru
          _
        // Predicated region
        $region109: #{cnnlayer_forward.1} parent=83 // pred_check
          %p619 = pneg %p224
        $region110: #{cnnlayer_forward.1} parent=83 // pred_check_branch
          %621 = sbr.rel (%p619) target = $region112
        $region111: #{cnnlayer_forward.1} parent=83 // pred_region
          %622 = dma.done [#allocation21], 16
        $region112: #{cnnlayer_forward.1} parent=83 // pred_fallthru
          _
        // Predicated region
        $region113: #{cnnlayer_forward.1} parent=83 // pred_check
          %p623 = pneg %p245
        $region114: #{cnnlayer_forward.1} parent=83 // pred_check_branch
          %625 = sbr.rel (%p623) target = $region116
        $region115: #{cnnlayer_forward.1} parent=83 // pred_region
          %626 = dma.done [#allocation24], 16
        $region116: #{cnnlayer_forward.1} parent=83 // pred_fallthru
          _
        // Predicated region
        $region117: #{cnnlayer_forward.1} parent=83 // pred_check
          %p627 = pneg %p266
        $region118: #{cnnlayer_forward.1} parent=83 // pred_check_branch
          %629 = sbr.rel (%p627) target = $region120
        $region119: #{cnnlayer_forward.1} parent=83 // pred_region
          %630 = dma.done [#allocation24], 1792
        $region120: #{cnnlayer_forward.1} parent=83 // pred_fallthru
          _
        // Predicated region
        $region121: #{cnnlayer_forward.1} parent=83 // pred_check
          %p631 = pneg %p287
        $region122: #{cnnlayer_forward.1} parent=83 // pred_check_branch
          %633 = sbr.rel (%p631) target = $region124
        $region123: #{cnnlayer_forward.1} parent=83 // pred_region
          %634 = dma.done [#allocation27], 16
        $region124: #{cnnlayer_forward.1} parent=83 // pred_fallthru
          _
        // Predicated region
        $region125: #{cnnlayer_forward.1} parent=83 // pred_check
          %p635 = pneg %p308
        $region126: #{cnnlayer_forward.1} parent=83 // pred_check_branch
          %637 = sbr.rel (%p635) target = $region128
        $region127: #{cnnlayer_forward.1} parent=83 // pred_region
          %638 = dma.done [#allocation27], 16
        $region128: #{cnnlayer_forward.1} parent=83 // pred_fallthru
          _
        // Predicated region
        $region129: #{cnnlayer_forward.1} parent=83 // pred_check
          %p639 = pneg %p329
        $region130: #{cnnlayer_forward.1} parent=83 // pred_check_branch
          %641 = sbr.rel (%p639) target = $region132
        $region131: #{cnnlayer_forward.1} parent=83 // pred_region
          %642 = dma.done [#allocation30], 3584
        $region132: #{cnnlayer_forward.1} parent=83 // pred_fallthru
          _
        // Predicated region
        $region133: #{cnnlayer_forward.1} parent=83 // pred_check
          %p643 = pneg %p350
        $region134: #{cnnlayer_forward.1} parent=83 // pred_check_branch
          %645 = sbr.rel (%p643) target = $region136
        $region135: #{cnnlayer_forward.1} parent=83 // pred_region
          %646 = dma.done [#allocation30], 16
        $region136: #{cnnlayer_forward.1} parent=83 // pred_fallthru
          _
        // Predicated region
        $region137: #{cnnlayer_forward.1} parent=83 // pred_check
          %p647 = pneg %p371
        $region138: #{cnnlayer_forward.1} parent=83 // pred_check_branch
          %649 = sbr.rel (%p647) target = $region140
        $region139: #{cnnlayer_forward.1} parent=83 // pred_region
          %650 = dma.done [#allocation33], 16
        $region140: #{cnnlayer_forward.1} parent=83 // pred_fallthru
          _
        %p651 = scmp.lt.s32.totalorder %s35, 1
        %s652 = scalar_select %p651, %s35, 1
        %s653 = smul.addr %s652, 2
        %s654 = scalar_lea.vmem %s0, %s653
        %p655 = pneg %p56
        %p656 = pneg %p53
        %p657 = pneg %p77
        %p658 = pneg %p74
        %p659 = pneg %p98
        %p660 = pneg %p95
        %p661 = pneg %p119
        %p662 = pneg %p116
        %p663 = pneg %p140
        %p664 = pneg %p137
        %p665 = pneg %p161
        %p666 = pneg %p158
        %p667 = pneg %p182
        %p668 = pneg %p179
        %p669 = pneg %p203
        %p670 = pneg %p200
        %p671 = pneg %p224
        %p672 = pneg %p221
        %p673 = pneg %p245
        %p674 = pneg %p242
        %p675 = pneg %p266
        %p676 = pneg %p263
        %p677 = pneg %p287
        %p678 = pneg %p284
        %p679 = pneg %p308
        %p680 = pneg %p305
        %p681 = pneg %p329
        %p682 = pneg %p326
        %p683 = pneg %p350
        %p684 = pneg %p347
        %p685 = pneg %p371
        %p686 = pneg %p368
        %p687 = pneg %p397
        %p688 = pneg %p394
        %p689 = scmp.lt.s32.totalorder %s35, 1
        %s690 = scalar_select %p689, %s35, 1
        %s691 = smul.addr %s690, 16
        %s692 = smul.addr %s691, 8
        %s693 = scalar_lea.vmem %s16, %s692
        %p694 = scmp.lt.s32.totalorder %s35, 1
        %s695 = scalar_select %p694, %s35, 1
        %s696 = smul.addr %s695, 2
        %s697 = scalar_lea.vmem %s0, %s696
        %p698 = scmp.lt.s32.totalorder %s35, 1
        %s699 = scalar_select %p698, %s35, 1
        %s700 = smul.addr %s699, 16
        %s701 = smul.addr %s700, 8
        %s702 = scalar_lea.vmem %s16, %s701
        %v704 = vlaneseq
        %vm705 = vcmp.ge.s32.totalorder %v704, 0
        %vm706 = vcmp.lt.s32.totalorder %v704, 1
        %vm707 = vmand %vm705, %vm706
        %708 = vst.msk [vmem:[#allocation2] sm:$0x1] %vm707, 0.0
        %vm709 = vcmp.ge.s32.totalorder %v704, 1
        %vm710 = vcmp.lt.s32.totalorder %v704, 2
        %vm711 = vmand %vm709, %vm710
        %712 = vst.msk [vmem:[#allocation2 + $0x2] sm:$0x1] %vm711, 0.0
        %v713 = vld [vmem:[%s697] sm:$0x3]
        %715 = vrot.lane.b32.xlu0 %v713, 1
        %v716 = vpop.permute.xlu0 %715
        %v717 = vrot.slane %v716, 7
        %vm718 = vcmask 7168
        %v719 = vsel %vm718, %v717, %v716
        %vm721 = vcmp.lt.s32.totalorder %v704, 257
        %vm722 = vmand %vm709, %vm721
        %723 = vst.msk [vmem:[#allocation2] sm:$0x7] %vm722, %v719
        %v724 = vld [vmem:[#allocation2] sm:$0x3]
        %v725 = vld [vmem:[#allocation12] sm:$0xf]
        %v727 = vlaneseq
        %v728 = vshrl.u32 %v727, 7
        %v729 = vsub.s32 0, %v728
        %v730 = vrot.slane %v724, %v729
        %v731 = vlaneseq
        %v732 = vshrl.u32 %v731, 7
        %v733 = vsub.s32 1, %v732
        %v734 = vrot.slane %v724, %v733
        %738 = vset.pattern.permute.xlu0 0
        %739 = vperm.xlu0 %738, %v725
        %v740 = vpop.permute.xlu0 %739
        %v742 = vmul.f32 %v730, %v740
        %v743 = vmul.f32 %v734, %v740
        %s744 = scalar_lea.vmem [#allocation12], 4
        %v745 = vld [vmem:[%s744] sm:$0xf]
        %747 = vset.pattern.permute.xlu0 0
        %748 = vperm.xlu0 %747, %v745
        %v749 = vpop.permute.xlu0 %748
        %v751 = vmul.f32 %v730, %v749
        %v752 = vmul.f32 %v734, %v749
        %755 = vrot.lane.b32.xlu0 %v751, 127
        %v756 = vpop.permute.xlu0 %755
        %757 = vrot.lane.b32.xlu0 %v752, 127
        %v758 = vpop.permute.xlu0 %757
        %vm759 = vcmask 1039360
        %v760 = vsel %vm759, %v756, %v758
        %v763 = vadd.f32 %v742, %v760
        %v764 = vadd.f32 %v743, %v758
        %s765 = scalar_lea.vmem [#allocation12], 8
        %v766 = vld [vmem:[%s765] sm:$0xf]
        %768 = vset.pattern.permute.xlu0 0
        %769 = vperm.xlu0 %768, %v766
        %v770 = vpop.permute.xlu0 %769
        %v772 = vmul.f32 %v730, %v770
        %v773 = vmul.f32 %v734, %v770
        %776 = vrot.lane.b32.xlu0 %v772, 126
        %v777 = vpop.permute.xlu0 %776
        %778 = vrot.lane.b32.xlu0 %v773, 126
        %v779 = vpop.permute.xlu0 %778
        %vm780 = vcmask 1031168
        %v781 = vsel %vm780, %v777, %v779
        %v784 = vadd.f32 %v763, %v781
        %v785 = vadd.f32 %v764, %v779
        %s786 = scalar_lea.vmem [#allocation12], 12
        %v787 = vld [vmem:[%s786] sm:$0xf]
        %789 = vset.pattern.permute.xlu0 0
        %790 = vperm.xlu0 %789, %v787
        %v791 = vpop.permute.xlu0 %790
        %v793 = vmul.f32 %v730, %v791
        %v794 = vmul.f32 %v734, %v791
        %797 = vrot.lane.b32.xlu0 %v793, 125
        %v798 = vpop.permute.xlu0 %797
        %799 = vrot.lane.b32.xlu0 %v794, 125
        %v800 = vpop.permute.xlu0 %799
        %vm801 = vcmask 1022976
        %v802 = vsel %vm801, %v798, %v800
        %v805 = vadd.f32 %v784, %v802
        %v806 = vadd.f32 %v785, %v800
        %s807 = scalar_lea.vmem [#allocation12], 16
        %v808 = vld [vmem:[%s807] sm:$0xf]
        %810 = vset.pattern.permute.xlu0 0
        %811 = vperm.xlu0 %810, %v808
        %v812 = vpop.permute.xlu0 %811
        %v814 = vmul.f32 %v730, %v812
        %v815 = vmul.f32 %v734, %v812
        %818 = vrot.lane.b32.xlu0 %v814, 124
        %v819 = vpop.permute.xlu0 %818
        %820 = vrot.lane.b32.xlu0 %v815, 124
        %v821 = vpop.permute.xlu0 %820
        %vm822 = vcmask 1014784
        %v823 = vsel %vm822, %v819, %v821
        %v826 = vadd.f32 %v805, %v823
        %v827 = vadd.f32 %v806, %v821
        %v828 = vld [vmem:[#allocation2] sm:$0x7]
        %s829 = scalar_lea.vmem [#allocation12], 20
        %v830 = vld [vmem:[%s829] sm:$0xf]
        %v832 = vlaneseq
        %v833 = vshrl.u32 %v832, 7
        %v834 = vsub.s32 0, %v833
        %v835 = vrot.slane %v828, %v834
        %v836 = vlaneseq
        %v837 = vshrl.u32 %v836, 7
        %v838 = vsub.s32 1, %v837
        %v839 = vrot.slane %v828, %v838
        %v840 = vlaneseq
        %v841 = vshrl.u32 %v840, 7
        %v842 = vsub.s32 2, %v841
        %v843 = vrot.slane %v828, %v842
        %848 = vset.pattern.permute.xlu0 0
        %849 = vperm.xlu0 %848, %v830
        %v850 = vpop.permute.xlu0 %849
        %v852 = vmul.f32 %v835, %v850
        %v853 = vmul.f32 %v839, %v850
        %v854 = vmul.f32 %v843, %v850
        %858 = vrot.lane.b32.xlu0 %v852, 123
        %v859 = vpop.permute.xlu0 %858
        %860 = vrot.lane.b32.xlu0 %v853, 123
        %v861 = vpop.permute.xlu0 %860
        %862 = vrot.lane.b32.xlu0 %v854, 123
        %v863 = vpop.permute.xlu0 %862
        %vm864 = vcmask 1006592
        %v865 = vsel %vm864, %v859, %v861
        %v866 = vsel %vm864, %v861, %v863
        %v869 = vadd.f32 %v826, %v865
        %v870 = vadd.f32 %v827, %v866
        %s871 = scalar_lea.vmem [#allocation12], 24
        %v872 = vld [vmem:[%s871] sm:$0xf]
        %874 = vset.pattern.permute.xlu0 0
        %875 = vperm.xlu0 %874, %v872
        %v876 = vpop.permute.xlu0 %875
        %v878 = vmul.f32 %v835, %v876
        %v879 = vmul.f32 %v839, %v876
        %v880 = vmul.f32 %v843, %v876
        %884 = vrot.lane.b32.xlu0 %v878, 122
        %v885 = vpop.permute.xlu0 %884
        %886 = vrot.lane.b32.xlu0 %v879, 122
        %v887 = vpop.permute.xlu0 %886
        %888 = vrot.lane.b32.xlu0 %v880, 122
        %v889 = vpop.permute.xlu0 %888
        %vm890 = vcmask 998400
        %v891 = vsel %vm890, %v885, %v887
        %v892 = vsel %vm890, %v887, %v889
        %v895 = vadd.f32 %v869, %v891
        %v896 = vadd.f32 %v870, %v892
        %v897 = vld [vmem:[#allocation14] sm:$0xf]
        %899 = vset.pattern.permute.xlu0 0
        %900 = vperm.xlu0 %899, %v897
        %v901 = vpop.permute.xlu0 %900
        %v903 = vmul.f32 %v895, %v901
        %v904 = vmul.f32 %v896, %v901
        %v905 = vld [vmem:[#allocation16] sm:$0xf]
        %907 = vset.pattern.permute.xlu0 0
        %908 = vperm.xlu0 %907, %v905
        %v909 = vpop.permute.xlu0 %908
        %v911 = vadd.f32 %v903, %v909
        %v912 = vadd.f32 %v904, %v909
        %v913 = vmax.f32 %v911, 0.0
        %v914 = vmax.f32 %v912, 0.0
        %915 = vxpose.xlu0.b32.start [1/16] %v913, 128
        %916 = vxpose.xlu0.b32.cont [2/16] 0.0, 128
        %917 = vxpose.xlu0.b32.cont [3/16] 0.0, 128
        %918 = vxpose.xlu0.b32.cont [4/16] 0.0, 128
        %919 = vxpose.xlu0.b32.cont [5/16] 0.0, 128
        %920 = vxpose.xlu0.b32.cont [6/16] 0.0, 128
        %921 = vxpose.xlu0.b32.cont [7/16] 0.0, 128
        %922 = vxpose.xlu0.b32.cont [8/16] 0.0, 128
        %923 = vxpose.xlu0.b32.cont [9/16] 0.0, 128
        %924 = vxpose.xlu0.b32.cont [10/16] 0.0, 128
        %925 = vxpose.xlu0.b32.cont [11/16] 0.0, 128
        %926 = vxpose.xlu0.b32.cont [12/16] 0.0, 128
        %927 = vxpose.xlu0.b32.cont [13/16] 0.0, 128
        %928 = vxpose.xlu0.b32.cont [14/16] 0.0, 128
        %929 = vxpose.xlu0.b32.cont [15/16] 0.0, 128
        %930 = vxpose.xlu0.b32.end [16/16] 0.0, 128
        %v931 = vpop.trf.xlu0
        %v932 = vpop.trf.xlu0
        %v933 = vpop.trf.xlu0
        %v934 = vpop.trf.xlu0
        %v935 = vpop.trf.xlu0
        %v936 = vpop.trf.xlu0
        %v937 = vpop.trf.xlu0
        %v938 = vpop.trf.xlu0
        %v939 = vpop.trf.xlu0
        %v940 = vpop.trf.xlu0
        %v941 = vpop.trf.xlu0
        %v942 = vpop.trf.xlu0
        %v943 = vpop.trf.xlu0
        %v944 = vpop.trf.xlu0
        %v945 = vpop.trf.xlu0
        %v946 = vpop.trf.xlu0
        %947 = vxpose.xlu0.b32.start [1/16] %v914, 128
        %948 = vxpose.xlu0.b32.cont [2/16] 0.0, 128
        %949 = vxpose.xlu0.b32.cont [3/16] 0.0, 128
        %950 = vxpose.xlu0.b32.cont [4/16] 0.0, 128
        %951 = vxpose.xlu0.b32.cont [5/16] 0.0, 128
        %952 = vxpose.xlu0.b32.cont [6/16] 0.0, 128
        %953 = vxpose.xlu0.b32.cont [7/16] 0.0, 128
        %954 = vxpose.xlu0.b32.cont [8/16] 0.0, 128
        %955 = vxpose.xlu0.b32.cont [9/16] 0.0, 128
        %956 = vxpose.xlu0.b32.cont [10/16] 0.0, 128
        %957 = vxpose.xlu0.b32.cont [11/16] 0.0, 128
        %958 = vxpose.xlu0.b32.cont [12/16] 0.0, 128
        %959 = vxpose.xlu0.b32.cont [13/16] 0.0, 128
        %960 = vxpose.xlu0.b32.cont [14/16] 0.0, 128
        %961 = vxpose.xlu0.b32.cont [15/16] 0.0, 128
        %962 = vxpose.xlu0.b32.end [16/16] 0.0, 128
        %v963 = vpop.trf.xlu0
        %v964 = vpop.trf.xlu0
        %v965 = vpop.trf.xlu0
        %v966 = vpop.trf.xlu0
        %v967 = vpop.trf.xlu0
        %v968 = vpop.trf.xlu0
        %v969 = vpop.trf.xlu0
        %v970 = vpop.trf.xlu0
        %v971 = vpop.trf.xlu0
        %v972 = vpop.trf.xlu0
        %v973 = vpop.trf.xlu0
        %v974 = vpop.trf.xlu0
        %v975 = vpop.trf.xlu0
        %v976 = vpop.trf.xlu0
        %v977 = vpop.trf.xlu0
        %v978 = vpop.trf.xlu0
        %vm979 = vcmask 31744
        %980 = vst.msk [vmem:[#allocation3] sm:$0xff] %vm979, %v931
        %981 = vst.msk [vmem:[#allocation3 + $0x8] sm:$0xff] %vm979, %v932
        %982 = vst.msk [vmem:[#allocation3 + $0x10] sm:$0xff] %vm979, %v933
        %983 = vst.msk [vmem:[#allocation3 + $0x18] sm:$0xff] %vm979, %v934
        %984 = vst.msk [vmem:[#allocation3 + $0x20] sm:$0xff] %vm979, %v935
        %985 = vst.msk [vmem:[#allocation3 + $0x28] sm:$0xff] %vm979, %v936
        %986 = vst.msk [vmem:[#allocation3 + $0x30] sm:$0xff] %vm979, %v937
        %987 = vst.msk [vmem:[#allocation3 + $0x38] sm:$0xff] %vm979, %v938
        %988 = vst.msk [vmem:[#allocation3 + $0x40] sm:$0xff] %vm979, %v939
        %989 = vst.msk [vmem:[#allocation3 + $0x48] sm:$0xff] %vm979, %v940
        %990 = vst.msk [vmem:[#allocation3 + $0x50] sm:$0xff] %vm979, %v941
        %991 = vst.msk [vmem:[#allocation3 + $0x58] sm:$0xff] %vm979, %v942
        %992 = vst.msk [vmem:[#allocation3 + $0x60] sm:$0xff] %vm979, %v943
        %993 = vst.msk [vmem:[#allocation3 + $0x68] sm:$0xff] %vm979, %v944
        %994 = vst.msk [vmem:[#allocation3 + $0x70] sm:$0xff] %vm979, %v945
        %995 = vst.msk [vmem:[#allocation3 + $0x78] sm:$0xff] %vm979, %v946
        %996 = vst.msk [vmem:[#allocation3 + $0x80] sm:$0xff] %vm979, %v963
        %997 = vst.msk [vmem:[#allocation3 + $0x88] sm:$0xff] %vm979, %v964
        %998 = vst.msk [vmem:[#allocation3 + $0x90] sm:$0xff] %vm979, %v965
        %999 = vst.msk [vmem:[#allocation3 + $0x98] sm:$0xff] %vm979, %v966
        %1000 = vst.msk [vmem:[#allocation3 + $0xa0] sm:$0xff] %vm979, %v967
        %1001 = vst.msk [vmem:[#allocation3 + $0xa8] sm:$0xff] %vm979, %v968
        %1002 = vst.msk [vmem:[#allocation3 + $0xb0] sm:$0xff] %vm979, %v969
        %1003 = vst.msk [vmem:[#allocation3 + $0xb8] sm:$0xff] %vm979, %v970
        %1004 = vst.msk [vmem:[#allocation3 + $0xc0] sm:$0xff] %vm979, %v971
        %1005 = vst.msk [vmem:[#allocation3 + $0xc8] sm:$0xff] %vm979, %v972
        %1006 = vst.msk [vmem:[#allocation3 + $0xd0] sm:$0xff] %vm979, %v973
        %1007 = vst.msk [vmem:[#allocation3 + $0xd8] sm:$0xff] %vm979, %v974
        %1008 = vst.msk [vmem:[#allocation3 + $0xe0] sm:$0xff] %vm979, %v975
        %1009 = vst.msk [vmem:[#allocation3 + $0xe8] sm:$0xff] %vm979, %v976
        %1010 = vst.msk [vmem:[#allocation3 + $0xf0] sm:$0xff] %vm979, %v977
        %vm1011 = vcmask 27648
        %1012 = vst.msk [vmem:[#allocation3 + $0xf8] sm:$0xf] %vm1011, %v978
        %v1013 = vld [vmem:[#allocation3] ss:$2 sm:$0xff]
        %s1014 = scalar_lea.vmem [#allocation3], 16
        %v1015 = vld [vmem:[%s1014] ss:$2 sm:$0xff]
        %s1016 = scalar_lea.vmem [#allocation3], 32
        %v1017 = vld [vmem:[%s1016] ss:$2 sm:$0xff]
        %s1018 = scalar_lea.vmem [#allocation3], 48
        %v1019 = vld [vmem:[%s1018] ss:$2 sm:$0xff]
        %s1020 = scalar_lea.vmem [#allocation3], 64
        %v1021 = vld [vmem:[%s1020] ss:$2 sm:$0xff]
        %s1022 = scalar_lea.vmem [#allocation3], 80
        %v1023 = vld [vmem:[%s1022] ss:$2 sm:$0xff]
        %s1024 = scalar_lea.vmem [#allocation3], 96
        %v1025 = vld [vmem:[%s1024] ss:$2 sm:$0xff]
        %s1026 = scalar_lea.vmem [#allocation3], 112
        %v1027 = vld [vmem:[%s1026] ss:$2 sm:$0xff]
        %s1028 = scalar_lea.vmem [#allocation3], 128
        %v1029 = vld [vmem:[%s1028] ss:$2 sm:$0xff]
        %s1030 = scalar_lea.vmem [#allocation3], 144
        %v1031 = vld [vmem:[%s1030] ss:$2 sm:$0xff]
        %s1032 = scalar_lea.vmem [#allocation3], 160
        %v1033 = vld [vmem:[%s1032] ss:$2 sm:$0xff]
        %s1034 = scalar_lea.vmem [#allocation3], 176
        %v1035 = vld [vmem:[%s1034] ss:$2 sm:$0xff]
        %s1036 = scalar_lea.vmem [#allocation3], 192
        %v1037 = vld [vmem:[%s1036] ss:$2 sm:$0xff]
        %s1038 = scalar_lea.vmem [#allocation3], 208
        %v1039 = vld [vmem:[%s1038] ss:$2 sm:$0xff]
        %s1040 = scalar_lea.vmem [#allocation3], 224
        %v1041 = vld [vmem:[%s1040] ss:$2 sm:$0xff]
        %s1042 = scalar_lea.vmem [#allocation3], 240
        %v1043 = vld [vmem:[%s1042] ss:$2 sm:$0x3f]
        %s1044 = scalar_lea.vmem [#allocation3], 1
        %v1045 = vld [vmem:[%s1044] ss:$2 sm:$0xff]
        %s1046 = scalar_lea.vmem [#allocation3], 17
        %v1047 = vld [vmem:[%s1046] ss:$2 sm:$0xff]
        %s1048 = scalar_lea.vmem [#allocation3], 33
        %v1049 = vld [vmem:[%s1048] ss:$2 sm:$0xff]
        %s1050 = scalar_lea.vmem [#allocation3], 49
        %v1051 = vld [vmem:[%s1050] ss:$2 sm:$0xff]
        %s1052 = scalar_lea.vmem [#allocation3], 65
        %v1053 = vld [vmem:[%s1052] ss:$2 sm:$0xff]
        %s1054 = scalar_lea.vmem [#allocation3], 81
        %v1055 = vld [vmem:[%s1054] ss:$2 sm:$0xff]
        %s1056 = scalar_lea.vmem [#allocation3], 97
        %v1057 = vld [vmem:[%s1056] ss:$2 sm:$0xff]
        %s1058 = scalar_lea.vmem [#allocation3], 113
        %v1059 = vld [vmem:[%s1058] ss:$2 sm:$0xff]
        %s1060 = scalar_lea.vmem [#allocation3], 129
        %v1061 = vld [vmem:[%s1060] ss:$2 sm:$0xff]
        %s1062 = scalar_lea.vmem [#allocation3], 145
        %v1063 = vld [vmem:[%s1062] ss:$2 sm:$0xff]
        %s1064 = scalar_lea.vmem [#allocation3], 161
        %v1065 = vld [vmem:[%s1064] ss:$2 sm:$0xff]
        %s1066 = scalar_lea.vmem [#allocation3], 177
        %v1067 = vld [vmem:[%s1066] ss:$2 sm:$0xff]
        %s1068 = scalar_lea.vmem [#allocation3], 193
        %v1069 = vld [vmem:[%s1068] ss:$2 sm:$0xff]
        %s1070 = scalar_lea.vmem [#allocation3], 209
        %v1071 = vld [vmem:[%s1070] ss:$2 sm:$0xff]
        %s1072 = scalar_lea.vmem [#allocation3], 225
        %v1073 = vld [vmem:[%s1072] ss:$2 sm:$0xff]
        %s1074 = scalar_lea.vmem [#allocation3], 241
        %v1075 = vld [vmem:[%s1074] ss:$2 sm:$0x3f]
        %v1076 = vmax.f32 %v1013, %v1045
        %v1077 = vmax.f32 %v1015, %v1047
        %v1078 = vmax.f32 %v1017, %v1049
        %v1079 = vmax.f32 %v1019, %v1051
        %v1080 = vmax.f32 %v1021, %v1053
        %v1081 = vmax.f32 %v1023, %v1055
        %v1082 = vmax.f32 %v1025, %v1057
        %v1083 = vmax.f32 %v1027, %v1059
        %v1084 = vmax.f32 %v1029, %v1061
        %v1085 = vmax.f32 %v1031, %v1063
        %v1086 = vmax.f32 %v1033, %v1065
        %v1087 = vmax.f32 %v1035, %v1067
        %v1088 = vmax.f32 %v1037, %v1069
        %v1089 = vmax.f32 %v1039, %v1071
        %v1090 = vmax.f32 %v1041, %v1073
        %v1091 = vmax.f32 %v1043, %v1075
        %1092 = vst.msk [vmem:[#allocation4 + $0x8] sm:$0xff] %vm979, %v1076
        %1093 = vst.msk [vmem:[#allocation4 + $0x10] sm:$0xff] %vm979, %v1077
        %1094 = vst.msk [vmem:[#allocation4 + $0x18] sm:$0xff] %vm979, %v1078
        %1095 = vst.msk [vmem:[#allocation4 + $0x20] sm:$0xff] %vm979, %v1079
        %1096 = vst.msk [vmem:[#allocation4 + $0x28] sm:$0xff] %vm979, %v1080
        %1097 = vst.msk [vmem:[#allocation4 + $0x30] sm:$0xff] %vm979, %v1081
        %1098 = vst.msk [vmem:[#allocation4 + $0x38] sm:$0xff] %vm979, %v1082
        %1099 = vst.msk [vmem:[#allocation4 + $0x40] sm:$0xff] %vm979, %v1083
        %1100 = vst.msk [vmem:[#allocation4 + $0x48] sm:$0xff] %vm979, %v1084
        %1101 = vst.msk [vmem:[#allocation4 + $0x50] sm:$0xff] %vm979, %v1085
        %1102 = vst.msk [vmem:[#allocation4 + $0x58] sm:$0xff] %vm979, %v1086
        %1103 = vst.msk [vmem:[#allocation4 + $0x60] sm:$0xff] %vm979, %v1087
        %1104 = vst.msk [vmem:[#allocation4 + $0x68] sm:$0xff] %vm979, %v1088
        %1105 = vst.msk [vmem:[#allocation4 + $0x70] sm:$0xff] %vm979, %v1089
        %1106 = vst.msk [vmem:[#allocation4 + $0x78] sm:$0xff] %vm979, %v1090
        %vm1107 = vcmask 29696
        %1108 = vst.msk [vmem:[#allocation4 + $0x80] sm:$0x3f] %vm1107, %v1091
        %1109 = vst.msk [vmem:[#allocation4] sm:$0xff] %vm979, 0.0
        %vm1110 = vcmask 25600
        %1111 = vst.msk [vmem:[#allocation4 + $0x86] sm:$0x3] %vm1110, 0.0
        %s1112 = scalar_lea.vmem [#allocation4], 7
        %v1113 = vld [vmem:[%s1112] ss:$2 sm:$0xff]
        %s1114 = scalar_lea.vmem [#allocation4], 23
        %v1115 = vld [vmem:[%s1114] ss:$2 sm:$0xff]
        %s1116 = scalar_lea.vmem [#allocation4], 39
        %v1117 = vld [vmem:[%s1116] ss:$2 sm:$0xff]
        %s1118 = scalar_lea.vmem [#allocation4], 55
        %v1119 = vld [vmem:[%s1118] ss:$2 sm:$0xff]
        %s1120 = scalar_lea.vmem [#allocation4], 71
        %v1121 = vld [vmem:[%s1120] ss:$2 sm:$0xff]
        %s1122 = scalar_lea.vmem [#allocation4], 87
        %v1123 = vld [vmem:[%s1122] ss:$2 sm:$0xff]
        %s1124 = scalar_lea.vmem [#allocation4], 103
        %v1125 = vld [vmem:[%s1124] ss:$2 sm:$0xff]
        %s1126 = scalar_lea.vmem [#allocation4], 119
        %v1127 = vld [vmem:[%s1126] ss:$2 sm:$0x1f]
        %v1128 = vpack.c.bf16 %v1115, %v1113
        %v1129 = vpack.c.bf16 %v1119, %v1117
        %v1130 = vpack.c.bf16 %v1123, %v1121
        %v1131 = vpack.c.bf16 %v1127, %v1125
        %1132 = vst.msk [vmem:[#allocation5] sm:$0xff] %vm979, %v1128
        %1133 = vst.msk [vmem:[#allocation5 + $0x8] sm:$0xff] %vm979, %v1129
        %1134 = vst.msk [vmem:[#allocation5 + $0x10] sm:$0xff] %vm979, %v1130
        %vm1135 = vcmask 30720
        %vm1136 = vsmask.f32 6400
        %vm1137 = vmand %vm1135, %vm1136
        %v1138 = vld [vmem:[#allocation5 + $0x18] sm:$0x7f]
        %v1139 = vsel %vm1137, %v1131, %v1138
        %1140 = vst [vmem:[#allocation5 + $0x18] sm:$0x7f] %v1139
        %s1141 = scalar_lea.vmem [#allocation4], 8
        %v1142 = vld [vmem:[%s1141] ss:$2 sm:$0xff]
        %s1143 = scalar_lea.vmem [#allocation4], 24
        %v1144 = vld [vmem:[%s1143] ss:$2 sm:$0xff]
        %s1145 = scalar_lea.vmem [#allocation4], 40
        %v1146 = vld [vmem:[%s1145] ss:$2 sm:$0xff]
        %s1147 = scalar_lea.vmem [#allocation4], 56
        %v1148 = vld [vmem:[%s1147] ss:$2 sm:$0xff]
        %s1149 = scalar_lea.vmem [#allocation4], 72
        %v1150 = vld [vmem:[%s1149] ss:$2 sm:$0xff]
        %s1151 = scalar_lea.vmem [#allocation4], 88
        %v1152 = vld [vmem:[%s1151] ss:$2 sm:$0xff]
        %s1153 = scalar_lea.vmem [#allocation4], 104
        %v1154 = vld [vmem:[%s1153] ss:$2 sm:$0xff]
        %s1155 = scalar_lea.vmem [#allocation4], 120
        %v1156 = vld [vmem:[%s1155] ss:$2 sm:$0x1f]
        %v1157 = vpack.c.bf16 %v1144, %v1142
        %v1158 = vpack.c.bf16 %v1148, %v1146
        %v1159 = vpack.c.bf16 %v1152, %v1150
        %v1160 = vpack.c.bf16 %v1156, %v1154
        %1161 = vst.msk [vmem:[#allocation5 + $0x20] sm:$0xff] %vm979, %v1157
        %1162 = vst.msk [vmem:[#allocation5 + $0x28] sm:$0xff] %vm979, %v1158
        %1163 = vst.msk [vmem:[#allocation5 + $0x30] sm:$0xff] %vm979, %v1159
        %v1164 = vld [vmem:[#allocation5 + $0x38] sm:$0x7f]
        %v1165 = vsel %vm1137, %v1160, %v1164
        %1166 = vst [vmem:[#allocation5 + $0x38] sm:$0x7f] %v1165
        %v1167 = vld [vmem:[%s1141] ss:$2 sm:$0xff]
        %v1168 = vld [vmem:[%s1143] ss:$2 sm:$0xff]
        %v1169 = vld [vmem:[%s1145] ss:$2 sm:$0xff]
        %v1170 = vld [vmem:[%s1147] ss:$2 sm:$0xff]
        %v1171 = vld [vmem:[%s1149] ss:$2 sm:$0xff]
        %v1172 = vld [vmem:[%s1151] ss:$2 sm:$0xff]
        %v1173 = vld [vmem:[%s1153] ss:$2 sm:$0xff]
        %v1174 = vld [vmem:[%s1155] ss:$2 sm:$0x1f]
        %v1175 = vpack.c.bf16 %v1168, %v1167
        %v1176 = vpack.c.bf16 %v1170, %v1169
        %v1177 = vpack.c.bf16 %v1172, %v1171
        %v1178 = vpack.c.bf16 %v1174, %v1173
        %1183 = vrot.lane.b32.xlu0 %v1175, 4
        %v1184 = vpop.permute.xlu0 %1183
        %1185 = vrot.lane.b32.xlu0 %v1176, 4
        %v1186 = vpop.permute.xlu0 %1185
        %1187 = vrot.lane.b32.xlu0 %v1177, 4
        %v1188 = vpop.permute.xlu0 %1187
        %1189 = vrot.lane.b32.xlu0 %v1178, 4
        %v1190 = vpop.permute.xlu0 %1189
        %vm1195 = vcmask 64544
        %1196 = vst.msk [vmem:[#allocation5] sm:$0xff] %vm1195, %v1184
        %1197 = vst.msk [vmem:[#allocation5 + $0x8] sm:$0xff] %vm1195, %v1186
        %1198 = vst.msk [vmem:[#allocation5 + $0x10] sm:$0xff] %vm1195, %v1188
        %vm1199 = vcmask 63520
        %vm1200 = vmand %vm1199, %vm1136
        %v1201 = vld [vmem:[#allocation5 + $0x18] sm:$0x7f]
        %v1202 = vsel %vm1200, %v1190, %v1201
        %1203 = vst [vmem:[#allocation5 + $0x18] sm:$0x7f] %v1202
        %s1204 = scalar_lea.vmem [#allocation4], 9
        %v1205 = vld [vmem:[%s1204] ss:$2 sm:$0xff]
        %s1206 = scalar_lea.vmem [#allocation4], 25
        %v1207 = vld [vmem:[%s1206] ss:$2 sm:$0xff]
        %s1208 = scalar_lea.vmem [#allocation4], 41
        %v1209 = vld [vmem:[%s1208] ss:$2 sm:$0xff]
        %s1210 = scalar_lea.vmem [#allocation4], 57
        %v1211 = vld [vmem:[%s1210] ss:$2 sm:$0xff]
        %s1212 = scalar_lea.vmem [#allocation4], 73
        %v1213 = vld [vmem:[%s1212] ss:$2 sm:$0xff]
        %s1214 = scalar_lea.vmem [#allocation4], 89
        %v1215 = vld [vmem:[%s1214] ss:$2 sm:$0xff]
        %s1216 = scalar_lea.vmem [#allocation4], 105
        %v1217 = vld [vmem:[%s1216] ss:$2 sm:$0xff]
        %s1218 = scalar_lea.vmem [#allocation4], 121
        %v1219 = vld [vmem:[%s1218] ss:$2 sm:$0x1f]
        %v1220 = vpack.c.bf16 %v1207, %v1205
        %v1221 = vpack.c.bf16 %v1211, %v1209
        %v1222 = vpack.c.bf16 %v1215, %v1213
        %v1223 = vpack.c.bf16 %v1219, %v1217
        %1228 = vrot.lane.b32.xlu0 %v1220, 4
        %v1229 = vpop.permute.xlu0 %1228
        %1230 = vrot.lane.b32.xlu0 %v1221, 4
        %v1231 = vpop.permute.xlu0 %1230
        %1232 = vrot.lane.b32.xlu0 %v1222, 4
        %v1233 = vpop.permute.xlu0 %1232
        %1234 = vrot.lane.b32.xlu0 %v1223, 4
        %v1235 = vpop.permute.xlu0 %1234
        %1240 = vst.msk [vmem:[#allocation5 + $0x20] sm:$0xff] %vm1195, %v1229
        %1241 = vst.msk [vmem:[#allocation5 + $0x28] sm:$0xff] %vm1195, %v1231
        %1242 = vst.msk [vmem:[#allocation5 + $0x30] sm:$0xff] %vm1195, %v1233
        %v1243 = vld [vmem:[#allocation5 + $0x38] sm:$0x7f]
        %v1244 = vsel %vm1200, %v1235, %v1243
        %1245 = vst [vmem:[#allocation5 + $0x38] sm:$0x7f] %v1244
        %v1246 = vld [vmem:[%s1204] ss:$2 sm:$0xff]
        %v1247 = vld [vmem:[%s1206] ss:$2 sm:$0xff]
        %v1248 = vld [vmem:[%s1208] ss:$2 sm:$0xff]
        %v1249 = vld [vmem:[%s1210] ss:$2 sm:$0xff]
        %v1250 = vld [vmem:[%s1212] ss:$2 sm:$0xff]
        %v1251 = vld [vmem:[%s1214] ss:$2 sm:$0xff]
        %v1252 = vld [vmem:[%s1216] ss:$2 sm:$0xff]
        %v1253 = vld [vmem:[%s1218] ss:$2 sm:$0x1f]
        %v1254 = vpack.c.bf16 %v1247, %v1246
        %v1255 = vpack.c.bf16 %v1249, %v1248
        %v1256 = vpack.c.bf16 %v1251, %v1250
        %v1257 = vpack.c.bf16 %v1253, %v1252
        %1262 = vrot.lane.b32.xlu0 %v1254, 8
        %v1263 = vpop.permute.xlu0 %1262
        %1264 = vrot.lane.b32.xlu0 %v1255, 8
        %v1265 = vpop.permute.xlu0 %1264
        %1266 = vrot.lane.b32.xlu0 %v1256, 8
        %v1267 = vpop.permute.xlu0 %1266
        %1268 = vrot.lane.b32.xlu0 %v1257, 8
        %v1269 = vpop.permute.xlu0 %1268
        %vm1274 = vcmask 97344
        %1275 = vst.msk [vmem:[#allocation5] sm:$0xff] %vm1274, %v1263
        %1276 = vst.msk [vmem:[#allocation5 + $0x8] sm:$0xff] %vm1274, %v1265
        %1277 = vst.msk [vmem:[#allocation5 + $0x10] sm:$0xff] %vm1274, %v1267
        %vm1278 = vcmask 96320
        %vm1279 = vmand %vm1278, %vm1136
        %v1280 = vld [vmem:[#allocation5 + $0x18] sm:$0x7f]
        %v1281 = vsel %vm1279, %v1269, %v1280
        %1282 = vst [vmem:[#allocation5 + $0x18] sm:$0x7f] %v1281
        %s1283 = scalar_lea.vmem [#allocation4], 10
        %v1284 = vld [vmem:[%s1283] ss:$2 sm:$0xff]
        %s1285 = scalar_lea.vmem [#allocation4], 26
        %v1286 = vld [vmem:[%s1285] ss:$2 sm:$0xff]
        %s1287 = scalar_lea.vmem [#allocation4], 42
        %v1288 = vld [vmem:[%s1287] ss:$2 sm:$0xff]
        %s1289 = scalar_lea.vmem [#allocation4], 58
        %v1290 = vld [vmem:[%s1289] ss:$2 sm:$0xff]
        %s1291 = scalar_lea.vmem [#allocation4], 74
        %v1292 = vld [vmem:[%s1291] ss:$2 sm:$0xff]
        %s1293 = scalar_lea.vmem [#allocation4], 90
        %v1294 = vld [vmem:[%s1293] ss:$2 sm:$0xff]
        %s1295 = scalar_lea.vmem [#allocation4], 106
        %v1296 = vld [vmem:[%s1295] ss:$2 sm:$0xff]
        %s1297 = scalar_lea.vmem [#allocation4], 122
        %v1298 = vld [vmem:[%s1297] ss:$2 sm:$0x1f]
        %v1299 = vpack.c.bf16 %v1286, %v1284
        %v1300 = vpack.c.bf16 %v1290, %v1288
        %v1301 = vpack.c.bf16 %v1294, %v1292
        %v1302 = vpack.c.bf16 %v1298, %v1296
        %1307 = vrot.lane.b32.xlu0 %v1299, 8
        %v1308 = vpop.permute.xlu0 %1307
        %1309 = vrot.lane.b32.xlu0 %v1300, 8
        %v1310 = vpop.permute.xlu0 %1309
        %1311 = vrot.lane.b32.xlu0 %v1301, 8
        %v1312 = vpop.permute.xlu0 %1311
        %1313 = vrot.lane.b32.xlu0 %v1302, 8
        %v1314 = vpop.permute.xlu0 %1313
        %1319 = vst.msk [vmem:[#allocation5 + $0x20] sm:$0xff] %vm1274, %v1308
        %1320 = vst.msk [vmem:[#allocation5 + $0x28] sm:$0xff] %vm1274, %v1310
        %1321 = vst.msk [vmem:[#allocation5 + $0x30] sm:$0xff] %vm1274, %v1312
        %v1322 = vld [vmem:[#allocation5 + $0x38] sm:$0x7f]
        %v1323 = vsel %vm1279, %v1314, %v1322
        %1324 = vst [vmem:[#allocation5 + $0x38] sm:$0x7f] %v1323
        %v1325 = vld [vmem:[%s1283] ss:$2 sm:$0xff]
        %v1326 = vld [vmem:[%s1285] ss:$2 sm:$0xff]
        %v1327 = vld [vmem:[%s1287] ss:$2 sm:$0xff]
        %v1328 = vld [vmem:[%s1289] ss:$2 sm:$0xff]
        %v1329 = vld [vmem:[%s1291] ss:$2 sm:$0xff]
        %v1330 = vld [vmem:[%s1293] ss:$2 sm:$0xff]
        %v1331 = vld [vmem:[%s1295] ss:$2 sm:$0xff]
        %v1332 = vld [vmem:[%s1297] ss:$2 sm:$0x1f]
        %v1333 = vpack.c.bf16 %v1326, %v1325
        %v1334 = vpack.c.bf16 %v1328, %v1327
        %v1335 = vpack.c.bf16 %v1330, %v1329
        %v1336 = vpack.c.bf16 %v1332, %v1331
        %1341 = vrot.lane.b32.xlu0 %v1333, 12
        %v1342 = vpop.permute.xlu0 %1341
        %1343 = vrot.lane.b32.xlu0 %v1334, 12
        %v1344 = vpop.permute.xlu0 %1343
        %1345 = vrot.lane.b32.xlu0 %v1335, 12
        %v1346 = vpop.permute.xlu0 %1345
        %1347 = vrot.lane.b32.xlu0 %v1336, 12
        %v1348 = vpop.permute.xlu0 %1347
        %vm1353 = vcmask 130144
        %1354 = vst.msk [vmem:[#allocation5] sm:$0xff] %vm1353, %v1342
        %1355 = vst.msk [vmem:[#allocation5 + $0x8] sm:$0xff] %vm1353, %v1344
        %1356 = vst.msk [vmem:[#allocation5 + $0x10] sm:$0xff] %vm1353, %v1346
        %vm1357 = vcmask 129120
        %vm1358 = vmand %vm1357, %vm1136
        %v1359 = vld [vmem:[#allocation5 + $0x18] sm:$0x7f]
        %v1360 = vsel %vm1358, %v1348, %v1359
        %1361 = vst [vmem:[#allocation5 + $0x18] sm:$0x7f] %v1360
        %s1362 = scalar_lea.vmem [#allocation4], 11
        %v1363 = vld [vmem:[%s1362] ss:$2 sm:$0xff]
        %s1364 = scalar_lea.vmem [#allocation4], 27
        %v1365 = vld [vmem:[%s1364] ss:$2 sm:$0xff]
        %s1366 = scalar_lea.vmem [#allocation4], 43
        %v1367 = vld [vmem:[%s1366] ss:$2 sm:$0xff]
        %s1368 = scalar_lea.vmem [#allocation4], 59
        %v1369 = vld [vmem:[%s1368] ss:$2 sm:$0xff]
        %s1370 = scalar_lea.vmem [#allocation4], 75
        %v1371 = vld [vmem:[%s1370] ss:$2 sm:$0xff]
        %s1372 = scalar_lea.vmem [#allocation4], 91
        %v1373 = vld [vmem:[%s1372] ss:$2 sm:$0xff]
        %s1374 = scalar_lea.vmem [#allocation4], 107
        %v1375 = vld [vmem:[%s1374] ss:$2 sm:$0xff]
        %s1376 = scalar_lea.vmem [#allocation4], 123
        %v1377 = vld [vmem:[%s1376] ss:$2 sm:$0x1f]
        %v1378 = vpack.c.bf16 %v1365, %v1363
        %v1379 = vpack.c.bf16 %v1369, %v1367
        %v1380 = vpack.c.bf16 %v1373, %v1371
        %v1381 = vpack.c.bf16 %v1377, %v1375
        %1386 = vrot.lane.b32.xlu0 %v1378, 12
        %v1387 = vpop.permute.xlu0 %1386
        %1388 = vrot.lane.b32.xlu0 %v1379, 12
        %v1389 = vpop.permute.xlu0 %1388
        %1390 = vrot.lane.b32.xlu0 %v1380, 12
        %v1391 = vpop.permute.xlu0 %1390
        %1392 = vrot.lane.b32.xlu0 %v1381, 12
        %v1393 = vpop.permute.xlu0 %1392
        %1398 = vst.msk [vmem:[#allocation5 + $0x20] sm:$0xff] %vm1353, %v1387
        %1399 = vst.msk [vmem:[#allocation5 + $0x28] sm:$0xff] %vm1353, %v1389
        %1400 = vst.msk [vmem:[#allocation5 + $0x30] sm:$0xff] %vm1353, %v1391
        %v1401 = vld [vmem:[#allocation5 + $0x38] sm:$0x7f]
        %v1402 = vsel %vm1358, %v1393, %v1401
        %1403 = vst [vmem:[#allocation5 + $0x38] sm:$0x7f] %v1402
        %v1404 = vld [vmem:[%s1362] ss:$2 sm:$0xff]
        %v1405 = vld [vmem:[%s1364] ss:$2 sm:$0xff]
        %v1406 = vld [vmem:[%s1366] ss:$2 sm:$0xff]
        %v1407 = vld [vmem:[%s1368] ss:$2 sm:$0xff]
        %v1408 = vld [vmem:[%s1370] ss:$2 sm:$0xff]
        %v1409 = vld [vmem:[%s1372] ss:$2 sm:$0xff]
        %v1410 = vld [vmem:[%s1374] ss:$2 sm:$0xff]
        %v1411 = vld [vmem:[%s1376] ss:$2 sm:$0x1f]
        %v1412 = vpack.c.bf16 %v1405, %v1404
        %v1413 = vpack.c.bf16 %v1407, %v1406
        %v1414 = vpack.c.bf16 %v1409, %v1408
        %v1415 = vpack.c.bf16 %v1411, %v1410
        %1420 = vrot.lane.b32.xlu0 %v1412, 16
        %v1421 = vpop.permute.xlu0 %1420
        %1422 = vrot.lane.b32.xlu0 %v1413, 16
        %v1423 = vpop.permute.xlu0 %1422
        %1424 = vrot.lane.b32.xlu0 %v1414, 16
        %v1425 = vpop.permute.xlu0 %1424
        %1426 = vrot.lane.b32.xlu0 %v1415, 16
        %v1427 = vpop.permute.xlu0 %1426
        %vm1432 = vcmask 162944
        %1433 = vst.msk [vmem:[#allocation5] sm:$0xff] %vm1432, %v1421
        %1434 = vst.msk [vmem:[#allocation5 + $0x8] sm:$0xff] %vm1432, %v1423
        %1435 = vst.msk [vmem:[#allocation5 + $0x10] sm:$0xff] %vm1432, %v1425
        %vm1436 = vcmask 161920
        %vm1437 = vmand %vm1436, %vm1136
        %v1438 = vld [vmem:[#allocation5 + $0x18] sm:$0x7f]
        %v1439 = vsel %vm1437, %v1427, %v1438
        %1440 = vst [vmem:[#allocation5 + $0x18] sm:$0x7f] %v1439
        %s1441 = scalar_lea.vmem [#allocation4], 12
        %v1442 = vld [vmem:[%s1441] ss:$2 sm:$0xff]
        %s1443 = scalar_lea.vmem [#allocation4], 28
        %v1444 = vld [vmem:[%s1443] ss:$2 sm:$0xff]
        %s1445 = scalar_lea.vmem [#allocation4], 44
        %v1446 = vld [vmem:[%s1445] ss:$2 sm:$0xff]
        %s1447 = scalar_lea.vmem [#allocation4], 60
        %v1448 = vld [vmem:[%s1447] ss:$2 sm:$0xff]
        %s1449 = scalar_lea.vmem [#allocation4], 76
        %v1450 = vld [vmem:[%s1449] ss:$2 sm:$0xff]
        %s1451 = scalar_lea.vmem [#allocation4], 92
        %v1452 = vld [vmem:[%s1451] ss:$2 sm:$0xff]
        %s1453 = scalar_lea.vmem [#allocation4], 108
        %v1454 = vld [vmem:[%s1453] ss:$2 sm:$0xff]
        %s1455 = scalar_lea.vmem [#allocation4], 124
        %v1456 = vld [vmem:[%s1455] ss:$2 sm:$0x1f]
        %v1457 = vpack.c.bf16 %v1444, %v1442
        %v1458 = vpack.c.bf16 %v1448, %v1446
        %v1459 = vpack.c.bf16 %v1452, %v1450
        %v1460 = vpack.c.bf16 %v1456, %v1454
        %1465 = vrot.lane.b32.xlu0 %v1457, 16
        %v1466 = vpop.permute.xlu0 %1465
        %1467 = vrot.lane.b32.xlu0 %v1458, 16
        %v1468 = vpop.permute.xlu0 %1467
        %1469 = vrot.lane.b32.xlu0 %v1459, 16
        %v1470 = vpop.permute.xlu0 %1469
        %1471 = vrot.lane.b32.xlu0 %v1460, 16
        %v1472 = vpop.permute.xlu0 %1471
        %1477 = vst.msk [vmem:[#allocation5 + $0x20] sm:$0xff] %vm1432, %v1466
        %1478 = vst.msk [vmem:[#allocation5 + $0x28] sm:$0xff] %vm1432, %v1468
        %1479 = vst.msk [vmem:[#allocation5 + $0x30] sm:$0xff] %vm1432, %v1470
        %v1480 = vld [vmem:[#allocation5 + $0x38] sm:$0x7f]
        %v1481 = vsel %vm1437, %v1472, %v1480
        %1482 = vst [vmem:[#allocation5 + $0x38] sm:$0x7f] %v1481
        %v1483 = vld [vmem:[%s1441] ss:$2 sm:$0xff]
        %v1484 = vld [vmem:[%s1443] ss:$2 sm:$0xff]
        %v1485 = vld [vmem:[%s1445] ss:$2 sm:$0xff]
        %v1486 = vld [vmem:[%s1447] ss:$2 sm:$0xff]
        %v1487 = vld [vmem:[%s1449] ss:$2 sm:$0xff]
        %v1488 = vld [vmem:[%s1451] ss:$2 sm:$0xff]
        %v1489 = vld [vmem:[%s1453] ss:$2 sm:$0xff]
        %v1490 = vld [vmem:[%s1455] ss:$2 sm:$0x1f]
        %v1491 = vpack.c.bf16 %v1484, %v1483
        %v1492 = vpack.c.bf16 %v1486, %v1485
        %v1493 = vpack.c.bf16 %v1488, %v1487
        %v1494 = vpack.c.bf16 %v1490, %v1489
        %1499 = vrot.lane.b32.xlu0 %v1491, 20
        %v1500 = vpop.permute.xlu0 %1499
        %1501 = vrot.lane.b32.xlu0 %v1492, 20
        %v1502 = vpop.permute.xlu0 %1501
        %1503 = vrot.lane.b32.xlu0 %v1493, 20
        %v1504 = vpop.permute.xlu0 %1503
        %1505 = vrot.lane.b32.xlu0 %v1494, 20
        %v1506 = vpop.permute.xlu0 %1505
        %vm1511 = vcmask 195744
        %1512 = vst.msk [vmem:[#allocation5] sm:$0xff] %vm1511, %v1500
        %1513 = vst.msk [vmem:[#allocation5 + $0x8] sm:$0xff] %vm1511, %v1502
        %1514 = vst.msk [vmem:[#allocation5 + $0x10] sm:$0xff] %vm1511, %v1504
        %vm1515 = vcmask 194720
        %vm1516 = vmand %vm1515, %vm1136
        %v1517 = vld [vmem:[#allocation5 + $0x18] sm:$0x7f]
        %v1518 = vsel %vm1516, %v1506, %v1517
        %1519 = vst [vmem:[#allocation5 + $0x18] sm:$0x7f] %v1518
        %s1520 = scalar_lea.vmem [#allocation4], 13
        %v1521 = vld [vmem:[%s1520] ss:$2 sm:$0xff]
        %s1522 = scalar_lea.vmem [#allocation4], 29
        %v1523 = vld [vmem:[%s1522] ss:$2 sm:$0xff]
        %s1524 = scalar_lea.vmem [#allocation4], 45
        %v1525 = vld [vmem:[%s1524] ss:$2 sm:$0xff]
        %s1526 = scalar_lea.vmem [#allocation4], 61
        %v1527 = vld [vmem:[%s1526] ss:$2 sm:$0xff]
        %s1528 = scalar_lea.vmem [#allocation4], 77
        %v1529 = vld [vmem:[%s1528] ss:$2 sm:$0xff]
        %s1530 = scalar_lea.vmem [#allocation4], 93
        %v1531 = vld [vmem:[%s1530] ss:$2 sm:$0xff]
        %s1532 = scalar_lea.vmem [#allocation4], 109
        %v1533 = vld [vmem:[%s1532] ss:$2 sm:$0xff]
        %s1534 = scalar_lea.vmem [#allocation4], 125
        %v1535 = vld [vmem:[%s1534] ss:$2 sm:$0x1f]
        %v1536 = vpack.c.bf16 %v1523, %v1521
        %v1537 = vpack.c.bf16 %v1527, %v1525
        %v1538 = vpack.c.bf16 %v1531, %v1529
        %v1539 = vpack.c.bf16 %v1535, %v1533
        %1544 = vrot.lane.b32.xlu0 %v1536, 20
        %v1545 = vpop.permute.xlu0 %1544
        %1546 = vrot.lane.b32.xlu0 %v1537, 20
        %v1547 = vpop.permute.xlu0 %1546
        %1548 = vrot.lane.b32.xlu0 %v1538, 20
        %v1549 = vpop.permute.xlu0 %1548
        %1550 = vrot.lane.b32.xlu0 %v1539, 20
        %v1551 = vpop.permute.xlu0 %1550
        %1556 = vst.msk [vmem:[#allocation5 + $0x20] sm:$0xff] %vm1511, %v1545
        %1557 = vst.msk [vmem:[#allocation5 + $0x28] sm:$0xff] %vm1511, %v1547
        %1558 = vst.msk [vmem:[#allocation5 + $0x30] sm:$0xff] %vm1511, %v1549
        %v1559 = vld [vmem:[#allocation5 + $0x38] sm:$0x7f]
        %v1560 = vsel %vm1516, %v1551, %v1559
        %1561 = vst [vmem:[#allocation5 + $0x38] sm:$0x7f] %v1560
        %v1562 = vld [vmem:[%s1520] ss:$2 sm:$0xff]
        %v1563 = vld [vmem:[%s1522] ss:$2 sm:$0xff]
        %v1564 = vld [vmem:[%s1524] ss:$2 sm:$0xff]
        %v1565 = vld [vmem:[%s1526] ss:$2 sm:$0xff]
        %v1566 = vld [vmem:[%s1528] ss:$2 sm:$0xff]
        %v1567 = vld [vmem:[%s1530] ss:$2 sm:$0xff]
        %v1568 = vld [vmem:[%s1532] ss:$2 sm:$0xff]
        %v1569 = vld [vmem:[%s1534] ss:$2 sm:$0x1f]
        %v1570 = vpack.c.bf16 %v1563, %v1562
        %v1571 = vpack.c.bf16 %v1565, %v1564
        %v1572 = vpack.c.bf16 %v1567, %v1566
        %v1573 = vpack.c.bf16 %v1569, %v1568
        %1578 = vrot.lane.b32.xlu0 %v1570, 24
        %v1579 = vpop.permute.xlu0 %1578
        %1580 = vrot.lane.b32.xlu0 %v1571, 24
        %v1581 = vpop.permute.xlu0 %1580
        %1582 = vrot.lane.b32.xlu0 %v1572, 24
        %v1583 = vpop.permute.xlu0 %1582
        %1584 = vrot.lane.b32.xlu0 %v1573, 24
        %v1585 = vpop.permute.xlu0 %1584
        %vm1590 = vcmask 228544
        %1591 = vst.msk [vmem:[#allocation5] sm:$0xff] %vm1590, %v1579
        %1592 = vst.msk [vmem:[#allocation5 + $0x8] sm:$0xff] %vm1590, %v1581
        %1593 = vst.msk [vmem:[#allocation5 + $0x10] sm:$0xff] %vm1590, %v1583
        %vm1594 = vcmask 227520
        %vm1595 = vmand %vm1594, %vm1136
        %v1596 = vld [vmem:[#allocation5 + $0x18] sm:$0x7f]
        %v1597 = vsel %vm1595, %v1585, %v1596
        %1598 = vst [vmem:[#allocation5 + $0x18] sm:$0x7f] %v1597
        %s1599 = scalar_lea.vmem [#allocation4], 14
        %v1600 = vld [vmem:[%s1599] ss:$2 sm:$0xff]
        %s1601 = scalar_lea.vmem [#allocation4], 30
        %v1602 = vld [vmem:[%s1601] ss:$2 sm:$0xff]
        %s1603 = scalar_lea.vmem [#allocation4], 46
        %v1604 = vld [vmem:[%s1603] ss:$2 sm:$0xff]
        %s1605 = scalar_lea.vmem [#allocation4], 62
        %v1606 = vld [vmem:[%s1605] ss:$2 sm:$0xff]
        %s1607 = scalar_lea.vmem [#allocation4], 78
        %v1608 = vld [vmem:[%s1607] ss:$2 sm:$0xff]
        %s1609 = scalar_lea.vmem [#allocation4], 94
        %v1610 = vld [vmem:[%s1609] ss:$2 sm:$0xff]
        %s1611 = scalar_lea.vmem [#allocation4], 110
        %v1612 = vld [vmem:[%s1611] ss:$2 sm:$0xff]
        %s1613 = scalar_lea.vmem [#allocation4], 126
        %v1614 = vld [vmem:[%s1613] ss:$2 sm:$0x1f]
        %v1615 = vpack.c.bf16 %v1602, %v1600
        %v1616 = vpack.c.bf16 %v1606, %v1604
        %v1617 = vpack.c.bf16 %v1610, %v1608
        %v1618 = vpack.c.bf16 %v1614, %v1612
        %1623 = vrot.lane.b32.xlu0 %v1615, 24
        %v1624 = vpop.permute.xlu0 %1623
        %1625 = vrot.lane.b32.xlu0 %v1616, 24
        %v1626 = vpop.permute.xlu0 %1625
        %1627 = vrot.lane.b32.xlu0 %v1617, 24
        %v1628 = vpop.permute.xlu0 %1627
        %1629 = vrot.lane.b32.xlu0 %v1618, 24
        %v1630 = vpop.permute.xlu0 %1629
        %1635 = vst.msk [vmem:[#allocation5 + $0x20] sm:$0xff] %vm1590, %v1624
        %1636 = vst.msk [vmem:[#allocation5 + $0x28] sm:$0xff] %vm1590, %v1626
        %1637 = vst.msk [vmem:[#allocation5 + $0x30] sm:$0xff] %vm1590, %v1628
        %v1638 = vld [vmem:[#allocation5 + $0x38] sm:$0x7f]
        %v1639 = vsel %vm1595, %v1630, %v1638
        %1640 = vst [vmem:[#allocation5 + $0x38] sm:$0x7f] %v1639
        %v1641 = vld [vmem:[#allocation5] sm:$0xff]
        %v1642 = vld [vmem:[#allocation5 + $0x8] sm:$0xff]
        %v1643 = vld [vmem:[#allocation5 + $0x10] sm:$0xff]
        %v1644 = vld [vmem:[#allocation5 + $0x18] sm:$0xff]
        %v1645 = vld [vmem:[#allocation5 + $0x20] sm:$0xff]
        %v1646 = vld [vmem:[#allocation5 + $0x28] sm:$0xff]
        %v1647 = vld [vmem:[#allocation5 + $0x30] sm:$0xff]
        %v1648 = vld [vmem:[#allocation5 + $0x38] sm:$0xff]
        %v1649 = vld [vmem:[#allocation17] sm:$0xf]
        %v1650 = vld [vmem:[#allocation17 + $0x4] sm:$0xf]
        %v1651 = vld [vmem:[#allocation17 + $0x8] sm:$0xf]
        %v1652 = vld [vmem:[#allocation17 + $0xc] sm:$0x3]
        %v1657 = vunpack.c.l.b16 %v1649
        %v1658 = vunpack.c.l.b16 %v1650
        %v1659 = vunpack.c.l.b16 %v1651
        %v1660 = vunpack.c.l.b16 %v1652
        %v1661 = vpack.c.b16 %v1658, %v1657
        %v1662 = vpack.c.b16 %v1660, %v1659
        %vm1664 = vcmask 228352
        %v1666 = vsel %vm1664, %v1641, 0
        %v1669 = vsel %vm1664, %v1642, 0
        %v1672 = vsel %vm1664, %v1643, 0
        %v1675 = vsel %vm1664, %v1644, 0
        %v1678 = vsel %vm1664, %v1645, 0
        %v1681 = vsel %vm1664, %v1646, 0
        %v1684 = vsel %vm1664, %v1647, 0
        %v1687 = vsel %vm1664, %v1648, 0
        %vm1689 = vcmask 1045504
        %v1691 = vsel %vm1689, %v1662, 0
        %1693 = vmatprep.subr.bf16.mxu0 0
        %1694 = vmatpush1.bf16.msra.mxu0 %v1661
        %1695 = vmatprep.subr.bf16.mxu0 0
        %1696 = vmatpush1.bf16.msra.mxu0 %v1691
        %1697 = vmatprep.subr.bf16.mxu0 0
        %1698 = vmatpush1.bf16.msra.mxu0 0
        %1699 = vmatprep.subr.bf16.mxu0 0
        %1700 = vmatpush1.bf16.msra.mxu0 0
        %1701 = vmatprep.subr.bf16.mxu0 0
        %1702 = vmatpush1.bf16.msra.mxu0 0
        %1703 = vmatprep.subr.bf16.mxu0 0
        %1704 = vmatpush1.bf16.msra.mxu0 0
        %1705 = vmatprep.subr.bf16.mxu0 0
        %1706 = vmatpush1.bf16.msra.mxu0 0
        %1707 = vmatprep.subr.bf16.mxu0 0
        %1708 = vmatpush1.bf16.msra.mxu0 0
        %1709 = vmatprep.subr.bf16.mxu0 0
        %1710 = vmatpush1.bf16.msra.mxu0 0
        %1711 = vmatprep.subr.bf16.mxu0 0
        %1712 = vmatpush1.bf16.msra.mxu0 0
        %1713 = vmatprep.subr.bf16.mxu0 0
        %1714 = vmatpush1.bf16.msra.mxu0 0
        %1715 = vmatprep.subr.bf16.mxu0 0
        %1716 = vmatpush1.bf16.msra.mxu0 0
        %1717 = vmatprep.subr.bf16.mxu0 0
        %1718 = vmatpush1.bf16.msra.mxu0 0
        %1719 = vmatprep.subr.bf16.mxu0 0
        %1720 = vmatpush1.bf16.msra.mxu0 0
        %1721 = vmatprep.subr.bf16.mxu0 0
        %1722 = vmatpush1.bf16.msra.mxu0 0
        %1723 = vmatprep.subr.bf16.mxu0 0
        %1724 = vmatpush1.bf16.msra.mxu0 0
        %1725 = vmatprep.mubr.bf16.mxu0 0
        %1726 = vmatmul.mubr.bf16.gmra.mrb[0].mxu0 %v1666
        %v1727 = vpop.f32.mrb[0].mxu0
        %v1728 = vadd.f32 0.0, %v1727
        %v1729 = vpop.f32.mrb[0].mxu0
        %v1730 = vpop.f32.mrb[0].mxu0
        %v1731 = vadd.f32 0.0, %v1730
        %v1732 = vpop.f32.mrb[0].mxu0
        %1733 = vmatprep.mubr.bf16.mxu0 0
        %1734 = vmatmul.mubr.bf16.gmra.mrb[0].mxu0 %v1669
        %v1735 = vpop.f32.mrb[0].mxu0
        %v1736 = vadd.f32 0.0, %v1735
        %v1737 = vpop.f32.mrb[0].mxu0
        %v1738 = vpop.f32.mrb[0].mxu0
        %v1739 = vadd.f32 0.0, %v1738
        %v1740 = vpop.f32.mrb[0].mxu0
        %1741 = vmatprep.mubr.bf16.mxu0 0
        %1742 = vmatmul.mubr.bf16.gmra.mrb[0].mxu0 %v1672
        %v1743 = vpop.f32.mrb[0].mxu0
        %v1744 = vadd.f32 0.0, %v1743
        %v1745 = vpop.f32.mrb[0].mxu0
        %v1746 = vpop.f32.mrb[0].mxu0
        %v1747 = vadd.f32 0.0, %v1746
        %v1748 = vpop.f32.mrb[0].mxu0
        %1749 = vmatprep.mubr.bf16.mxu0 0
        %1750 = vmatmul.mubr.bf16.gmra.mrb[0].mxu0 %v1675
        %v1751 = vpop.f32.mrb[0].mxu0
        %v1752 = vadd.f32 0.0, %v1751
        %v1753 = vpop.f32.mrb[0].mxu0
        %v1754 = vpop.f32.mrb[0].mxu0
        %v1755 = vadd.f32 0.0, %v1754
        %v1756 = vpop.f32.mrb[0].mxu0
        %1757 = vmatprep.mubr.bf16.mxu0 0
        %1758 = vmatmul.mubr.bf16.gmra.mrb[0].mxu0 %v1678
        %v1759 = vpop.f32.mrb[0].mxu0
        %v1760 = vadd.f32 0.0, %v1759
        %v1761 = vpop.f32.mrb[0].mxu0
        %v1762 = vpop.f32.mrb[0].mxu0
        %v1763 = vadd.f32 0.0, %v1762
        %v1764 = vpop.f32.mrb[0].mxu0
        %1765 = vmatprep.mubr.bf16.mxu0 0
        %1766 = vmatmul.mubr.bf16.gmra.mrb[0].mxu0 %v1681
        %v1767 = vpop.f32.mrb[0].mxu0
        %v1768 = vadd.f32 0.0, %v1767
        %v1769 = vpop.f32.mrb[0].mxu0
        %v1770 = vpop.f32.mrb[0].mxu0
        %v1771 = vadd.f32 0.0, %v1770
        %v1772 = vpop.f32.mrb[0].mxu0
        %1773 = vmatprep.mubr.bf16.mxu0 0
        %1774 = vmatmul.mubr.bf16.gmra.mrb[0].mxu0 %v1684
        %v1775 = vpop.f32.mrb[0].mxu0
        %v1776 = vadd.f32 0.0, %v1775
        %v1777 = vpop.f32.mrb[0].mxu0
        %v1778 = vpop.f32.mrb[0].mxu0
        %v1779 = vadd.f32 0.0, %v1778
        %v1780 = vpop.f32.mrb[0].mxu0
        %1781 = vmatprep.mubr.bf16.mxu0 0
        %1782 = vmatmul.mubr.bf16.gmra.mrb[0].mxu0 %v1687
        %v1783 = vpop.f32.mrb[0].mxu0
        %v1784 = vadd.f32 0.0, %v1783
        %v1785 = vpop.f32.mrb[0].mxu0
        %v1786 = vpop.f32.mrb[0].mxu0
        %v1787 = vadd.f32 0.0, %v1786
        %v1788 = vpop.f32.mrb[0].mxu0
        %1789 = vdwg.mxu0
        %v1790 = vld [vmem:[#allocation19] sm:$0x1]
        %v1792 = vlaneseq
        %v1793 = vshrl.u32 %v1792, 7
        %v1794 = vsub.s32 0, %v1793
        %v1795 = vrot.slane %v1790, %v1794
        %v1797 = vmul.f32 %v1728, %v1795
        %v1798 = vmul.f32 %v1731, %v1795
        %v1799 = vmul.f32 %v1736, %v1795
        %v1800 = vmul.f32 %v1739, %v1795
        %v1801 = vmul.f32 %v1744, %v1795
        %v1802 = vmul.f32 %v1747, %v1795
        %v1803 = vmul.f32 %v1752, %v1795
        %v1804 = vmul.f32 %v1755, %v1795
        %v1805 = vmul.f32 %v1760, %v1795
        %v1806 = vmul.f32 %v1763, %v1795
        %v1807 = vmul.f32 %v1768, %v1795
        %v1808 = vmul.f32 %v1771, %v1795
        %v1809 = vmul.f32 %v1776, %v1795
        %v1810 = vmul.f32 %v1779, %v1795
        %v1811 = vmul.f32 %v1784, %v1795
        %v1812 = vmul.f32 %v1787, %v1795
        %v1813 = vld [vmem:[#allocation20] sm:$0x1]
        %v1815 = vlaneseq
        %v1816 = vshrl.u32 %v1815, 7
        %v1817 = vsub.s32 0, %v1816
        %v1818 = vrot.slane %v1813, %v1817
        %v1820 = vadd.f32 %v1797, %v1818
        %v1821 = vadd.f32 %v1798, %v1818
        %v1822 = vadd.f32 %v1799, %v1818
        %v1823 = vadd.f32 %v1800, %v1818
        %v1824 = vadd.f32 %v1801, %v1818
        %v1825 = vadd.f32 %v1802, %v1818
        %v1826 = vadd.f32 %v1803, %v1818
        %v1827 = vadd.f32 %v1804, %v1818
        %v1828 = vadd.f32 %v1805, %v1818
        %v1829 = vadd.f32 %v1806, %v1818
        %v1830 = vadd.f32 %v1807, %v1818
        %v1831 = vadd.f32 %v1808, %v1818
        %v1832 = vadd.f32 %v1809, %v1818
        %v1833 = vadd.f32 %v1810, %v1818
        %v1834 = vadd.f32 %v1811, %v1818
        %v1835 = vadd.f32 %v1812, %v1818
        %v1836 = vmax.f32 %v1820, 0.0
        %v1837 = vmax.f32 %v1821, 0.0
        %v1838 = vmax.f32 %v1822, 0.0
        %v1839 = vmax.f32 %v1823, 0.0
        %v1840 = vmax.f32 %v1824, 0.0
        %v1841 = vmax.f32 %v1825, 0.0
        %v1842 = vmax.f32 %v1826, 0.0
        %v1843 = vmax.f32 %v1827, 0.0
        %v1844 = vmax.f32 %v1828, 0.0
        %v1845 = vmax.f32 %v1829, 0.0
        %v1846 = vmax.f32 %v1830, 0.0
        %v1847 = vmax.f32 %v1831, 0.0
        %v1848 = vmax.f32 %v1832, 0.0
        %v1849 = vmax.f32 %v1833, 0.0
        %v1850 = vmax.f32 %v1834, 0.0
        %v1851 = vmax.f32 %v1835, 0.0
        %v1852 = vmax.f32 %v1836, %v1844
        %v1853 = vmax.f32 %v1837, %v1845
        %v1854 = vmax.f32 %v1838, %v1846
        %v1855 = vmax.f32 %v1839, %v1847
        %v1856 = vmax.f32 %v1840, %v1848
        %v1857 = vmax.f32 %v1841, %v1849
        %v1858 = vmax.f32 %v1842, %v1850
        %v1859 = vmax.f32 %v1843, %v1851
        %vm1860 = vcmask 130048
        %1861 = vst.msk [vmem:[#allocation6 + $0x8] sm:$0xff] %vm1860, %v1852
        %1862 = vst.msk [vmem:[#allocation6 + $0x10] sm:$0xff] %vm1860, %v1853
        %1863 = vst.msk [vmem:[#allocation6 + $0x18] sm:$0xff] %vm1860, %v1854
        %1864 = vst.msk [vmem:[#allocation6 + $0x20] sm:$0xff] %vm1860, %v1855
        %1865 = vst.msk [vmem:[#allocation6 + $0x28] sm:$0xff] %vm1860, %v1856
        %1866 = vst.msk [vmem:[#allocation6 + $0x30] sm:$0xff] %vm1860, %v1857
        %1867 = vst.msk [vmem:[#allocation6 + $0x38] sm:$0xff] %vm1860, %v1858
        %vm1868 = vcmask 126976
        %1869 = vst.msk [vmem:[#allocation6 + $0x40] sm:$0x1f] %vm1868, %v1859
        %1870 = vst.msk [vmem:[#allocation6] sm:$0xff] %vm1860, 0.0
        %vm1871 = vcmask 124928
        %1872 = vst.msk [vmem:[#allocation6 + $0x45] sm:$0x7] %vm1871, 0.0
        %s1873 = scalar_lea.vmem [#allocation6], 7
        %v1874 = vld [vmem:[%s1873] ss:$2 sm:$0xff]
        %s1875 = scalar_lea.vmem [#allocation6], 23
        %v1876 = vld [vmem:[%s1875] ss:$2 sm:$0xff]
        %s1877 = scalar_lea.vmem [#allocation6], 39
        %v1878 = vld [vmem:[%s1877] ss:$2 sm:$0xff]
        %s1879 = scalar_lea.vmem [#allocation6], 55
        %v1880 = vld [vmem:[%s1879] ss:$2 sm:$0xf]
        %v1881 = vpack.c.bf16 %v1876, %v1874
        %v1882 = vpack.c.bf16 %v1880, %v1878
        %1883 = vst.msk [vmem:[#allocation7] sm:$0xff] %vm1860, %v1881
        %vm1884 = vcmask 128000
        %1885 = vst.msk [vmem:[#allocation7 + $0x8] sm:$0x3f] %vm1884, %v1882
        %s1886 = scalar_lea.vmem [#allocation6], 8
        %v1887 = vld [vmem:[%s1886] ss:$2 sm:$0xff]
        %s1888 = scalar_lea.vmem [#allocation6], 24
        %v1889 = vld [vmem:[%s1888] ss:$2 sm:$0xff]
        %s1890 = scalar_lea.vmem [#allocation6], 40
        %v1891 = vld [vmem:[%s1890] ss:$2 sm:$0xff]
        %s1892 = scalar_lea.vmem [#allocation6], 56
        %v1893 = vld [vmem:[%s1892] ss:$2 sm:$0xf]
        %v1894 = vpack.c.bf16 %v1889, %v1887
        %v1895 = vpack.c.bf16 %v1893, %v1891
        %1896 = vst.msk [vmem:[#allocation7 + $0x10] sm:$0xff] %vm1860, %v1894
        %1897 = vst.msk [vmem:[#allocation7 + $0x18] sm:$0x3f] %vm1884, %v1895
        %v1898 = vld [vmem:[%s1886] ss:$2 sm:$0xff]
        %v1899 = vld [vmem:[%s1888] ss:$2 sm:$0xff]
        %v1900 = vld [vmem:[%s1890] ss:$2 sm:$0xff]
        %v1901 = vld [vmem:[%s1892] ss:$2 sm:$0xf]
        %v1902 = vpack.c.bf16 %v1899, %v1898
        %v1903 = vpack.c.bf16 %v1901, %v1900
        %1906 = vrot.lane.b32.xlu0 %v1902, 16
        %v1907 = vpop.permute.xlu0 %1906
        %1908 = vrot.lane.b32.xlu0 %v1903, 16
        %v1909 = vpop.permute.xlu0 %1908
        %vm1912 = vcmask 261248
        %1913 = vst.msk [vmem:[#allocation7] sm:$0xff] %vm1912, %v1907
        %vm1914 = vcmask 259200
        %1915 = vst.msk [vmem:[#allocation7 + $0x8] sm:$0x3f] %vm1914, %v1909
        %s1916 = scalar_lea.vmem [#allocation6], 9
        %v1917 = vld [vmem:[%s1916] ss:$2 sm:$0xff]
        %s1918 = scalar_lea.vmem [#allocation6], 25
        %v1919 = vld [vmem:[%s1918] ss:$2 sm:$0xff]
        %s1920 = scalar_lea.vmem [#allocation6], 41
        %v1921 = vld [vmem:[%s1920] ss:$2 sm:$0xff]
        %s1922 = scalar_lea.vmem [#allocation6], 57
        %v1923 = vld [vmem:[%s1922] ss:$2 sm:$0xf]
        %v1924 = vpack.c.bf16 %v1919, %v1917
        %v1925 = vpack.c.bf16 %v1923, %v1921
        %1928 = vrot.lane.b32.xlu0 %v1924, 16
        %v1929 = vpop.permute.xlu0 %1928
        %1930 = vrot.lane.b32.xlu0 %v1925, 16
        %v1931 = vpop.permute.xlu0 %1930
        %1934 = vst.msk [vmem:[#allocation7 + $0x10] sm:$0xff] %vm1912, %v1929
        %1935 = vst.msk [vmem:[#allocation7 + $0x18] sm:$0x3f] %vm1914, %v1931
        %v1936 = vld [vmem:[%s1916] ss:$2 sm:$0xff]
        %v1937 = vld [vmem:[%s1918] ss:$2 sm:$0xff]
        %v1938 = vld [vmem:[%s1920] ss:$2 sm:$0xff]
        %v1939 = vld [vmem:[%s1922] ss:$2 sm:$0xf]
        %v1940 = vpack.c.bf16 %v1937, %v1936
        %v1941 = vpack.c.bf16 %v1939, %v1938
        %1944 = vrot.lane.b32.xlu0 %v1940, 32
        %v1945 = vpop.permute.xlu0 %1944
        %1946 = vrot.lane.b32.xlu0 %v1941, 32
        %v1947 = vpop.permute.xlu0 %1946
        %vm1950 = vcmask 392448
        %1951 = vst.msk [vmem:[#allocation7] sm:$0xff] %vm1950, %v1945
        %vm1952 = vcmask 390400
        %1953 = vst.msk [vmem:[#allocation7 + $0x8] sm:$0x3f] %vm1952, %v1947
        %s1954 = scalar_lea.vmem [#allocation6], 10
        %v1955 = vld [vmem:[%s1954] ss:$2 sm:$0xff]
        %s1956 = scalar_lea.vmem [#allocation6], 26
        %v1957 = vld [vmem:[%s1956] ss:$2 sm:$0xff]
        %s1958 = scalar_lea.vmem [#allocation6], 42
        %v1959 = vld [vmem:[%s1958] ss:$2 sm:$0xff]
        %s1960 = scalar_lea.vmem [#allocation6], 58
        %v1961 = vld [vmem:[%s1960] ss:$2 sm:$0xf]
        %v1962 = vpack.c.bf16 %v1957, %v1955
        %v1963 = vpack.c.bf16 %v1961, %v1959
        %1966 = vrot.lane.b32.xlu0 %v1962, 32
        %v1967 = vpop.permute.xlu0 %1966
        %1968 = vrot.lane.b32.xlu0 %v1963, 32
        %v1969 = vpop.permute.xlu0 %1968
        %1972 = vst.msk [vmem:[#allocation7 + $0x10] sm:$0xff] %vm1950, %v1967
        %1973 = vst.msk [vmem:[#allocation7 + $0x18] sm:$0x3f] %vm1952, %v1969
        %v1974 = vld [vmem:[%s1954] ss:$2 sm:$0xff]
        %v1975 = vld [vmem:[%s1956] ss:$2 sm:$0xff]
        %v1976 = vld [vmem:[%s1958] ss:$2 sm:$0xff]
        %v1977 = vld [vmem:[%s1960] ss:$2 sm:$0xf]
        %v1978 = vpack.c.bf16 %v1975, %v1974
        %v1979 = vpack.c.bf16 %v1977, %v1976
        %1982 = vrot.lane.b32.xlu0 %v1978, 48
        %v1983 = vpop.permute.xlu0 %1982
        %1984 = vrot.lane.b32.xlu0 %v1979, 48
        %v1985 = vpop.permute.xlu0 %1984
        %vm1988 = vcmask 523648
        %1989 = vst.msk [vmem:[#allocation7] sm:$0xff] %vm1988, %v1983
        %vm1990 = vcmask 521600
        %1991 = vst.msk [vmem:[#allocation7 + $0x8] sm:$0x3f] %vm1990, %v1985
        %s1992 = scalar_lea.vmem [#allocation6], 11
        %v1993 = vld [vmem:[%s1992] ss:$2 sm:$0xff]
        %s1994 = scalar_lea.vmem [#allocation6], 27
        %v1995 = vld [vmem:[%s1994] ss:$2 sm:$0xff]
        %s1996 = scalar_lea.vmem [#allocation6], 43
        %v1997 = vld [vmem:[%s1996] ss:$2 sm:$0xff]
        %s1998 = scalar_lea.vmem [#allocation6], 59
        %v1999 = vld [vmem:[%s1998] ss:$2 sm:$0xf]
        %v2000 = vpack.c.bf16 %v1995, %v1993
        %v2001 = vpack.c.bf16 %v1999, %v1997
        %2004 = vrot.lane.b32.xlu0 %v2000, 48
        %v2005 = vpop.permute.xlu0 %2004
        %2006 = vrot.lane.b32.xlu0 %v2001, 48
        %v2007 = vpop.permute.xlu0 %2006
        %2010 = vst.msk [vmem:[#allocation7 + $0x10] sm:$0xff] %vm1988, %v2005
        %2011 = vst.msk [vmem:[#allocation7 + $0x18] sm:$0x3f] %vm1990, %v2007
        %v2012 = vld [vmem:[%s1992] ss:$2 sm:$0xff]
        %v2013 = vld [vmem:[%s1994] ss:$2 sm:$0xff]
        %v2014 = vld [vmem:[%s1996] ss:$2 sm:$0xff]
        %v2015 = vld [vmem:[%s1998] ss:$2 sm:$0xf]
        %v2016 = vpack.c.bf16 %v2013, %v2012
        %v2017 = vpack.c.bf16 %v2015, %v2014
        %2020 = vrot.lane.b32.xlu0 %v2016, 64
        %v2021 = vpop.permute.xlu0 %2020
        %2022 = vrot.lane.b32.xlu0 %v2017, 64
        %v2023 = vpop.permute.xlu0 %2022
        %vm2026 = vcmask 654848
        %2027 = vst.msk [vmem:[#allocation7] sm:$0xff] %vm2026, %v2021
        %vm2028 = vcmask 652800
        %2029 = vst.msk [vmem:[#allocation7 + $0x8] sm:$0x3f] %vm2028, %v2023
        %s2030 = scalar_lea.vmem [#allocation6], 12
        %v2031 = vld [vmem:[%s2030] ss:$2 sm:$0xff]
        %s2032 = scalar_lea.vmem [#allocation6], 28
        %v2033 = vld [vmem:[%s2032] ss:$2 sm:$0xff]
        %s2034 = scalar_lea.vmem [#allocation6], 44
        %v2035 = vld [vmem:[%s2034] ss:$2 sm:$0xff]
        %s2036 = scalar_lea.vmem [#allocation6], 60
        %v2037 = vld [vmem:[%s2036] ss:$2 sm:$0xf]
        %v2038 = vpack.c.bf16 %v2033, %v2031
        %v2039 = vpack.c.bf16 %v2037, %v2035
        %2042 = vrot.lane.b32.xlu0 %v2038, 64
        %v2043 = vpop.permute.xlu0 %2042
        %2044 = vrot.lane.b32.xlu0 %v2039, 64
        %v2045 = vpop.permute.xlu0 %2044
        %2048 = vst.msk [vmem:[#allocation7 + $0x10] sm:$0xff] %vm2026, %v2043
        %2049 = vst.msk [vmem:[#allocation7 + $0x18] sm:$0x3f] %vm2028, %v2045
        %v2050 = vld [vmem:[%s2030] ss:$2 sm:$0xff]
        %v2051 = vld [vmem:[%s2032] ss:$2 sm:$0xff]
        %v2052 = vld [vmem:[%s2034] ss:$2 sm:$0xff]
        %v2053 = vld [vmem:[%s2036] ss:$2 sm:$0xf]
        %v2054 = vpack.c.bf16 %v2051, %v2050
        %v2055 = vpack.c.bf16 %v2053, %v2052
        %2058 = vrot.lane.b32.xlu0 %v2054, 80
        %v2059 = vpop.permute.xlu0 %2058
        %2060 = vrot.lane.b32.xlu0 %v2055, 80
        %v2061 = vpop.permute.xlu0 %2060
        %vm2064 = vcmask 786048
        %2065 = vst.msk [vmem:[#allocation7] sm:$0xff] %vm2064, %v2059
        %vm2066 = vcmask 784000
        %2067 = vst.msk [vmem:[#allocation7 + $0x8] sm:$0x3f] %vm2066, %v2061
        %s2068 = scalar_lea.vmem [#allocation6], 13
        %v2069 = vld [vmem:[%s2068] ss:$2 sm:$0xff]
        %s2070 = scalar_lea.vmem [#allocation6], 29
        %v2071 = vld [vmem:[%s2070] ss:$2 sm:$0xff]
        %s2072 = scalar_lea.vmem [#allocation6], 45
        %v2073 = vld [vmem:[%s2072] ss:$2 sm:$0xff]
        %s2074 = scalar_lea.vmem [#allocation6], 61
        %v2075 = vld [vmem:[%s2074] ss:$2 sm:$0xf]
        %v2076 = vpack.c.bf16 %v2071, %v2069
        %v2077 = vpack.c.bf16 %v2075, %v2073
        %2080 = vrot.lane.b32.xlu0 %v2076, 80
        %v2081 = vpop.permute.xlu0 %2080
        %2082 = vrot.lane.b32.xlu0 %v2077, 80
        %v2083 = vpop.permute.xlu0 %2082
        %2086 = vst.msk [vmem:[#allocation7 + $0x10] sm:$0xff] %vm2064, %v2081
        %2087 = vst.msk [vmem:[#allocation7 + $0x18] sm:$0x3f] %vm2066, %v2083
        %v2088 = vld [vmem:[%s2068] ss:$2 sm:$0xff]
        %v2089 = vld [vmem:[%s2070] ss:$2 sm:$0xff]
        %v2090 = vld [vmem:[%s2072] ss:$2 sm:$0xff]
        %v2091 = vld [vmem:[%s2074] ss:$2 sm:$0xf]
        %v2092 = vpack.c.bf16 %v2089, %v2088
        %v2093 = vpack.c.bf16 %v2091, %v2090
        %2096 = vrot.lane.b32.xlu0 %v2092, 96
        %v2097 = vpop.permute.xlu0 %2096
        %2098 = vrot.lane.b32.xlu0 %v2093, 96
        %v2099 = vpop.permute.xlu0 %2098
        %vm2102 = vcmask 917248
        %2103 = vst.msk [vmem:[#allocation7] sm:$0xff] %vm2102, %v2097
        %vm2104 = vcmask 915200
        %2105 = vst.msk [vmem:[#allocation7 + $0x8] sm:$0x3f] %vm2104, %v2099
        %s2106 = scalar_lea.vmem [#allocation6], 14
        %v2107 = vld [vmem:[%s2106] ss:$2 sm:$0xff]
        %s2108 = scalar_lea.vmem [#allocation6], 30
        %v2109 = vld [vmem:[%s2108] ss:$2 sm:$0xff]
        %s2110 = scalar_lea.vmem [#allocation6], 46
        %v2111 = vld [vmem:[%s2110] ss:$2 sm:$0xff]
        %s2112 = scalar_lea.vmem [#allocation6], 62
        %v2113 = vld [vmem:[%s2112] ss:$2 sm:$0xf]
        %v2114 = vpack.c.bf16 %v2109, %v2107
        %v2115 = vpack.c.bf16 %v2113, %v2111
        %2118 = vrot.lane.b32.xlu0 %v2114, 96
        %v2119 = vpop.permute.xlu0 %2118
        %2120 = vrot.lane.b32.xlu0 %v2115, 96
        %v2121 = vpop.permute.xlu0 %2120
        %2124 = vst.msk [vmem:[#allocation7 + $0x10] sm:$0xff] %vm2102, %v2119
        %2125 = vst.msk [vmem:[#allocation7 + $0x18] sm:$0x3f] %vm2104, %v2121
        %v2126 = vld [vmem:[#allocation7] sm:$0xff]
        %v2127 = vld [vmem:[#allocation7 + $0x8] sm:$0xff]
        %v2128 = vld [vmem:[#allocation7 + $0x10] sm:$0xff]
        %v2129 = vld [vmem:[#allocation7 + $0x18] sm:$0xff]
        %v2130 = vld [vmem:[%s7] sm:$0xf]
        %v2131 = vld [vmem:[%s7 + $0x4] sm:$0xf]
        %v2132 = vld [vmem:[%s7 + $0x8] sm:$0xf]
        %v2133 = vld [vmem:[%s7 + $0xc] sm:$0xf]
        %v2134 = vld [vmem:[%s7 + $0x10] sm:$0xf]
        %v2135 = vld [vmem:[%s7 + $0x14] sm:$0xf]
        %v2136 = vld [vmem:[%s7 + $0x18] sm:$0xf]
        %v2137 = vld [vmem:[%s7 + $0x1c] sm:$0xf]
        %v2138 = vld [vmem:[%s7 + $0x20] sm:$0xf]
        %v2139 = vld [vmem:[%s7 + $0x24] sm:$0xf]
        %v2140 = vld [vmem:[%s7 + $0x28] sm:$0xf]
        %v2141 = vld [vmem:[%s7 + $0x2c] sm:$0xf]
        %v2142 = vld [vmem:[%s7 + $0x30] sm:$0xf]
        %v2143 = vld [vmem:[%s7 + $0x34] sm:$0xf]
        %v2158 = vunpack.c.l.b16 %v2130
        %v2159 = vunpack.c.l.b16 %v2131
        %v2160 = vunpack.c.l.b16 %v2132
        %v2161 = vunpack.c.l.b16 %v2133
        %v2162 = vunpack.c.l.b16 %v2134
        %v2163 = vunpack.c.l.b16 %v2135
        %v2164 = vunpack.c.l.b16 %v2136
        %v2165 = vunpack.c.l.b16 %v2137
        %v2166 = vunpack.c.l.b16 %v2138
        %v2167 = vunpack.c.l.b16 %v2139
        %v2168 = vunpack.c.l.b16 %v2140
        %v2169 = vunpack.c.l.b16 %v2141
        %v2170 = vunpack.c.l.b16 %v2142
        %v2171 = vunpack.c.l.b16 %v2143
        %v2172 = vpack.c.b16 %v2159, %v2158
        %v2173 = vpack.c.b16 %v2161, %v2160
        %v2174 = vpack.c.b16 %v2163, %v2162
        %v2175 = vpack.c.b16 %v2165, %v2164
        %v2176 = vpack.c.b16 %v2167, %v2166
        %v2177 = vpack.c.b16 %v2169, %v2168
        %v2178 = vpack.c.b16 %v2171, %v2170
        %vm2186 = vcmask 916480
        %v2188 = vsel %vm2186, %v2126, 0
        %v2191 = vsel %vm2186, %v2127, 0
        %v2194 = vsel %vm2186, %v2128, 0
        %v2197 = vsel %vm2186, %v2129, 0
        %2199 = vmatprep.subr.bf16.mxu0 0
        %2200 = vmatpush1.bf16.msra.mxu0 %v2172
        %2201 = vmatprep.subr.bf16.mxu0 0
        %2202 = vmatpush1.bf16.msra.mxu0 %v2173
        %2203 = vmatprep.subr.bf16.mxu0 0
        %2204 = vmatpush1.bf16.msra.mxu0 %v2174
        %2205 = vmatprep.subr.bf16.mxu0 0
        %2206 = vmatpush1.bf16.msra.mxu0 %v2175
        %2207 = vmatprep.subr.bf16.mxu0 0
        %2208 = vmatpush1.bf16.msra.mxu0 %v2176
        %2209 = vmatprep.subr.bf16.mxu0 0
        %2210 = vmatpush1.bf16.msra.mxu0 %v2177
        %2211 = vmatprep.subr.bf16.mxu0 0
        %2212 = vmatpush1.bf16.msra.mxu0 %v2178
        %2213 = vmatprep.subr.bf16.mxu0 0
        %2214 = vmatpush1.bf16.msra.mxu0 0
        %2215 = vmatprep.subr.bf16.mxu0 0
        %2216 = vmatpush1.bf16.msra.mxu0 0
        %2217 = vmatprep.subr.bf16.mxu0 0
        %2218 = vmatpush1.bf16.msra.mxu0 0
        %2219 = vmatprep.subr.bf16.mxu0 0
        %2220 = vmatpush1.bf16.msra.mxu0 0
        %2221 = vmatprep.subr.bf16.mxu0 0
        %2222 = vmatpush1.bf16.msra.mxu0 0
        %2223 = vmatprep.subr.bf16.mxu0 0
        %2224 = vmatpush1.bf16.msra.mxu0 0
        %2225 = vmatprep.subr.bf16.mxu0 0
        %2226 = vmatpush1.bf16.msra.mxu0 0
        %2227 = vmatprep.subr.bf16.mxu0 0
        %2228 = vmatpush1.bf16.msra.mxu0 0
        %2229 = vmatprep.subr.bf16.mxu0 0
        %2230 = vmatpush1.bf16.msra.mxu0 0
        %2231 = vmatprep.mubr.bf16.mxu0 0
        %2232 = vmatmul.mubr.bf16.gmra.mrb[0].mxu0 %v2188
        %v2233 = vpop.f32.mrb[0].mxu0
        %v2234 = vadd.f32 0.0, %v2233
        %v2235 = vpop.f32.mrb[0].mxu0
        %v2236 = vpop.f32.mrb[0].mxu0
        %v2237 = vadd.f32 0.0, %v2236
        %v2238 = vpop.f32.mrb[0].mxu0
        %2239 = vmatprep.mubr.bf16.mxu0 0
        %2240 = vmatmul.mubr.bf16.gmra.mrb[0].mxu0 %v2191
        %v2241 = vpop.f32.mrb[0].mxu0
        %v2242 = vadd.f32 0.0, %v2241
        %v2243 = vpop.f32.mrb[0].mxu0
        %v2244 = vpop.f32.mrb[0].mxu0
        %v2245 = vadd.f32 0.0, %v2244
        %v2246 = vpop.f32.mrb[0].mxu0
        %2247 = vmatprep.mubr.bf16.mxu0 0
        %2248 = vmatmul.mubr.bf16.gmra.mrb[0].mxu0 %v2194
        %v2249 = vpop.f32.mrb[0].mxu0
        %v2250 = vadd.f32 0.0, %v2249
        %v2251 = vpop.f32.mrb[0].mxu0
        %v2252 = vpop.f32.mrb[0].mxu0
        %v2253 = vadd.f32 0.0, %v2252
        %v2254 = vpop.f32.mrb[0].mxu0
        %2255 = vmatprep.mubr.bf16.mxu0 0
        %2256 = vmatmul.mubr.bf16.gmra.mrb[0].mxu0 %v2197
        %v2257 = vpop.f32.mrb[0].mxu0
        %v2258 = vadd.f32 0.0, %v2257
        %v2259 = vpop.f32.mrb[0].mxu0
        %v2260 = vpop.f32.mrb[0].mxu0
        %v2261 = vadd.f32 0.0, %v2260
        %v2262 = vpop.f32.mrb[0].mxu0
        %2263 = vdwg.mxu0
        %v2264 = vld [vmem:[#allocation22] sm:$0x1]
        %v2266 = vlaneseq
        %v2267 = vshrl.u32 %v2266, 7
        %v2268 = vsub.s32 0, %v2267
        %v2269 = vrot.slane %v2264, %v2268
        %v2271 = vmul.f32 %v2234, %v2269
        %v2272 = vmul.f32 %v2237, %v2269
        %v2273 = vmul.f32 %v2242, %v2269
        %v2274 = vmul.f32 %v2245, %v2269
        %v2275 = vmul.f32 %v2250, %v2269
        %v2276 = vmul.f32 %v2253, %v2269
        %v2277 = vmul.f32 %v2258, %v2269
        %v2278 = vmul.f32 %v2261, %v2269
        %v2279 = vld [vmem:[#allocation23] sm:$0x1]
        %v2281 = vlaneseq
        %v2282 = vshrl.u32 %v2281, 7
        %v2283 = vsub.s32 0, %v2282
        %v2284 = vrot.slane %v2279, %v2283
        %v2286 = vadd.f32 %v2271, %v2284
        %v2287 = vadd.f32 %v2272, %v2284
        %v2288 = vadd.f32 %v2273, %v2284
        %v2289 = vadd.f32 %v2274, %v2284
        %v2290 = vadd.f32 %v2275, %v2284
        %v2291 = vadd.f32 %v2276, %v2284
        %v2292 = vadd.f32 %v2277, %v2284
        %v2293 = vadd.f32 %v2278, %v2284
        %v2294 = vmax.f32 %v2286, 0.0
        %v2295 = vmax.f32 %v2287, 0.0
        %v2296 = vmax.f32 %v2288, 0.0
        %v2297 = vmax.f32 %v2289, 0.0
        %v2298 = vmax.f32 %v2290, 0.0
        %v2299 = vmax.f32 %v2291, 0.0
        %v2300 = vmax.f32 %v2292, 0.0
        %v2301 = vmax.f32 %v2293, 0.0
        %v2302 = vmax.f32 %v2294, %v2298
        %v2303 = vmax.f32 %v2295, %v2299
        %v2304 = vmax.f32 %v2296, %v2300
        %v2305 = vmax.f32 %v2297, %v2301
        %vm2306 = vcmask 261120
        %2307 = vst.msk [vmem:[#allocation8 + $0x8] sm:$0xff] %vm2306, %v2302
        %2308 = vst.msk [vmem:[#allocation8 + $0x10] sm:$0xff] %vm2306, %v2303
        %2309 = vst.msk [vmem:[#allocation8 + $0x18] sm:$0xff] %vm2306, %v2304
        %vm2310 = vcmask 257024
        %2311 = vst.msk [vmem:[#allocation8 + $0x20] sm:$0xf] %vm2310, %v2305
        %2312 = vst.msk [vmem:[#allocation8] sm:$0xff] %vm2306, 0.0
        %2313 = vst.msk [vmem:[#allocation8 + $0x24] sm:$0xf] %vm2310, 0.0
        %s2314 = scalar_lea.vmem [#allocation8], 7
        %v2315 = vld [vmem:[%s2314] ss:$2 sm:$0xff]
        %s2316 = scalar_lea.vmem [#allocation8], 23
        %v2317 = vld [vmem:[%s2316] ss:$2 sm:$0xf]
        %v2318 = vpack.c.bf16 %v2317, %v2315
        %vm2319 = vcmask 259072
        %2320 = vst.msk [vmem:[#allocation9] sm:$0x3f] %vm2319, %v2318
        %s2321 = scalar_lea.vmem [#allocation8], 8
        %v2322 = vld [vmem:[%s2321] ss:$2 sm:$0xff]
        %s2323 = scalar_lea.vmem [#allocation8], 24
        %v2324 = vld [vmem:[%s2323] ss:$2 sm:$0xf]
        %v2325 = vpack.c.bf16 %v2324, %v2322
        %2326 = vst.msk [vmem:[#allocation9 + $0x10] sm:$0x3f] %vm2319, %v2325
        %v2327 = vld [vmem:[%s2321] ss:$2 sm:$0xff]
        %v2328 = vld [vmem:[%s2323] ss:$2 sm:$0xf]
        %v2329 = vpack.c.bf16 %v2328, %v2327
        %2331 = vrot.lane.b32.xlu0 %v2329, 32
        %v2332 = vpop.permute.xlu0 %2331
        %vm2334 = vcmask 521472
        %2335 = vst.msk [vmem:[#allocation9] sm:$0x3f] %vm2334, %v2332
        %s2336 = scalar_lea.vmem [#allocation8], 9
        %v2337 = vld [vmem:[%s2336] ss:$2 sm:$0xff]
        %s2338 = scalar_lea.vmem [#allocation8], 25
        %v2339 = vld [vmem:[%s2338] ss:$2 sm:$0xf]
        %v2340 = vpack.c.bf16 %v2339, %v2337
        %2342 = vrot.lane.b32.xlu0 %v2340, 32
        %v2343 = vpop.permute.xlu0 %2342
        %2345 = vst.msk [vmem:[#allocation9 + $0x10] sm:$0x3f] %vm2334, %v2343
        %v2346 = vld [vmem:[%s2336] ss:$2 sm:$0xff]
        %v2347 = vld [vmem:[%s2338] ss:$2 sm:$0xf]
        %v2348 = vpack.c.bf16 %v2347, %v2346
        %2350 = vrot.lane.b32.xlu0 %v2348, 64
        %v2351 = vpop.permute.xlu0 %2350
        %vm2353 = vcmask 783872
        %2354 = vst.msk [vmem:[#allocation9] sm:$0x3f] %vm2353, %v2351
        %s2355 = scalar_lea.vmem [#allocation8], 10
        %v2356 = vld [vmem:[%s2355] ss:$2 sm:$0xff]
        %s2357 = scalar_lea.vmem [#allocation8], 26
        %v2358 = vld [vmem:[%s2357] ss:$2 sm:$0xf]
        %v2359 = vpack.c.bf16 %v2358, %v2356
        %2361 = vrot.lane.b32.xlu0 %v2359, 64
        %v2362 = vpop.permute.xlu0 %2361
        %2364 = vst.msk [vmem:[#allocation9 + $0x10] sm:$0x3f] %vm2353, %v2362
        %v2365 = vld [vmem:[%s2355] ss:$2 sm:$0xff]
        %v2366 = vld [vmem:[%s2357] ss:$2 sm:$0xf]
        %v2367 = vpack.c.bf16 %v2366, %v2365
        %2369 = vrot.lane.b32.xlu0 %v2367, 96
        %v2370 = vpop.permute.xlu0 %2369
        %vm2372 = vcmask 1046272
        %2373 = vst.msk [vmem:[#allocation9] sm:$0x3f] %vm2372, %v2370
        %s2374 = scalar_lea.vmem [#allocation8], 11
        %v2375 = vld [vmem:[%s2374] ss:$2 sm:$0xff]
        %s2376 = scalar_lea.vmem [#allocation8], 27
        %v2377 = vld [vmem:[%s2376] ss:$2 sm:$0xf]
        %v2378 = vpack.c.bf16 %v2377, %v2375
        %2380 = vrot.lane.b32.xlu0 %v2378, 96
        %v2381 = vpop.permute.xlu0 %2380
        %2383 = vst.msk [vmem:[#allocation9 + $0x10] sm:$0x3f] %vm2372, %v2381
        %v2384 = vld [vmem:[%s2374] ss:$2 sm:$0xff]
        %v2385 = vld [vmem:[%s2376] ss:$2 sm:$0xf]
        %v2386 = vpack.c.bf16 %v2385, %v2384
        %2387 = vst.msk [vmem:[#allocation9 + $0x8] sm:$0x3f] %vm2319, %v2386
        %s2388 = scalar_lea.vmem [#allocation8], 12
        %v2389 = vld [vmem:[%s2388] ss:$2 sm:$0xff]
        %s2390 = scalar_lea.vmem [#allocation8], 28
        %v2391 = vld [vmem:[%s2390] ss:$2 sm:$0xf]
        %v2392 = vpack.c.bf16 %v2391, %v2389
        %2393 = vst.msk [vmem:[#allocation9 + $0x18] sm:$0x3f] %vm2319, %v2392
        %v2394 = vld [vmem:[%s2388] ss:$2 sm:$0xff]
        %v2395 = vld [vmem:[%s2390] ss:$2 sm:$0xf]
        %v2396 = vpack.c.bf16 %v2395, %v2394
        %2398 = vrot.lane.b32.xlu0 %v2396, 32
        %v2399 = vpop.permute.xlu0 %2398
        %2401 = vst.msk [vmem:[#allocation9 + $0x8] sm:$0x3f] %vm2334, %v2399
        %s2402 = scalar_lea.vmem [#allocation8], 13
        %v2403 = vld [vmem:[%s2402] ss:$2 sm:$0xff]
        %s2404 = scalar_lea.vmem [#allocation8], 29
        %v2405 = vld [vmem:[%s2404] ss:$2 sm:$0xf]
        %v2406 = vpack.c.bf16 %v2405, %v2403
        %2408 = vrot.lane.b32.xlu0 %v2406, 32
        %v2409 = vpop.permute.xlu0 %2408
        %2411 = vst.msk [vmem:[#allocation9 + $0x18] sm:$0x3f] %vm2334, %v2409
        %v2412 = vld [vmem:[%s2402] ss:$2 sm:$0xff]
        %v2413 = vld [vmem:[%s2404] ss:$2 sm:$0xf]
        %v2414 = vpack.c.bf16 %v2413, %v2412
        %2416 = vrot.lane.b32.xlu0 %v2414, 64
        %v2417 = vpop.permute.xlu0 %2416
        %2419 = vst.msk [vmem:[#allocation9 + $0x8] sm:$0x3f] %vm2353, %v2417
        %s2420 = scalar_lea.vmem [#allocation8], 14
        %v2421 = vld [vmem:[%s2420] ss:$2 sm:$0xff]
        %s2422 = scalar_lea.vmem [#allocation8], 30
        %v2423 = vld [vmem:[%s2422] ss:$2 sm:$0xf]
        %v2424 = vpack.c.bf16 %v2423, %v2421
        %2426 = vrot.lane.b32.xlu0 %v2424, 64
        %v2427 = vpop.permute.xlu0 %2426
        %2429 = vst.msk [vmem:[#allocation9 + $0x18] sm:$0x3f] %vm2353, %v2427
        %v2430 = vld [vmem:[#allocation9] sm:$0xff]
        %v2431 = vld [vmem:[#allocation9 + $0x8] sm:$0xff]
        %v2432 = vld [vmem:[#allocation9 + $0x10] sm:$0xff]
        %v2433 = vld [vmem:[#allocation9 + $0x18] sm:$0xff]
        %v2434 = vld [vmem:[#allocation25] sm:$0xf]
        %v2435 = vld [vmem:[#allocation25 + $0x4] sm:$0xf]
        %v2436 = vld [vmem:[#allocation25 + $0x8] sm:$0xf]
        %v2437 = vld [vmem:[#allocation25 + $0xc] sm:$0xf]
        %v2438 = vld [vmem:[#allocation25 + $0x10] sm:$0xf]
        %v2439 = vld [vmem:[#allocation25 + $0x14] sm:$0xf]
        %v2440 = vld [vmem:[#allocation25 + $0x18] sm:$0xf]
        %v2441 = vld [vmem:[#allocation25 + $0x1c] sm:$0xf]
        %v2442 = vld [vmem:[#allocation25 + $0x20] sm:$0xf]
        %v2443 = vld [vmem:[#allocation25 + $0x24] sm:$0xf]
        %v2444 = vld [vmem:[#allocation25 + $0x28] sm:$0xf]
        %v2445 = vld [vmem:[#allocation25 + $0x2c] sm:$0xf]
        %v2446 = vld [vmem:[#allocation25 + $0x30] sm:$0xf]
        %v2447 = vld [vmem:[#allocation25 + $0x34] sm:$0xf]
        %v2448 = vld [vmem:[#allocation25 + $0x38] sm:$0xf]
        %v2449 = vld [vmem:[#allocation25 + $0x3c] sm:$0xf]
        %v2450 = vld [vmem:[#allocation25 + $0x40] sm:$0xf]
        %v2451 = vld [vmem:[#allocation25 + $0x44] sm:$0xf]
        %v2452 = vld [vmem:[#allocation25 + $0x48] sm:$0xf]
        %v2453 = vld [vmem:[#allocation25 + $0x4c] sm:$0xf]
        %v2454 = vld [vmem:[#allocation25 + $0x50] sm:$0xf]
        %v2455 = vld [vmem:[#allocation25 + $0x54] sm:$0xf]
        %v2456 = vld [vmem:[#allocation25 + $0x58] sm:$0xf]
        %v2457 = vld [vmem:[#allocation25 + $0x5c] sm:$0xf]
        %v2458 = vld [vmem:[#allocation25 + $0x60] sm:$0xf]
        %v2459 = vld [vmem:[#allocation25 + $0x64] sm:$0xf]
        %v2460 = vld [vmem:[#allocation25 + $0x68] sm:$0xf]
        %v2461 = vld [vmem:[#allocation25 + $0x6c] sm:$0xf]
        %v2490 = vunpack.c.l.b16 %v2434
        %v2491 = vunpack.c.l.b16 %v2435
        %v2492 = vunpack.c.l.b16 %v2436
        %v2493 = vunpack.c.l.b16 %v2437
        %v2494 = vunpack.c.l.b16 %v2438
        %v2495 = vunpack.c.l.b16 %v2439
        %v2496 = vunpack.c.l.b16 %v2440
        %v2497 = vunpack.c.l.b16 %v2441
        %v2498 = vunpack.c.l.b16 %v2442
        %v2499 = vunpack.c.l.b16 %v2443
        %v2500 = vunpack.c.l.b16 %v2444
        %v2501 = vunpack.c.l.b16 %v2445
        %v2502 = vunpack.c.l.b16 %v2446
        %v2503 = vunpack.c.l.b16 %v2447
        %v2504 = vunpack.c.l.b16 %v2448
        %v2505 = vunpack.c.l.b16 %v2449
        %v2506 = vunpack.c.l.b16 %v2450
        %v2507 = vunpack.c.l.b16 %v2451
        %v2508 = vunpack.c.l.b16 %v2452
        %v2509 = vunpack.c.l.b16 %v2453
        %v2510 = vunpack.c.l.b16 %v2454
        %v2511 = vunpack.c.l.b16 %v2455
        %v2512 = vunpack.c.l.b16 %v2456
        %v2513 = vunpack.c.l.b16 %v2457
        %v2514 = vunpack.c.l.b16 %v2458
        %v2515 = vunpack.c.l.b16 %v2459
        %v2516 = vunpack.c.l.b16 %v2460
        %v2517 = vunpack.c.l.b16 %v2461
        %v2518 = vpack.c.b16 %v2491, %v2490
        %v2519 = vpack.c.b16 %v2493, %v2492
        %v2520 = vpack.c.b16 %v2495, %v2494
        %v2521 = vpack.c.b16 %v2497, %v2496
        %v2522 = vpack.c.b16 %v2499, %v2498
        %v2523 = vpack.c.b16 %v2501, %v2500
        %v2524 = vpack.c.b16 %v2503, %v2502
        %v2525 = vpack.c.b16 %v2505, %v2504
        %v2526 = vpack.c.b16 %v2507, %v2506
        %v2527 = vpack.c.b16 %v2509, %v2508
        %v2528 = vpack.c.b16 %v2511, %v2510
        %v2529 = vpack.c.b16 %v2513, %v2512
        %v2530 = vpack.c.b16 %v2515, %v2514
        %v2531 = vpack.c.b16 %v2517, %v2516
        %vm2546 = vcmask 785408
        %v2548 = vsel %vm2546, %v2431, 0
        %v2551 = vsel %vm2546, %v2433, 0
        %2553 = vmatprep.subr.bf16.mxu0 0
        %2554 = vmatpush1.bf16.msra.mxu0 %v2518
        %2555 = vmatprep.subr.bf16.mxu0 0
        %2556 = vmatpush1.bf16.msra.mxu0 %v2519
        %2557 = vmatprep.subr.bf16.mxu0 0
        %2558 = vmatpush1.bf16.msra.mxu0 %v2520
        %2559 = vmatprep.subr.bf16.mxu0 0
        %2560 = vmatpush1.bf16.msra.mxu0 %v2521
        %2561 = vmatprep.subr.bf16.mxu0 0
        %2562 = vmatpush1.bf16.msra.mxu0 %v2522
        %2563 = vmatprep.subr.bf16.mxu0 0
        %2564 = vmatpush1.bf16.msra.mxu0 %v2523
        %2565 = vmatprep.subr.bf16.mxu0 0
        %2566 = vmatpush1.bf16.msra.mxu0 %v2524
        %2567 = vmatprep.subr.bf16.mxu0 0
        %2568 = vmatpush1.bf16.msra.mxu0 %v2525
        %2569 = vmatprep.subr.bf16.mxu0 0
        %2570 = vmatpush1.bf16.msra.mxu0 %v2526
        %2571 = vmatprep.subr.bf16.mxu0 0
        %2572 = vmatpush1.bf16.msra.mxu0 %v2527
        %2573 = vmatprep.subr.bf16.mxu0 0
        %2574 = vmatpush1.bf16.msra.mxu0 %v2528
        %2575 = vmatprep.subr.bf16.mxu0 0
        %2576 = vmatpush1.bf16.msra.mxu0 %v2529
        %2577 = vmatprep.subr.bf16.mxu0 0
        %2578 = vmatpush1.bf16.msra.mxu0 %v2530
        %2579 = vmatprep.subr.bf16.mxu0 0
        %2580 = vmatpush1.bf16.msra.mxu0 %v2531
        %2581 = vmatprep.subr.bf16.mxu0 0
        %2582 = vmatpush1.bf16.msra.mxu0 0
        %2583 = vmatprep.subr.bf16.mxu0 0
        %2584 = vmatpush1.bf16.msra.mxu0 0
        %2585 = vmatprep.mubr.bf16.mxu0 %v2548
        %2586 = vmatmul.mubr.bf16.gmra.mrb[0].mxu0 %v2430
        %v2587 = vpop.f32.mrb[0].mxu0
        %v2588 = vadd.f32 0.0, %v2587
        %v2589 = vpop.f32.mrb[0].mxu0
        %v2590 = vpop.f32.mrb[0].mxu0
        %v2591 = vadd.f32 0.0, %v2590
        %v2592 = vpop.f32.mrb[0].mxu0
        %2593 = vmatprep.mubr.bf16.mxu0 %v2551
        %2594 = vmatmul.mubr.bf16.gmra.mrb[0].mxu0 %v2432
        %v2595 = vpop.f32.mrb[0].mxu0
        %v2596 = vadd.f32 0.0, %v2595
        %v2597 = vpop.f32.mrb[0].mxu0
        %v2598 = vpop.f32.mrb[0].mxu0
        %v2599 = vadd.f32 0.0, %v2598
        %v2600 = vpop.f32.mrb[0].mxu0
        %2601 = vdwg.mxu0
        %v2602 = vld [vmem:[#allocation26] sm:$0x1]
        %v2604 = vlaneseq
        %v2605 = vshrl.u32 %v2604, 7
        %v2606 = vsub.s32 0, %v2605
        %v2607 = vrot.slane %v2602, %v2606
        %v2609 = vmul.f32 %v2588, %v2607
        %v2610 = vmul.f32 %v2591, %v2607
        %v2611 = vmul.f32 %v2596, %v2607
        %v2612 = vmul.f32 %v2599, %v2607
        %v2613 = vld [vmem:[#allocation28] sm:$0x1]
        %v2615 = vlaneseq
        %v2616 = vshrl.u32 %v2615, 7
        %v2617 = vsub.s32 0, %v2616
        %v2618 = vrot.slane %v2613, %v2617
        %v2620 = vadd.f32 %v2609, %v2618
        %v2621 = vadd.f32 %v2610, %v2618
        %v2622 = vadd.f32 %v2611, %v2618
        %v2623 = vadd.f32 %v2612, %v2618
        %v2624 = vmax.f32 %v2620, 0.0
        %v2625 = vmax.f32 %v2621, 0.0
        %v2626 = vmax.f32 %v2622, 0.0
        %v2627 = vmax.f32 %v2623, 0.0
        %v2628 = vmax.f32 %v2624, %v2626
        %v2629 = vmax.f32 %v2625, %v2627
        %vm2630 = vcmask 523264
        %2631 = vst.msk [vmem:[#allocation10 + $0x8] sm:$0xff] %vm2630, %v2628
        %vm2632 = vcmask 519168
        %2633 = vst.msk [vmem:[#allocation10 + $0x10] sm:$0xf] %vm2632, %v2629
        %2634 = vst.msk [vmem:[#allocation10] sm:$0xff] %vm2630, 0.0
        %2635 = vst.msk [vmem:[#allocation10 + $0x14] sm:$0xf] %vm2632, 0.0
        %s2636 = scalar_lea.vmem [#allocation10], 7
        %v2637 = vld [vmem:[%s2636] ss:$2 sm:$0xf]
        %v2638 = vpack.c.bf16 %v2637, %v2637
        %vm2639 = vcmask 517120
        %2640 = vst.msk [vmem:[#allocation11] sm:$0x3] %vm2639, %v2638
        %s2641 = scalar_lea.vmem [#allocation10], 8
        %v2642 = vld [vmem:[%s2641] ss:$2 sm:$0xf]
        %v2643 = vpack.c.bf16 %v2642, %v2642
        %v2645 = vrot.slane %v2643, 4
        %vm2647 = vcmask 521220
        %2648 = vst.msk [vmem:[#allocation11] sm:$0x30] %vm2647, %v2645
        %v2649 = vld [vmem:[%s2641] ss:$2 sm:$0xf]
        %v2650 = vpack.c.bf16 %v2649, %v2649
        %2652 = vrot.lane.b32.xlu0 %v2650, 64
        %v2653 = vpop.permute.xlu0 %2652
        %vm2655 = vcmask 1041920
        %2656 = vst.msk [vmem:[#allocation11] sm:$0x3] %vm2655, %v2653
        %s2657 = scalar_lea.vmem [#allocation10], 9
        %v2658 = vld [vmem:[%s2657] ss:$2 sm:$0xf]
        %v2659 = vpack.c.bf16 %v2658, %v2658
        %v2661 = vrot.slane %v2659, 4
        %2662 = vrot.lane.b32.xlu0 %v2661, 64
        %v2663 = vpop.permute.xlu0 %2662
        %vm2665 = vcmask 1046020
        %2666 = vst.msk [vmem:[#allocation11] sm:$0x30] %vm2665, %v2663
        %v2667 = vld [vmem:[%s2657] ss:$2 sm:$0xf]
        %v2668 = vpack.c.bf16 %v2667, %v2667
        %2669 = vst.msk [vmem:[#allocation11 + $0x8] sm:$0x3] %vm2639, %v2668
        %s2670 = scalar_lea.vmem [#allocation10], 10
        %v2671 = vld [vmem:[%s2670] ss:$2 sm:$0xf]
        %v2672 = vpack.c.bf16 %v2671, %v2671
        %v2674 = vrot.slane %v2672, 4
        %2676 = vst.msk [vmem:[#allocation11 + $0x8] sm:$0x30] %vm2647, %v2674
        %v2677 = vld [vmem:[%s2670] ss:$2 sm:$0xf]
        %v2678 = vpack.c.bf16 %v2677, %v2677
        %2680 = vrot.lane.b32.xlu0 %v2678, 64
        %v2681 = vpop.permute.xlu0 %2680
        %2683 = vst.msk [vmem:[#allocation11 + $0x8] sm:$0x3] %vm2655, %v2681
        %s2684 = scalar_lea.vmem [#allocation10], 11
        %v2685 = vld [vmem:[%s2684] ss:$2 sm:$0xf]
        %v2686 = vpack.c.bf16 %v2685, %v2685
        %v2688 = vrot.slane %v2686, 4
        %2689 = vrot.lane.b32.xlu0 %v2688, 64
        %v2690 = vpop.permute.xlu0 %2689
        %2692 = vst.msk [vmem:[#allocation11 + $0x8] sm:$0x30] %vm2665, %v2690
        %v2693 = vld [vmem:[%s2684] ss:$2 sm:$0xf]
        %v2694 = vpack.c.bf16 %v2693, %v2693
        %2695 = vst.msk [vmem:[#allocation11 + $0x10] sm:$0x3] %vm2639, %v2694
        %s2696 = scalar_lea.vmem [#allocation10], 12
        %v2697 = vld [vmem:[%s2696] ss:$2 sm:$0xf]
        %v2698 = vpack.c.bf16 %v2697, %v2697
        %v2700 = vrot.slane %v2698, 4
        %2702 = vst.msk [vmem:[#allocation11 + $0x10] sm:$0x30] %vm2647, %v2700
        %v2703 = vld [vmem:[%s2696] ss:$2 sm:$0xf]
        %v2704 = vpack.c.bf16 %v2703, %v2703
        %2706 = vrot.lane.b32.xlu0 %v2704, 64
        %v2707 = vpop.permute.xlu0 %2706
        %2709 = vst.msk [vmem:[#allocation11 + $0x10] sm:$0x3] %vm2655, %v2707
        %s2710 = scalar_lea.vmem [#allocation10], 13
        %v2711 = vld [vmem:[%s2710] ss:$2 sm:$0xf]
        %v2712 = vpack.c.bf16 %v2711, %v2711
        %v2714 = vrot.slane %v2712, 4
        %2715 = vrot.lane.b32.xlu0 %v2714, 64
        %v2716 = vpop.permute.xlu0 %2715
        %2718 = vst.msk [vmem:[#allocation11 + $0x10] sm:$0x30] %vm2665, %v2716
        %v2719 = vld [vmem:[%s2710] ss:$2 sm:$0xf]
        %v2720 = vpack.c.bf16 %v2719, %v2719
        %2721 = vst.msk [vmem:[#allocation11 + $0x18] sm:$0x3] %vm2639, %v2720
        %s2722 = scalar_lea.vmem [#allocation10], 14
        %v2723 = vld [vmem:[%s2722] ss:$2 sm:$0xf]
        %v2724 = vpack.c.bf16 %v2723, %v2723
        %v2726 = vrot.slane %v2724, 4
        %2728 = vst.msk [vmem:[#allocation11 + $0x18] sm:$0x30] %vm2647, %v2726
        %v2729 = vld [vmem:[#allocation11] sm:$0xff]
        %v2730 = vld [vmem:[#allocation11 + $0x8] sm:$0xff]
        %v2731 = vld [vmem:[#allocation11 + $0x10] sm:$0xff]
        %v2732 = vld [vmem:[#allocation11 + $0x18] sm:$0xff]
        %v2733 = vld [vmem:[#allocation29] sm:$0xf]
        %v2734 = vld [vmem:[#allocation29 + $0x4] sm:$0xf]
        %v2735 = vld [vmem:[#allocation29 + $0x8] sm:$0xf]
        %v2736 = vld [vmem:[#allocation29 + $0xc] sm:$0xf]
        %v2737 = vld [vmem:[#allocation29 + $0x10] sm:$0xf]
        %v2738 = vld [vmem:[#allocation29 + $0x14] sm:$0xf]
        %v2739 = vld [vmem:[#allocation29 + $0x18] sm:$0xf]
        %v2740 = vld [vmem:[#allocation29 + $0x1c] sm:$0xf]
        %v2741 = vld [vmem:[#allocation29 + $0x20] sm:$0xf]
        %v2742 = vld [vmem:[#allocation29 + $0x24] sm:$0xf]
        %v2743 = vld [vmem:[#allocation29 + $0x28] sm:$0xf]
        %v2744 = vld [vmem:[#allocation29 + $0x2c] sm:$0xf]
        %v2745 = vld [vmem:[#allocation29 + $0x30] sm:$0xf]
        %v2746 = vld [vmem:[#allocation29 + $0x34] sm:$0xf]
        %v2747 = vld [vmem:[#allocation29 + $0x38] sm:$0xf]
        %v2748 = vld [vmem:[#allocation29 + $0x3c] sm:$0xf]
        %v2749 = vld [vmem:[#allocation29 + $0x40] sm:$0xf]
        %v2750 = vld [vmem:[#allocation29 + $0x44] sm:$0xf]
        %v2751 = vld [vmem:[#allocation29 + $0x48] sm:$0xf]
        %v2752 = vld [vmem:[#allocation29 + $0x4c] sm:$0xf]
        %v2753 = vld [vmem:[#allocation29 + $0x50] sm:$0xf]
        %v2754 = vld [vmem:[#allocation29 + $0x54] sm:$0xf]
        %v2755 = vld [vmem:[#allocation29 + $0x58] sm:$0xf]
        %v2756 = vld [vmem:[#allocation29 + $0x5c] sm:$0xf]
        %v2757 = vld [vmem:[#allocation29 + $0x60] sm:$0xf]
        %v2758 = vld [vmem:[#allocation29 + $0x64] sm:$0xf]
        %v2759 = vld [vmem:[#allocation29 + $0x68] sm:$0xf]
        %v2760 = vld [vmem:[#allocation29 + $0x6c] sm:$0xf]
        %v2761 = vld [vmem:[#allocation29 + $0x70] sm:$0xf]
        %v2762 = vld [vmem:[#allocation29 + $0x74] sm:$0xf]
        %v2763 = vld [vmem:[#allocation29 + $0x78] sm:$0xf]
        %v2764 = vld [vmem:[#allocation29 + $0x7c] sm:$0xf]
        %v2765 = vld [vmem:[#allocation29 + $0x80] sm:$0xf]
        %v2766 = vld [vmem:[#allocation29 + $0x84] sm:$0xf]
        %v2767 = vld [vmem:[#allocation29 + $0x88] sm:$0xf]
        %v2768 = vld [vmem:[#allocation29 + $0x8c] sm:$0xf]
        %v2769 = vld [vmem:[#allocation29 + $0x90] sm:$0xf]
        %v2770 = vld [vmem:[#allocation29 + $0x94] sm:$0xf]
        %v2771 = vld [vmem:[#allocation29 + $0x98] sm:$0xf]
        %v2772 = vld [vmem:[#allocation29 + $0x9c] sm:$0xf]
        %v2773 = vld [vmem:[#allocation29 + $0xa0] sm:$0xf]
        %v2774 = vld [vmem:[#allocation29 + $0xa4] sm:$0xf]
        %v2775 = vld [vmem:[#allocation29 + $0xa8] sm:$0xf]
        %v2776 = vld [vmem:[#allocation29 + $0xac] sm:$0xf]
        %v2777 = vld [vmem:[#allocation29 + $0xb0] sm:$0xf]
        %v2778 = vld [vmem:[#allocation29 + $0xb4] sm:$0xf]
        %v2779 = vld [vmem:[#allocation29 + $0xb8] sm:$0xf]
        %v2780 = vld [vmem:[#allocation29 + $0xbc] sm:$0xf]
        %v2781 = vld [vmem:[#allocation29 + $0xc0] sm:$0xf]
        %v2782 = vld [vmem:[#allocation29 + $0xc4] sm:$0xf]
        %v2783 = vld [vmem:[#allocation29 + $0xc8] sm:$0xf]
        %v2784 = vld [vmem:[#allocation29 + $0xcc] sm:$0xf]
        %v2785 = vld [vmem:[#allocation29 + $0xd0] sm:$0xf]
        %v2786 = vld [vmem:[#allocation29 + $0xd4] sm:$0xf]
        %v2787 = vld [vmem:[#allocation29 + $0xd8] sm:$0xf]
        %v2788 = vld [vmem:[#allocation29 + $0xdc] sm:$0xf]
        %v2845 = vunpack.c.l.b16 %v2733
        %v2846 = vunpack.c.l.b16 %v2734
        %v2847 = vunpack.c.l.b16 %v2735
        %v2848 = vunpack.c.l.b16 %v2736
        %v2849 = vunpack.c.l.b16 %v2737
        %v2850 = vunpack.c.l.b16 %v2738
        %v2851 = vunpack.c.l.b16 %v2739
        %v2852 = vunpack.c.l.b16 %v2740
        %v2853 = vunpack.c.l.b16 %v2741
        %v2854 = vunpack.c.l.b16 %v2742
        %v2855 = vunpack.c.l.b16 %v2743
        %v2856 = vunpack.c.l.b16 %v2744
        %v2857 = vunpack.c.l.b16 %v2745
        %v2858 = vunpack.c.l.b16 %v2746
        %v2859 = vunpack.c.l.b16 %v2747
        %v2860 = vunpack.c.l.b16 %v2748
        %v2861 = vunpack.c.l.b16 %v2749
        %v2862 = vunpack.c.l.b16 %v2750
        %v2863 = vunpack.c.l.b16 %v2751
        %v2864 = vunpack.c.l.b16 %v2752
        %v2865 = vunpack.c.l.b16 %v2753
        %v2866 = vunpack.c.l.b16 %v2754
        %v2867 = vunpack.c.l.b16 %v2755
        %v2868 = vunpack.c.l.b16 %v2756
        %v2869 = vunpack.c.l.b16 %v2757
        %v2870 = vunpack.c.l.b16 %v2758
        %v2871 = vunpack.c.l.b16 %v2759
        %v2872 = vunpack.c.l.b16 %v2760
        %v2873 = vunpack.c.l.b16 %v2761
        %v2874 = vunpack.c.l.b16 %v2762
        %v2875 = vunpack.c.l.b16 %v2763
        %v2876 = vunpack.c.l.b16 %v2764
        %v2877 = vunpack.c.l.b16 %v2765
        %v2878 = vunpack.c.l.b16 %v2766
        %v2879 = vunpack.c.l.b16 %v2767
        %v2880 = vunpack.c.l.b16 %v2768
        %v2881 = vunpack.c.l.b16 %v2769
        %v2882 = vunpack.c.l.b16 %v2770
        %v2883 = vunpack.c.l.b16 %v2771
        %v2884 = vunpack.c.l.b16 %v2772
        %v2885 = vunpack.c.l.b16 %v2773
        %v2886 = vunpack.c.l.b16 %v2774
        %v2887 = vunpack.c.l.b16 %v2775
        %v2888 = vunpack.c.l.b16 %v2776
        %v2889 = vunpack.c.l.b16 %v2777
        %v2890 = vunpack.c.l.b16 %v2778
        %v2891 = vunpack.c.l.b16 %v2779
        %v2892 = vunpack.c.l.b16 %v2780
        %v2893 = vunpack.c.l.b16 %v2781
        %v2894 = vunpack.c.l.b16 %v2782
        %v2895 = vunpack.c.l.b16 %v2783
        %v2896 = vunpack.c.l.b16 %v2784
        %v2897 = vunpack.c.l.b16 %v2785
        %v2898 = vunpack.c.l.b16 %v2786
        %v2899 = vunpack.c.l.b16 %v2787
        %v2900 = vunpack.c.l.b16 %v2788
        %v2901 = vpack.c.b16 %v2846, %v2845
        %v2902 = vpack.c.b16 %v2848, %v2847
        %v2903 = vpack.c.b16 %v2850, %v2849
        %v2904 = vpack.c.b16 %v2852, %v2851
        %v2905 = vpack.c.b16 %v2854, %v2853
        %v2906 = vpack.c.b16 %v2856, %v2855
        %v2907 = vpack.c.b16 %v2858, %v2857
        %v2908 = vpack.c.b16 %v2860, %v2859
        %v2909 = vpack.c.b16 %v2862, %v2861
        %v2910 = vpack.c.b16 %v2864, %v2863
        %v2911 = vpack.c.b16 %v2866, %v2865
        %v2912 = vpack.c.b16 %v2868, %v2867
        %v2913 = vpack.c.b16 %v2870, %v2869
        %v2914 = vpack.c.b16 %v2872, %v2871
        %v2915 = vpack.c.b16 %v2874, %v2873
        %v2916 = vpack.c.b16 %v2876, %v2875
        %v2917 = vpack.c.b16 %v2878, %v2877
        %v2918 = vpack.c.b16 %v2880, %v2879
        %v2919 = vpack.c.b16 %v2882, %v2881
        %v2920 = vpack.c.b16 %v2884, %v2883
        %v2921 = vpack.c.b16 %v2886, %v2885
        %v2922 = vpack.c.b16 %v2888, %v2887
        %v2923 = vpack.c.b16 %v2890, %v2889
        %v2924 = vpack.c.b16 %v2892, %v2891
        %v2925 = vpack.c.b16 %v2894, %v2893
        %v2926 = vpack.c.b16 %v2896, %v2895
        %v2927 = vpack.c.b16 %v2898, %v2897
        %v2928 = vpack.c.b16 %v2900, %v2899
        %v2958 = vsel %vm2630, %v2732, 0
        %2960 = vmatprep.subr.bf16.mxu0 0
        %2961 = vmatpush1.bf16.msra.mxu0 %v2901
        %2962 = vmatprep.subr.bf16.mxu0 0
        %2963 = vmatpush1.bf16.msra.mxu0 %v2902
        %2964 = vmatprep.subr.bf16.mxu0 0
        %2965 = vmatpush1.bf16.msra.mxu0 %v2903
        %2966 = vmatprep.subr.bf16.mxu0 0
        %2967 = vmatpush1.bf16.msra.mxu0 %v2904
        %2968 = vmatprep.subr.bf16.mxu0 0
        %2969 = vmatpush1.bf16.msra.mxu0 %v2905
        %2970 = vmatprep.subr.bf16.mxu0 0
        %2971 = vmatpush1.bf16.msra.mxu0 %v2906
        %2972 = vmatprep.subr.bf16.mxu0 0
        %2973 = vmatpush1.bf16.msra.mxu0 %v2907
        %2974 = vmatprep.subr.bf16.mxu0 0
        %2975 = vmatpush1.bf16.msra.mxu0 %v2908
        %2976 = vmatprep.subr.bf16.mxu0 0
        %2977 = vmatpush1.bf16.msra.mxu0 %v2909
        %2978 = vmatprep.subr.bf16.mxu0 0
        %2979 = vmatpush1.bf16.msra.mxu0 %v2910
        %2980 = vmatprep.subr.bf16.mxu0 0
        %2981 = vmatpush1.bf16.msra.mxu0 %v2911
        %2982 = vmatprep.subr.bf16.mxu0 0
        %2983 = vmatpush1.bf16.msra.mxu0 %v2912
        %2984 = vmatprep.subr.bf16.mxu0 0
        %2985 = vmatpush1.bf16.msra.mxu0 %v2913
        %2986 = vmatprep.subr.bf16.mxu0 0
        %2987 = vmatpush1.bf16.msra.mxu0 %v2914
        %2988 = vmatprep.subr.bf16.mxu0 0
        %2989 = vmatpush1.bf16.msra.mxu0 %v2915
        %2990 = vmatprep.subr.bf16.mxu0 0
        %2991 = vmatpush1.bf16.msra.mxu0 %v2916
        %2992 = vmatprep.mubr.bf16.mxu0 %v2730
        %2993 = vmatmul.mubr.bf16.gmra.mrb[0].mxu0 %v2729
        %v2994 = vpop.f32.mrb[0].mxu0
        %v2995 = vadd.f32 0.0, %v2994
        %v2996 = vpop.f32.mrb[0].mxu0
        %v2997 = vpop.f32.mrb[0].mxu0
        %v2998 = vadd.f32 0.0, %v2997
        %v2999 = vpop.f32.mrb[0].mxu0
        %3000 = vdwg.mxu0
        %3001 = vmatprep.subr.bf16.mxu0 0
        %3002 = vmatpush1.bf16.msra.mxu0 %v2917
        %3003 = vmatprep.subr.bf16.mxu0 0
        %3004 = vmatpush1.bf16.msra.mxu0 %v2918
        %3005 = vmatprep.subr.bf16.mxu0 0
        %3006 = vmatpush1.bf16.msra.mxu0 %v2919
        %3007 = vmatprep.subr.bf16.mxu0 0
        %3008 = vmatpush1.bf16.msra.mxu0 %v2920
        %3009 = vmatprep.subr.bf16.mxu0 0
        %3010 = vmatpush1.bf16.msra.mxu0 %v2921
        %3011 = vmatprep.subr.bf16.mxu0 0
        %3012 = vmatpush1.bf16.msra.mxu0 %v2922
        %3013 = vmatprep.subr.bf16.mxu0 0
        %3014 = vmatpush1.bf16.msra.mxu0 %v2923
        %3015 = vmatprep.subr.bf16.mxu0 0
        %3016 = vmatpush1.bf16.msra.mxu0 %v2924
        %3017 = vmatprep.subr.bf16.mxu0 0
        %3018 = vmatpush1.bf16.msra.mxu0 %v2925
        %3019 = vmatprep.subr.bf16.mxu0 0
        %3020 = vmatpush1.bf16.msra.mxu0 %v2926
        %3021 = vmatprep.subr.bf16.mxu0 0
        %3022 = vmatpush1.bf16.msra.mxu0 %v2927
        %3023 = vmatprep.subr.bf16.mxu0 0
        %3024 = vmatpush1.bf16.msra.mxu0 %v2928
        %3025 = vmatprep.subr.bf16.mxu0 0
        %3026 = vmatpush1.bf16.msra.mxu0 0
        %3027 = vmatprep.subr.bf16.mxu0 0
        %3028 = vmatpush1.bf16.msra.mxu0 0
        %3029 = vmatprep.subr.bf16.mxu0 0
        %3030 = vmatpush1.bf16.msra.mxu0 0
        %3031 = vmatprep.subr.bf16.mxu0 0
        %3032 = vmatpush1.bf16.msra.mxu0 0
        %3033 = vmatprep.mubr.bf16.mxu0 %v2958
        %3034 = vmatmul.mubr.bf16.gmra.mrb[0].mxu0 %v2731
        %v3035 = vpop.f32.mrb[0].mxu0
        %v3036 = vadd.f32 %v2995, %v3035
        %v3037 = vpop.f32.mrb[0].mxu0
        %v3038 = vpop.f32.mrb[0].mxu0
        %v3039 = vadd.f32 %v2998, %v3038
        %v3040 = vpop.f32.mrb[0].mxu0
        %3041 = vdwg.mxu0
        %v3042 = vld [vmem:[#allocation31] sm:$0x1]
        %v3044 = vlaneseq
        %v3045 = vshrl.u32 %v3044, 7
        %v3046 = vsub.s32 0, %v3045
        %v3047 = vrot.slane %v3042, %v3046
        %v3049 = vmul.f32 %v3036, %v3047
        %v3050 = vmul.f32 %v3039, %v3047
        %v3051 = vld [vmem:[#allocation32] sm:$0x1]
        %v3053 = vlaneseq
        %v3054 = vshrl.u32 %v3053, 7
        %v3055 = vsub.s32 0, %v3054
        %v3056 = vrot.slane %v3051, %v3055
        %v3058 = vadd.f32 %v3049, %v3056
        %v3059 = vadd.f32 %v3050, %v3056
        %v3060 = vmax.f32 %v3058, 0.0
        %v3061 = vmax.f32 %v3059, 0.0
        %v3062 = vmax.f32 %v3060, %v3061
        %3063 = vxpose.xlu0.b32.start [1/16] %v3062, 128
        %3064 = vxpose.xlu0.b32.cont [2/16] 0.0, 128
        %3065 = vxpose.xlu0.b32.cont [3/16] 0.0, 128
        %3066 = vxpose.xlu0.b32.cont [4/16] 0.0, 128
        %3067 = vxpose.xlu0.b32.cont [5/16] 0.0, 128
        %3068 = vxpose.xlu0.b32.cont [6/16] 0.0, 128
        %3069 = vxpose.xlu0.b32.cont [7/16] 0.0, 128
        %3070 = vxpose.xlu0.b32.cont [8/16] 0.0, 128
        %3071 = vxpose.xlu0.b32.cont [9/16] 0.0, 128
        %3072 = vxpose.xlu0.b32.cont [10/16] 0.0, 128
        %3073 = vxpose.xlu0.b32.cont [11/16] 0.0, 128
        %3074 = vxpose.xlu0.b32.cont [12/16] 0.0, 128
        %3075 = vxpose.xlu0.b32.cont [13/16] 0.0, 128
        %3076 = vxpose.xlu0.b32.cont [14/16] 0.0, 128
        %3077 = vxpose.xlu0.b32.cont [15/16] 0.0, 128
        %3078 = vxpose.xlu0.b32.end [16/16] 0.0, 128
        %v3079 = vpop.trf.xlu0
        %v3080 = vpop.trf.xlu0
        %v3081 = vpop.trf.xlu0
        %v3082 = vpop.trf.xlu0
        %v3083 = vpop.trf.xlu0
        %v3084 = vpop.trf.xlu0
        %v3085 = vpop.trf.xlu0
        %v3086 = vpop.trf.xlu0
        %v3087 = vpop.trf.xlu0
        %v3088 = vpop.trf.xlu0
        %v3089 = vpop.trf.xlu0
        %v3090 = vpop.trf.xlu0
        %v3091 = vpop.trf.xlu0
        %v3092 = vpop.trf.xlu0
        %v3093 = vpop.trf.xlu0
        %v3094 = vpop.trf.xlu0
        %3095 = vst.msk [vmem:[%s702] sm:$0xff] %vm979, %v3079
        %3096 = vst.msk [vmem:[%s702 + $0x8] sm:$0xff] %vm979, %v3080
        %3097 = vst.msk [vmem:[%s702 + $0x10] sm:$0xff] %vm979, %v3081
        %3098 = vst.msk [vmem:[%s702 + $0x18] sm:$0xff] %vm979, %v3082
        %3099 = vst.msk [vmem:[%s702 + $0x20] sm:$0xff] %vm979, %v3083
        %3100 = vst.msk [vmem:[%s702 + $0x28] sm:$0xff] %vm979, %v3084
        %3101 = vst.msk [vmem:[%s702 + $0x30] sm:$0xff] %vm979, %v3085
        %3102 = vst.msk [vmem:[%s702 + $0x38] sm:$0xff] %vm979, %v3086
        %3103 = vst.msk [vmem:[%s702 + $0x40] sm:$0xff] %vm979, %v3087
        %3104 = vst.msk [vmem:[%s702 + $0x48] sm:$0xff] %vm979, %v3088
        %3105 = vst.msk [vmem:[%s702 + $0x50] sm:$0xff] %vm979, %v3089
        %3106 = vst.msk [vmem:[%s702 + $0x58] sm:$0xff] %vm979, %v3090
        %3107 = vst.msk [vmem:[%s702 + $0x60] sm:$0xff] %vm979, %v3091
        %3108 = vst.msk [vmem:[%s702 + $0x68] sm:$0xff] %vm979, %v3092
        %3109 = vst.msk [vmem:[%s702 + $0x70] sm:$0xff] %vm979, %v3093
        %3110 = vst.msk [vmem:[%s702 + $0x78] sm:$0xff] %vm979, %v3094
        %p3111 = scmp.lt.s32.totalorder %s35, 1
        %s3112 = scalar_select %p3111, %s35, 1
        %s3113 = smul.addr %s3112, 16
        %s3114 = smul.addr %s3113, 8
        %s3115 = scalar_lea.vmem %s16, %s3114
        // Predicated region
        $region141: #{cnnlayer_forward.1} parent=83 // pred_check
          %p3116 = pneg %p394
        $region142: #{cnnlayer_forward.1} parent=83 // pred_check_branch
          %3118 = sbr.rel (%p3116) target = $region144
        $region143: #{cnnlayer_forward.1} parent=83 // pred_region
          _
        $region144: #{cnnlayer_forward.1} parent=83 // pred_fallthru
          _
      $region84: #{cnnlayer_forward.1} parent=5 // pred_fallthru
        _
      %p3119 = scmp.le.s32.totalorder 2, %s30
      // Predicated region
      $region145: #{cnnlayer_forward.1} parent=5 // pred_check
        %p3120 = pneg %p3119
      $region146: #{cnnlayer_forward.1} parent=5 // pred_check_branch
        %3122 = sbr.rel (%p3120) target = $region148
      $region147: #{cnnlayer_forward.1} parent=5 // pred_region
        %s3123 = ssub.s32 %s30, 2
        // Predicated region
        $region149: #{cnnlayer_forward.1} parent=147 // pred_check
          %p3124 = pneg %p400
        $region150: #{cnnlayer_forward.1} parent=147 // pred_check_branch
          %3126 = sbr.rel (%p3124) target = $region152
        $region151: #{cnnlayer_forward.1} parent=147 // pred_region
          %p3127 = scmp.lt.s32.totalorder %s36, 1
          %s3128 = scalar_select %p3127, %s36, 1
          %s3129 = smul.addr %s3128, 16
          %s3130 = smul.addr %s3129, 8
          %s3131 = scalar_lea.vmem %s16, %s3130
        $region152: #{cnnlayer_forward.1} parent=147 // pred_fallthru
          _
      $region148: #{cnnlayer_forward.1} parent=5 // pred_fallthru
        _
    $region6: #{cnnlayer_forward.1} parent=1 // loop_footer
      %s34 = sadd.s32 1, %s30
    $region7: #{cnnlayer_forward.1} parent=1 // loop_footer_branch
      %29 = sbr.rel target = $region3
    $region8: #{cnnlayer_forward.1} parent=1 // loop_exit
      _
    %3132 = vsyncpa [#allocation13], 1
    %s3133 = scalar_lea.sflag [#allocation13], 1
    %3134 = vsyncpa %s3133, 1
    %3135 = vsyncpa [#allocation15], 1
    %3136 = vsyncpa [#allocation18], 1
    %3137 = vsyncpa [#allocation21], 1
    %3138 = vsyncpa [#allocation24], 1
    %3139 = vsyncpa [#allocation27], 1
    %3140 = vsyncpa [#allocation30], 1
    %3141 = vsyncpa [#allocation33], 1

</llo_original>
